<compile_context>
chip_gen: v6e
topology: v6e:2x2x1
jax: 0.10.0
libtpu: 0.0.40
codegen_flags: <defaults>
</compile_context>

<pallas_src>
import functools

import jax
import jax.numpy as jnp
from jax.experimental import pallas as pl
from jax.experimental.pallas import tpu as pltpu

IN_FEATURES = 2048
OUT_FEATURES = 2048
NUM_LAYERS = 10


def _fused_mlp_kernel(x_ref, w_ref, b_ref, o_ref, act_ref, *, tn):
    """Grid = (layer, n_tile).  Each step: full-K matmul for one N tile.

    act_ref is a (2, B, K) fp32 ping-pong buffer: slot layer % 2 holds the
    current layer's input activation; slot (layer + 1) % 2 collects the next
    layer's input, one N-tile at a time.
    """
    layer = pl.program_id(0)
    j = pl.program_id(1)

    # Seed the ping-pong buffer with the kernel input on the very first step.
    @pl.when(jnp.logical_and(layer == 0, j == 0))
    def _():
        act_ref[0] = x_ref[...].astype(jnp.float32)

    src = layer % 2
    dst = (layer + 1) % 2

    x = act_ref[src]                                   # (B, K) fp32, VMEM-resident
    y = jnp.dot(x, w_ref[0], preferred_element_type=jnp.float32) + b_ref[0]

    # Stash this N tile as part of the next layer's input activation.
    col = pl.multiple_of(j * tn, tn)
    act_ref[dst, :, pl.ds(col, tn)] = y

    # Write unconditionally: only the last layer's values survive in HBM, and
    # the extra intermediate writebacks (~64 KiB/layer) are negligible next to
    # the 16 MiB/layer weight stream.
    o_ref[...] = y.astype(o_ref.dtype)


@functools.partial(jax.jit, static_argnames=("tn",))
def fused_mlp(x, w_stacked, b_stacked, *, tn=1024):
    """All layers in one call: x:[B,K], w:[L,K,N], b:[L,1,N] -> [B,N]."""
    B, K = x.shape
    L, _, N = w_stacked.shape
    assert N % tn == 0 and b_stacked.shape == (L, 1, N)
    grid = (L, N // tn)
    kernel = functools.partial(_fused_mlp_kernel, tn=tn)
    return pl.pallas_call(
        kernel,
        out_shape=jax.ShapeDtypeStruct((B, N), x.dtype),
        grid_spec=pltpu.PrefetchScalarGridSpec(
            num_scalar_prefetch=0,
            grid=grid,
            in_specs=[
                pl.BlockSpec((B, K), lambda l, j: (0, 0)),          # input x (resident)
                pl.BlockSpec((1, K, tn), lambda l, j: (l, 0, j)),   # weight (in, out)
                pl.BlockSpec((1, 1, tn), lambda l, j: (l, 0, j)),   # bias
            ],
            out_specs=pl.BlockSpec((B, tn), lambda l, j: (0, j)),
            scratch_shapes=[pltpu.VMEM((2, B, K), jnp.float32)],    # activation ping-pong
        ),
        compiler_params=pltpu.CompilerParams(
            # Both axes sequential: the layer axis carries the ping-pong
            # dependency, and the N axis writes into the shared scratch slot.
            # (Do NOT mark N "parallel": on 2-TC chips each core has private
            # scratch and would see only half of the next activation.)
            dimension_semantics=("arbitrary", "arbitrary"),
            # ~16.3 MiB peak (2x8 MiB weight buffers + small buffers/scratch):
            # raise above v5e's 16 MiB default scoped limit, <= v6e/v7x defaults.
            vmem_limit_bytes=32 * 1024 * 1024,
        ),
    )(x, w_stacked, b_stacked)


def init_params(key):
    """Deterministic synthetic parameters for 10 Linear(2048, 2048) layers."""
    w_list, b_list = [], []
    scale = 1.0 / jnp.sqrt(jnp.float32(IN_FEATURES))  # keep activations bounded
    for i in range(NUM_LAYERS):
        kw, kb, key = jax.random.split(jax.random.fold_in(key, i), 3)
        # PyTorch weight is (out, in); we store its transpose (in, out).
        w_list.append(
            jax.random.normal(kw, (IN_FEATURES, OUT_FEATURES), jnp.float32) * scale
        )
        b_list.append(jax.random.normal(kb, (1, OUT_FEATURES), jnp.float32) * 0.01)
    return jnp.stack(w_list), jnp.stack(b_list)       # [L, K, N], [L, 1, N]


def simple_model_forward(x, w_stacked, b_stacked):
    return fused_mlp(x, w_stacked, b_stacked)


if __name__ == "__main__":
    key = jax.random.PRNGKey(0)
    kx, kp = jax.random.split(key)

    batch = 8  # small batch; features fixed at 2048 by the module definition
    x = jax.random.normal(kx, (batch, IN_FEATURES), jnp.float32)
    w_stacked, b_stacked = init_params(kp)

    y = simple_model_forward(x, w_stacked, b_stacked)
    y = jax.block_until_ready(y)

    # Sanity check against plain-JAX reference.
    y_ref = x
    for i in range(NUM_LAYERS):
        y_ref = y_ref @ w_stacked[i] + b_stacked[i]
    assert y.shape == (batch, OUT_FEATURES)
    assert jnp.allclose(y, y_ref, rtol=1e-4, atol=1e-4), float(
        jnp.max(jnp.abs(y - y_ref))
    )

    print("KERNEL_OK")
</pallas_src>

<mosaic_0001>
module attributes {stable_mosaic.version = 11 : i64} {
  func.func @_fused_mlp_kernel(%arg0: i32, %arg1: i32, %arg2: memref<8x2048xf32, #tpu.memory_space<vmem>>, %arg3: memref<1x2048x1024xf32, #tpu.memory_space<vmem>>, %arg4: memref<1x1x1024xf32, #tpu.memory_space<vmem>>, %arg5: memref<8x1024xf32, #tpu.memory_space<vmem>>, %arg6: memref<2x8x2048xf32, #tpu.memory_space<vmem>>) attributes {dimension_semantics = [#tpu.dimension_semantics<arbitrary>, #tpu.dimension_semantics<arbitrary>], iteration_bounds = array<i64: 10, 2>, scalar_prefetch = 0 : i64, scratch_operands = 1 : i64, tpu.core_type = #tpu.core_type<tc>, window_params = [{pipeline_mode = #tpu.pipeline_mode<synchronous>, transform_indices = @transform_0, window_bounds = array<i64: 8, 2048>}, {transform_indices = @transform_1, window_bounds = array<i64: 1, 2048, 1024>}, {transform_indices = @transform_2, window_bounds = array<i64: 1, 1, 1024>}, {transform_indices = @transform_3, window_bounds = array<i64: 8, 1024>}]} {
    %c0_i32 = arith.constant 0 : i32
    %0 = arith.cmpi eq, %arg0, %c0_i32 : i32
    %c0_i32_0 = arith.constant 0 : i32
    %1 = arith.cmpi eq, %arg1, %c0_i32_0 : i32
    %2 = arith.andi %0, %1 : i1
    %3 = arith.extui %2 : i1 to i32
    %c0_i32_1 = arith.constant 0 : i32
    %4 = arith.cmpi ne, %3, %c0_i32_1 : i32
    scf.if %4 {
      %c0_23 = arith.constant 0 : index
      %c0_24 = arith.constant 0 : index
      %44 = vector.load %arg2[%c0_23, %c0_24] : memref<8x2048xf32, #tpu.memory_space<vmem>>, vector<8x2048xf32>
      %c0_25 = arith.constant 0 : index
      %c0_26 = arith.constant 0 : index
      %c0_27 = arith.constant 0 : index
      %45 = vector.load %arg6[%c0_25, %c0_26, %c0_27] : memref<2x8x2048xf32, #tpu.memory_space<vmem>>, vector<1x8x2048xf32>
      %46 = vector.shape_cast %45 : vector<1x8x2048xf32> to vector<8x2048xf32>
      %47 = vector.shape_cast %44 : vector<8x2048xf32> to vector<1x8x2048xf32>
      tpu.vector_store %arg6[%c0_25, %c0_26, %c0_27], %47 {strides = array<i32>} : memref<2x8x2048xf32, #tpu.memory_space<vmem>>, vector<1x8x2048xf32>,
    } else {
    }
    %c2_i32 = arith.constant 2 : i32
    %c0_i32_2 = arith.constant 0 : i32
    %5 = arith.cmpi eq, %c2_i32, %c0_i32_2 : i32
    %c1_i32 = arith.constant 1 : i32
    %6 = arith.select %5, %c1_i32, %c2_i32 : i32
    %7 = arith.remsi %arg0, %6 : i32
    %c0_i32_3 = arith.constant 0 : i32
    %8 = arith.cmpi ne, %7, %c0_i32_3 : i32
    %c0_i32_4 = arith.constant 0 : i32
    %9 = arith.cmpi slt, %7, %c0_i32_4 : i32
    %c0_i32_5 = arith.constant 0 : i32
    %10 = arith.cmpi slt, %6, %c0_i32_5 : i32
    %11 = arith.xori %9, %10 : i1
    %12 = arith.andi %11, %8 : i1
    %13 = arith.addi %7, %6 : i32
    %14 = arith.select %12, %13, %7 : i32
    %c1_i32_6 = arith.constant 1 : i32
    %15 = arith.addi %arg0, %c1_i32_6 : i32
    %c2_i32_7 = arith.constant 2 : i32
    %c0_i32_8 = arith.constant 0 : i32
    %16 = arith.cmpi eq, %c2_i32_7, %c0_i32_8 : i32
    %c1_i32_9 = arith.constant 1 : i32
    %17 = arith.select %16, %c1_i32_9, %c2_i32_7 : i32
    %18 = arith.remsi %15, %17 : i32
    %c0_i32_10 = arith.constant 0 : i32
    %19 = arith.cmpi ne, %18, %c0_i32_10 : i32
    %c0_i32_11 = arith.constant 0 : i32
    %20 = arith.cmpi slt, %18, %c0_i32_11 : i32
    %c0_i32_12 = arith.constant 0 : i32
    %21 = arith.cmpi slt, %17, %c0_i32_12 : i32
    %22 = arith.xori %20, %21 : i1
    %23 = arith.andi %22, %19 : i1
    %24 = arith.addi %18, %17 : i32
    %25 = arith.select %23, %24, %18 : i32
    %26 = arith.index_cast %14 : i32 to index
    %c0 = arith.constant 0 : index
    %c0_13 = arith.constant 0 : index
    %27 = vector.load %arg6[%26, %c0, %c0_13] : memref<2x8x2048xf32, #tpu.memory_space<vmem>>, vector<1x8x2048xf32>
    %28 = vector.shape_cast %27 : vector<1x8x2048xf32> to vector<8x2048xf32>
    %c0_14 = arith.constant 0 : index
    %c0_15 = arith.constant 0 : index
    %c0_16 = arith.constant 0 : index
    %29 = vector.load %arg3[%c0_14, %c0_15, %c0_16] : memref<1x2048x1024xf32, #tpu.memory_space<vmem>>, vector<1x2048x1024xf32>
    %30 = vector.shape_cast %29 : vector<1x2048x1024xf32> to vector<2048x1024xf32>
    %cst = arith.constant dense<0.000000e+00> : vector<8x1024xf32>
    %31 = tpu.matmul %28, %30, %cst {dimension_numbers = #tpu.dot_dimension_numbers<[1], [0], [0], [1], [0, 0, 1, 1], [], []>} : vector<8x2048xf32>, vector<2048x1024xf32>, vector<8x1024xf32> -> vector<8x1024xf32>
    %c0_17 = arith.constant 0 : index
    %c0_18 = arith.constant 0 : index
    %c0_19 = arith.constant 0 : index
    %32 = vector.load %arg4[%c0_17, %c0_18, %c0_19] : memref<1x1x1024xf32, #tpu.memory_space<vmem>>, vector<1x1x1024xf32>
    %33 = vector.shape_cast %32 : vector<1x1x1024xf32> to vector<1x1024xf32>
    %34 = vector.broadcast %33 : vector<1x1024xf32> to vector<8x1024xf32>
    %35 = arith.addf %31, %34 : vector<8x1024xf32>
    %c1024_i32 = arith.constant 1024 : i32
    %36 = arith.muli %arg1, %c1024_i32 : i32
    %37 = tpu.assume_multiple %36, 1024 : i32
    %38 = arith.index_cast %25 : i32 to index
    %c0_20 = arith.constant 0 : index
    %39 = arith.index_cast %37 : i32 to index
    %40 = vector.load %arg6[%38, %c0_20, %39] : memref<2x8x2048xf32, #tpu.memory_space<vmem>>, vector<1x8x1024xf32>
    %41 = vector.shape_cast %40 : vector<1x8x1024xf32> to vector<8x1024xf32>
    %42 = vector.shape_cast %35 : vector<8x1024xf32> to vector<1x8x1024xf32>
    tpu.vector_store %arg6[%38, %c0_20, %39], %42 {strides = array<i32>} : memref<2x8x2048xf32, #tpu.memory_space<vmem>>, vector<1x8x1024xf32>,
    %c0_21 = arith.constant 0 : index
    %c0_22 = arith.constant 0 : index
    %43 = vector.load %arg5[%c0_21, %c0_22] : memref<8x1024xf32, #tpu.memory_space<vmem>>, vector<8x1024xf32>
    tpu.vector_store %arg5[%c0_21, %c0_22], %35 {strides = array<i32>} : memref<8x1024xf32, #tpu.memory_space<vmem>>, vector<8x1024xf32>,
    return
  }
  func.func @transform_0(%arg0: i32, %arg1: i32) -> (i32, i32) {
    %c0_i32 = arith.constant 0 : i32
    %c0_i32_0 = arith.constant 0 : i32
    %c0_i32_1 = arith.constant 0 : i32
    return %c0_i32, %c0_i32_0 : i32, i32
  }
  func.func @transform_1(%arg0: i32, %arg1: i32) -> (i32, i32, i32) {
    %c0_i32 = arith.constant 0 : i32
    %c0_i32_0 = arith.constant 0 : i32
    return %arg0, %c0_i32, %arg1 : i32, i32, i32
  }
  func.func @transform_2(%arg0: i32, %arg1: i32) -> (i32, i32, i32) {
    %c0_i32 = arith.constant 0 : i32
    %c0_i32_0 = arith.constant 0 : i32
    return %arg0, %c0_i32, %arg1 : i32, i32, i32
  }
  func.func @transform_3(%arg0: i32, %arg1: i32) -> (i32, i32) {
    %c0_i32 = arith.constant 0 : i32
    %c0_i32_0 = arith.constant 0 : i32
    return %c0_i32, %arg1 : i32, i32
  }
}

</mosaic_0001>

<llo_original>
// kernel: fused_mlp.1
$region0: #{fused_mlp.1}
  #allocation0 [shape = 'u32[]', space=smem, size = 0x4, offset = 0x4, fixed_abs, tag = 'smem constant byte address 0x4 - core index']
  #allocation1 [shape = 'u32[144,128]{1,0:T(1,128)}', space=vmem, size = 0x12000, scoped, tag = 'internal scratch']
  #allocation2 [shape = 'f32[2,8,2048]{2,1,0:T(8,128)}', space=vmem, size = 0x20000, scoped, tag = 'scratch operand']
  %s0 = inlined_call_operand.hbm [shape: f32[8,2048], index: 0, kind: input, shape index: {}]
  %s1 = inlined_call_operand.hbm [shape: f32[10,2048,2048], index: 1, kind: input, shape index: {}]
  %s2 = inlined_call_operand.hbm [shape: f32[10,1,2048], index: 2, kind: input, shape index: {}]
  %s3 = inlined_call_operand.hbm [shape: f32[8,2048], index: 3, kind: output, shape index: {}]
  %s4 = sld [smem:[#allocation0]]
  $region61: #{fused_mlp.1} parent=0
    _
  %s6 = ssub.s32 1, %s4
  %s7 = scalar_select 0, %s6, %s4
  $region1: #{fused_mlp.1} parent=0
    #allocation3 [shape = 'u8[65536]{0}', space=vmem, size = 0x10000, scoped, tag = 'input window, operand 0, single buffered']
    #allocation4 [shape = 's32[2]{0}', space=sflag, size = 0x8, scoped, tag = 'scoped memory for fused_mlp.1']
    #allocation5 [shape = 's32[2]{0}', space=sflag, size = 0x8, scoped, tag = 'scoped memory for fused_mlp.1']
    #allocation6 [shape = 'u8[16777216]{0}', space=vmem, size = 0x1000000, scoped, tag = 'input window, operand 1']
    #allocation7 [shape = 's32[2]{0}', space=sflag, size = 0x8, scoped, tag = 'scoped memory for fused_mlp.1']
    #allocation8 [shape = 'u8[8192]{0}', space=vmem, size = 0x2000, scoped, tag = 'input window, operand 2']
    #allocation9 [shape = 'u8[65536]{0}', space=vmem, size = 0x10000, scoped, tag = 'output window, operand 0']
    %8 = vsyncpa [#allocation4], 0
    %9 = vsyncpa [#allocation7], 0
    %s10 = scalar_lea.sflag [#allocation7], 1
    %11 = vsyncpa %s10, 0
    %12 = vsyncpa [#allocation5], 0
    %s13 = scalar_lea.sflag [#allocation5], 1
    %14 = vsyncpa %s13, 0
    loop: start=0, step=1, limit=22
    $region2: #{fused_mlp.1} parent=1 // loop_pre_header
      _
    $region3: #{fused_mlp.1} parent=1 // loop_header
      %s16 = sphi 0, %s20
      %p17 = scmp.ge.s32.totalorder %s16, 22
      %s23 = sphi 0, %s35
      %s24 = sphi 0, %s31
      %s25 = sphi 0, %s23
      %s26 = sphi 0, %s24
      %s27 = sphi 0, %s25
      %s28 = sphi 0, %s26
      %s36 = sphi 0, %s36
      %s38 = sphi 0, %s36
      %s39 = sphi 0, %s38
      %s53 = sphi 0, %s39
      %s61 = sphi 0, %s63
      %s64 = sphi 0, %s61
      %s65 = sphi 0, %s64
      %s81 = sphi 0, %s65
      %s89 = sphi 0, %s91
      %s92 = sphi 0, %s89
      %s93 = sphi 0, %s92
      %s109 = sphi 0, %s93
      %s115 = sphi 0, %s117
      %s118 = sphi 0, %s115
      %s119 = sphi 0, %s118
      %s135 = sphi 0, %s119
    $region4: #{fused_mlp.1} parent=1 // loop_header_branch
      %19 = sbr.rel (%p17) target = $region8
    $region5: #{fused_mlp.1} parent=1 // loop_body
      %s21 = ssub.s32 %s16, 1
      %s22 = ssub.s32 %s16, 2
      %s29 = sadd.s32 1, %s24
      %p30 = scmp.ge.s32.totalorder %s29, 2
      %s31 = scalar_select %p30, 0, %s29
      %s32 = sadd.s32 1, %s23
      %s33 = scalar_select %p30, %s32, %s23
      %p34 = scmp.ge.s32.totalorder %s33, 10
      %s35 = scalar_select %p34, 0, %s33
      %s37 = sadd.s32 %s36, 1
      %p40 = scmp.eq.s32.totalorder %s16, 19
      %p41 = scmp.ne.s32.totalorder %s36, %s38
      %p42 = scmp.eq.s32.totalorder %s16, 0
      %p43 = por %p41, %p42
      %p44 = scmp.ne.s32.totalorder %s36, %s38
      %p45 = scmp.eq.s32.totalorder %s21, 19
      %p46 = por %p44, %p45
      %p47 = scmp.ne.s32.totalorder %s38, %s39
      %p48 = scmp.eq.s32.totalorder %s21, 0
      %p49 = por %p47, %p48
      %p50 = scmp.ne.s32.totalorder %s38, %s39
      %p51 = scmp.eq.s32.totalorder %s22, 19
      %p52 = por %p50, %p51
      %p54 = scmp.ne.s32.totalorder %s39, %s53
      %p55 = scmp.eq.s32.totalorder %s22, 0
      %p56 = por %p54, %p55
      %s57 = ssub.s32 %s23, %s35
      %s58 = ssub.s32 %s24, %s31
      %s59 = sor.u32 %s57, %s58
      %p60 = scmp.eq.s32.totalorder %s59, 0
      %s62 = sadd.s32 %s61, 1
      %s63 = scalar_select %p60, %s61, %s62
      %p66 = pneg %p60
      %p67 = scmp.eq.s32.totalorder %s16, 19
      %p68 = por %p66, %p67
      %p69 = scmp.ne.s32.totalorder %s61, %s64
      %p70 = scmp.eq.s32.totalorder %s16, 0
      %p71 = por %p69, %p70
      %p72 = scmp.ne.s32.totalorder %s61, %s64
      %p73 = scmp.eq.s32.totalorder %s21, 19
      %p74 = por %p72, %p73
      %p75 = scmp.ne.s32.totalorder %s64, %s65
      %p76 = scmp.eq.s32.totalorder %s21, 0
      %p77 = por %p75, %p76
      %p78 = scmp.ne.s32.totalorder %s64, %s65
      %p79 = scmp.eq.s32.totalorder %s22, 19
      %p80 = por %p78, %p79
      %p82 = scmp.ne.s32.totalorder %s65, %s81
      %p83 = scmp.eq.s32.totalorder %s22, 0
      %p84 = por %p82, %p83
      %s85 = ssub.s32 %s23, %s35
      %s86 = ssub.s32 %s24, %s31
      %s87 = sor.u32 %s85, %s86
      %p88 = scmp.eq.s32.totalorder %s87, 0
      %s90 = sadd.s32 %s89, 1
      %s91 = scalar_select %p88, %s89, %s90
      %p94 = pneg %p88
      %p95 = scmp.eq.s32.totalorder %s16, 19
      %p96 = por %p94, %p95
      %p97 = scmp.ne.s32.totalorder %s89, %s92
      %p98 = scmp.eq.s32.totalorder %s16, 0
      %p99 = por %p97, %p98
      %p100 = scmp.ne.s32.totalorder %s89, %s92
      %p101 = scmp.eq.s32.totalorder %s21, 19
      %p102 = por %p100, %p101
      %p103 = scmp.ne.s32.totalorder %s92, %s93
      %p104 = scmp.eq.s32.totalorder %s21, 0
      %p105 = por %p103, %p104
      %p106 = scmp.ne.s32.totalorder %s92, %s93
      %p107 = scmp.eq.s32.totalorder %s22, 19
      %p108 = por %p106, %p107
      %p110 = scmp.ne.s32.totalorder %s93, %s109
      %p111 = scmp.eq.s32.totalorder %s22, 0
      %p112 = por %p110, %p111
      %s113 = ssub.s32 %s24, %s31
      %p114 = scmp.eq.s32.totalorder %s113, 0
      %s116 = sadd.s32 %s115, 1
      %s117 = scalar_select %p114, %s115, %s116
      %p120 = pneg %p114
      %p121 = scmp.eq.s32.totalorder %s16, 19
      %p122 = por %p120, %p121
      %p123 = scmp.ne.s32.totalorder %s115, %s118
      %p124 = scmp.eq.s32.totalorder %s16, 0
      %p125 = por %p123, %p124
      %p126 = scmp.ne.s32.totalorder %s115, %s118
      %p127 = scmp.eq.s32.totalorder %s21, 19
      %p128 = por %p126, %p127
      %p129 = scmp.ne.s32.totalorder %s118, %s119
      %p130 = scmp.eq.s32.totalorder %s21, 0
      %p131 = por %p129, %p130
      %p132 = scmp.ne.s32.totalorder %s118, %s119
      %p133 = scmp.eq.s32.totalorder %s22, 19
      %p134 = por %p132, %p133
      %p136 = scmp.ne.s32.totalorder %s119, %s135
      %p137 = scmp.eq.s32.totalorder %s22, 0
      %p138 = por %p136, %p137
      %p139 = scmp.le.s32.totalorder 1, %s16
      %p140 = scmp.lt.s32.totalorder %s16, 21
      %p141 = pnand %p139, %p140
      %p142 = pneg %p141
      // Predicated region
      $region9: #{fused_mlp.1} parent=5 // pred_check
        _
      $region10: #{fused_mlp.1} parent=5 // pred_check_branch
        %144 = sbr.rel (%p141) target = $region12
      $region11: #{fused_mlp.1} parent=5 // pred_region
        %s145 = ssub.s32 %s16, 1
        // Predicated region
        $region13: #{fused_mlp.1} parent=11 // pred_check
          %p146 = pneg %p49
        $region14: #{fused_mlp.1} parent=11 // pred_check_branch
          %148 = sbr.rel (%p146) target = $region16
        $region15: #{fused_mlp.1} parent=11 // pred_region
          %s150 = ssub.s32 2048, 2048
          %151 = vsyncadd [#allocation4], %s150
          %s153 = sshll.u32 [#allocation3], 4
          %s154 = int_to_ptr.vmem [resolvable:$true] %s153
          %156 = dma.hbm_to_vmem [thread:$0]  %s0, 2048, %s154, [#allocation4]
        $region16: #{fused_mlp.1} parent=11 // pred_fallthru
          _
      $region12: #{fused_mlp.1} parent=5 // pred_fallthru
        _
      %p157 = scmp.lt.s32.totalorder %s16, 20
      // Predicated region
      $region17: #{fused_mlp.1} parent=5 // pred_check
        %p158 = pneg %p157
      $region18: #{fused_mlp.1} parent=5 // pred_check_branch
        %160 = sbr.rel (%p158) target = $region20
      $region19: #{fused_mlp.1} parent=5 // pred_region
        // Predicated region
        $region21: #{fused_mlp.1} parent=19 // pred_check
          %p161 = pneg %p71
        $region22: #{fused_mlp.1} parent=19 // pred_check_branch
          %163 = sbr.rel (%p161) target = $region24
        $region23: #{fused_mlp.1} parent=19 // pred_region
          %s164 = sand.u32 %s16, 1
          %s165 = scalar_lea.sflag [#allocation7], %s164
          %s166 = sand.u32 %s61, 1
          %s167 = smul.addr %s166, 16384
          %s168 = scalar_lea.vmem [#allocation6], %s167
          %s169 = smul.u32 8, %s24
          %s171 = ssub.s32 262144, 262144
          %172 = vsyncadd %s165, %s171
          %s173 = smul.addr %s23, 4096
          %s174 = sadd.s32 %s169, %s173
          %s175 = smul.addr %s174, 128
          %s176 = scalar_lea.hbm %s1, %s175
          %s177 = sshll.u32 %s168, 4
          %s178 = int_to_ptr.vmem [resolvable:$true] %s177
          %183 = dma.hbm_to_vmem [thread:$0]  %s176, 262144, %s178, %s165, 2048, 1024, 64
        $region24: #{fused_mlp.1} parent=19 // pred_fallthru
          _
        // Predicated region
        $region25: #{fused_mlp.1} parent=19 // pred_check
          %p184 = pneg %p99
        $region26: #{fused_mlp.1} parent=19 // pred_check_branch
          %186 = sbr.rel (%p184) target = $region28
        $region27: #{fused_mlp.1} parent=19 // pred_region
          %s187 = sand.u32 %s16, 1
          %s188 = scalar_lea.sflag [#allocation7], %s187
          %s189 = sand.u32 %s89, 1
          %s190 = smul.addr %s189, 8
          %s191 = scalar_lea.vmem [#allocation8], %s190
          %s192 = smul.u32 8, %s24
          %s194 = ssub.s32 128, 128
          %195 = vsyncadd %s188, %s194
          %s196 = smul.addr %s23, 16
          %s197 = sadd.s32 %s192, %s196
          %s198 = smul.addr %s197, 16
          %s199 = scalar_lea.hbm %s2, %s198
          %s201 = sshll.u32 %s191, 4
          %s202 = int_to_ptr.vmem [resolvable:$true] %s201
          %204 = dma.hbm_to_vmem [thread:$0]  %s199, 128, %s202, %s188
        $region28: #{fused_mlp.1} parent=19 // pred_fallthru
          _
      $region20: #{fused_mlp.1} parent=5 // pred_fallthru
        _
      %p205 = scmp.le.s32.totalorder 1, %s16
      %p206 = scmp.lt.s32.totalorder %s16, 21
      %p207 = pnand %p205, %p206
      %p208 = pneg %p207
      // Predicated region
      $region29: #{fused_mlp.1} parent=5 // pred_check
        _
      $region30: #{fused_mlp.1} parent=5 // pred_check_branch
        %210 = sbr.rel (%p207) target = $region32
      $region31: #{fused_mlp.1} parent=5 // pred_region
        %s211 = ssub.s32 %s16, 1
        // Predicated region
        $region33: #{fused_mlp.1} parent=31 // pred_check
          %p212 = pneg %p49
        $region34: #{fused_mlp.1} parent=31 // pred_check_branch
          %214 = sbr.rel (%p212) target = $region36
        $region35: #{fused_mlp.1} parent=31 // pred_region
          %215 = dma.done [#allocation4], 2048
        $region36: #{fused_mlp.1} parent=31 // pred_fallthru
          _
        %s216 = sand.u32 %s21, 1
        %s217 = scalar_lea.sflag [#allocation7], %s216
        %s218 = sand.u32 %s64, 1
        %s219 = smul.addr %s218, 16384
        %s220 = scalar_lea.vmem [#allocation6], %s219
        // Predicated region
        $region37: #{fused_mlp.1} parent=31 // pred_check
          %p221 = pneg %p77
        $region38: #{fused_mlp.1} parent=31 // pred_check_branch
          %223 = sbr.rel (%p221) target = $region40
        $region39: #{fused_mlp.1} parent=31 // pred_region
          %224 = dma.done %s217, 262144
        $region40: #{fused_mlp.1} parent=31 // pred_fallthru
          _
        %s225 = sand.u32 %s21, 1
        %s226 = scalar_lea.sflag [#allocation7], %s225
        %s227 = sand.u32 %s92, 1
        %s228 = smul.addr %s227, 8
        %s229 = scalar_lea.vmem [#allocation8], %s228
        // Predicated region
        $region41: #{fused_mlp.1} parent=31 // pred_check
          %p230 = pneg %p105
        $region42: #{fused_mlp.1} parent=31 // pred_check_branch
          %232 = sbr.rel (%p230) target = $region44
        $region43: #{fused_mlp.1} parent=31 // pred_region
          %233 = dma.done %s226, 128
        $region44: #{fused_mlp.1} parent=31 // pred_fallthru
          _
        %p234 = pneg %p49
        %p235 = pneg %p46
        %s236 = sand.u32 %s21, 1
        %s237 = scalar_lea.sflag [#allocation7], %s236
        %s238 = sand.u32 %s64, 1
        %s239 = smul.addr %s238, 16384
        %s240 = scalar_lea.vmem [#allocation6], %s239
        %p241 = pneg %p77
        %p242 = pneg %p74
        %s243 = sand.u32 %s21, 1
        %s244 = scalar_lea.sflag [#allocation7], %s243
        %s245 = sand.u32 %s92, 1
        %s246 = smul.addr %s245, 8
        %s247 = scalar_lea.vmem [#allocation8], %s246
        %p248 = pneg %p105
        %p249 = pneg %p102
        %p250 = pneg %p131
        %p251 = pneg %p128
        %s252 = sand.u32 %s118, 1
        %s253 = scalar_lea.sflag [#allocation5], %s252
        %s254 = sand.u32 %s118, 1
        %s255 = smul.addr %s254, 64
        %s256 = scalar_lea.vmem [#allocation9], %s255
        %s257 = smul.u32 8, %s26
        %s258 = smul.u32 8, %s26
        %s259 = smul.u32 8, %s26
        %p260 = scmp.eq.s32.totalorder %s25, 0
        %p261 = scmp.eq.s32.totalorder %s26, 0
        %p262 = pnand %p260, %p261
        %p263 = pneg %p262
        // Predicated region
        $region45: #{fused_mlp.1} parent=31 // pred_check
          _
        $region46: #{fused_mlp.1} parent=31 // pred_check_branch
          %265 = sbr.rel (%p262) target = $region48
        $region47: #{fused_mlp.1} parent=31 // pred_region
          %v266 = vld [vmem:[#allocation3] sm:$0xff]
          %v267 = vld [vmem:[#allocation3 + $0x8] sm:$0xff]
          %v268 = vld [vmem:[#allocation3 + $0x10] sm:$0xff]
          %v269 = vld [vmem:[#allocation3 + $0x18] sm:$0xff]
          %v270 = vld [vmem:[#allocation3 + $0x20] sm:$0xff]
          %v271 = vld [vmem:[#allocation3 + $0x28] sm:$0xff]
          %v272 = vld [vmem:[#allocation3 + $0x30] sm:$0xff]
          %v273 = vld [vmem:[#allocation3 + $0x38] sm:$0xff]
          %v274 = vld [vmem:[#allocation3 + $0x40] sm:$0xff]
          %v275 = vld [vmem:[#allocation3 + $0x48] sm:$0xff]
          %v276 = vld [vmem:[#allocation3 + $0x50] sm:$0xff]
          %v277 = vld [vmem:[#allocation3 + $0x58] sm:$0xff]
          %v278 = vld [vmem:[#allocation3 + $0x60] sm:$0xff]
          %v279 = vld [vmem:[#allocation3 + $0x68] sm:$0xff]
          %v280 = vld [vmem:[#allocation3 + $0x70] sm:$0xff]
          %v281 = vld [vmem:[#allocation3 + $0x78] sm:$0xff]
          %282 = vst [vmem:[#allocation2] sm:$0xff] %v266
          %283 = vst [vmem:[#allocation2 + $0x8] sm:$0xff] %v267
          %284 = vst [vmem:[#allocation2 + $0x10] sm:$0xff] %v268
          %285 = vst [vmem:[#allocation2 + $0x18] sm:$0xff] %v269
          %286 = vst [vmem:[#allocation2 + $0x20] sm:$0xff] %v270
          %287 = vst [vmem:[#allocation2 + $0x28] sm:$0xff] %v271
          %288 = vst [vmem:[#allocation2 + $0x30] sm:$0xff] %v272
          %289 = vst [vmem:[#allocation2 + $0x38] sm:$0xff] %v273
          %290 = vst [vmem:[#allocation2 + $0x40] sm:$0xff] %v274
          %291 = vst [vmem:[#allocation2 + $0x48] sm:$0xff] %v275
          %292 = vst [vmem:[#allocation2 + $0x50] sm:$0xff] %v276
          %293 = vst [vmem:[#allocation2 + $0x58] sm:$0xff] %v277
          %294 = vst [vmem:[#allocation2 + $0x60] sm:$0xff] %v278
          %295 = vst [vmem:[#allocation2 + $0x68] sm:$0xff] %v279
          %296 = vst [vmem:[#allocation2 + $0x70] sm:$0xff] %v280
          %297 = vst [vmem:[#allocation2 + $0x78] sm:$0xff] %v281
        $region48: #{fused_mlp.1} parent=31 // pred_fallthru
          _
        %p298 = scmp.lt.s32.totalorder %s25, 0
        %s299 = ssub.s32 0, %s25
        %s300 = scalar_select %p298, %s299, %s25
        %s301 = sand.u32 %s300, 1
        %s302 = ssub.s32 0, %s301
        %s303 = scalar_select %p298, %s302, %s301
        %p304 = scmp.ne.s32.totalorder %s303, 0
        %p305 = scmp.lt.s32.totalorder %s303, 0
        %p306 = pnand %p305, %p304
        %p307 = pneg %p306
        %s308 = sadd.s32 %s303, 2
        %s309 = scalar_select %p307, %s308, %s303
        %s310 = sadd.s32 %s25, 1
        %p311 = scmp.lt.s32.totalorder %s310, 0
        %s312 = ssub.s32 0, %s310
        %s313 = scalar_select %p311, %s312, %s310
        %s314 = sand.u32 %s313, 1
        %s315 = ssub.s32 0, %s314
        %s316 = scalar_select %p311, %s315, %s314
        %p317 = scmp.ne.s32.totalorder %s316, 0
        %p318 = scmp.lt.s32.totalorder %s316, 0
        %p319 = pnand %p318, %p317
        %p320 = pneg %p319
        %s321 = sadd.s32 %s316, 2
        %s322 = scalar_select %p320, %s321, %s316
        %s323 = smul.u32 %s309, 16
        %s324 = smul.addr %s323, 8
        %s325 = scalar_lea.vmem [#allocation2], %s324
        %v326 = vld [vmem:[%s325] sm:$0xff]
        %v327 = vld [vmem:[%s325 + $0x8] sm:$0xff]
        %v328 = vld [vmem:[%s325 + $0x10] sm:$0xff]
        %v329 = vld [vmem:[%s325 + $0x18] sm:$0xff]
        %v330 = vld [vmem:[%s325 + $0x20] sm:$0xff]
        %v331 = vld [vmem:[%s325 + $0x28] sm:$0xff]
        %v332 = vld [vmem:[%s325 + $0x30] sm:$0xff]
        %v333 = vld [vmem:[%s325 + $0x38] sm:$0xff]
        %v334 = vld [vmem:[%s325 + $0x40] sm:$0xff]
        %v335 = vld [vmem:[%s325 + $0x48] sm:$0xff]
        %v336 = vld [vmem:[%s325 + $0x50] sm:$0xff]
        %v337 = vld [vmem:[%s325 + $0x58] sm:$0xff]
        %v338 = vld [vmem:[%s325 + $0x60] sm:$0xff]
        %v339 = vld [vmem:[%s325 + $0x68] sm:$0xff]
        %v340 = vld [vmem:[%s325 + $0x70] sm:$0xff]
        %v341 = vld [vmem:[%s325 + $0x78] sm:$0xff]
        %v342 = vld [vmem:[%s220] sm:$0xff]
        %v343 = vld [vmem:[%s220 + $0x8] sm:$0xff]
        %v344 = vld [vmem:[%s220 + $0x10] sm:$0xff]
        %v345 = vld [vmem:[%s220 + $0x18] sm:$0xff]
        %v346 = vld [vmem:[%s220 + $0x20] sm:$0xff]
        %v347 = vld [vmem:[%s220 + $0x28] sm:$0xff]
        %v348 = vld [vmem:[%s220 + $0x30] sm:$0xff]
        %v349 = vld [vmem:[%s220 + $0x38] sm:$0xff]
        %v350 = vld [vmem:[%s220 + $0x40] sm:$0xff]
        %v351 = vld [vmem:[%s220 + $0x48] sm:$0xff]
        %v352 = vld [vmem:[%s220 + $0x50] sm:$0xff]
        %v353 = vld [vmem:[%s220 + $0x58] sm:$0xff]
        %v354 = vld [vmem:[%s220 + $0x60] sm:$0xff]
        %v355 = vld [vmem:[%s220 + $0x68] sm:$0xff]
        %v356 = vld [vmem:[%s220 + $0x70] sm:$0xff]
        %v357 = vld [vmem:[%s220 + $0x78] sm:$0xff]
        %v358 = vld [vmem:[%s220 + $0x80] sm:$0xff]
        %v359 = vld [vmem:[%s220 + $0x88] sm:$0xff]
        %v360 = vld [vmem:[%s220 + $0x90] sm:$0xff]
        %v361 = vld [vmem:[%s220 + $0x98] sm:$0xff]
        %v362 = vld [vmem:[%s220 + $0xa0] sm:$0xff]
        %v363 = vld [vmem:[%s220 + $0xa8] sm:$0xff]
        %v364 = vld [vmem:[%s220 + $0xb0] sm:$0xff]
        %v365 = vld [vmem:[%s220 + $0xb8] sm:$0xff]
        %v366 = vld [vmem:[%s220 + $0xc0] sm:$0xff]
        %v367 = vld [vmem:[%s220 + $0xc8] sm:$0xff]
        %v368 = vld [vmem:[%s220 + $0xd0] sm:$0xff]
        %v369 = vld [vmem:[%s220 + $0xd8] sm:$0xff]
        %v370 = vld [vmem:[%s220 + $0xe0] sm:$0xff]
        %v371 = vld [vmem:[%s220 + $0xe8] sm:$0xff]
        %v372 = vld [vmem:[%s220 + $0xf0] sm:$0xff]
        %v373 = vld [vmem:[%s220 + $0xf8] sm:$0xff]
        %v374 = vld [vmem:[%s220 + $0x100] sm:$0xff]
        %v375 = vld [vmem:[%s220 + $0x108] sm:$0xff]
        %v376 = vld [vmem:[%s220 + $0x110] sm:$0xff]
        %v377 = vld [vmem:[%s220 + $0x118] sm:$0xff]
        %v378 = vld [vmem:[%s220 + $0x120] sm:$0xff]
        %v379 = vld [vmem:[%s220 + $0x128] sm:$0xff]
        %v380 = vld [vmem:[%s220 + $0x130] sm:$0xff]
        %v381 = vld [vmem:[%s220 + $0x138] sm:$0xff]
        %v382 = vld [vmem:[%s220 + $0x140] sm:$0xff]
        %v383 = vld [vmem:[%s220 + $0x148] sm:$0xff]
        %v384 = vld [vmem:[%s220 + $0x150] sm:$0xff]
        %v385 = vld [vmem:[%s220 + $0x158] sm:$0xff]
        %v386 = vld [vmem:[%s220 + $0x160] sm:$0xff]
        %v387 = vld [vmem:[%s220 + $0x168] sm:$0xff]
        %v388 = vld [vmem:[%s220 + $0x170] sm:$0xff]
        %v389 = vld [vmem:[%s220 + $0x178] sm:$0xff]
        %v390 = vld [vmem:[%s220 + $0x180] sm:$0xff]
        %v391 = vld [vmem:[%s220 + $0x188] sm:$0xff]
        %v392 = vld [vmem:[%s220 + $0x190] sm:$0xff]
        %v393 = vld [vmem:[%s220 + $0x198] sm:$0xff]
        %v394 = vld [vmem:[%s220 + $0x1a0] sm:$0xff]
        %v395 = vld [vmem:[%s220 + $0x1a8] sm:$0xff]
        %v396 = vld [vmem:[%s220 + $0x1b0] sm:$0xff]
        %v397 = vld [vmem:[%s220 + $0x1b8] sm:$0xff]
        %v398 = vld [vmem:[%s220 + $0x1c0] sm:$0xff]
        %v399 = vld [vmem:[%s220 + $0x1c8] sm:$0xff]
        %v400 = vld [vmem:[%s220 + $0x1d0] sm:$0xff]
        %v401 = vld [vmem:[%s220 + $0x1d8] sm:$0xff]
        %v402 = vld [vmem:[%s220 + $0x1e0] sm:$0xff]
        %v403 = vld [vmem:[%s220 + $0x1e8] sm:$0xff]
        %v404 = vld [vmem:[%s220 + $0x1f0] sm:$0xff]
        %v405 = vld [vmem:[%s220 + $0x1f8] sm:$0xff]
        %v406 = vld [vmem:[%s220 + $0x200] sm:$0xff]
        %v407 = vld [vmem:[%s220 + $0x208] sm:$0xff]
        %v408 = vld [vmem:[%s220 + $0x210] sm:$0xff]
        %v409 = vld [vmem:[%s220 + $0x218] sm:$0xff]
        %v410 = vld [vmem:[%s220 + $0x220] sm:$0xff]
        %v411 = vld [vmem:[%s220 + $0x228] sm:$0xff]
        %v412 = vld [vmem:[%s220 + $0x230] sm:$0xff]
        %v413 = vld [vmem:[%s220 + $0x238] sm:$0xff]
        %v414 = vld [vmem:[%s220 + $0x240] sm:$0xff]
        %v415 = vld [vmem:[%s220 + $0x248] sm:$0xff]
        %v416 = vld [vmem:[%s220 + $0x250] sm:$0xff]
        %v417 = vld [vmem:[%s220 + $0x258] sm:$0xff]
        %v418 = vld [vmem:[%s220 + $0x260] sm:$0xff]
        %v419 = vld [vmem:[%s220 + $0x268] sm:$0xff]
        %v420 = vld [vmem:[%s220 + $0x270] sm:$0xff]
        %v421 = vld [vmem:[%s220 + $0x278] sm:$0xff]
        %v422 = vld [vmem:[%s220 + $0x280] sm:$0xff]
        %v423 = vld [vmem:[%s220 + $0x288] sm:$0xff]
        %v424 = vld [vmem:[%s220 + $0x290] sm:$0xff]
        %v425 = vld [vmem:[%s220 + $0x298] sm:$0xff]
        %v426 = vld [vmem:[%s220 + $0x2a0] sm:$0xff]
        %v427 = vld [vmem:[%s220 + $0x2a8] sm:$0xff]
        %v428 = vld [vmem:[%s220 + $0x2b0] sm:$0xff]
        %v429 = vld [vmem:[%s220 + $0x2b8] sm:$0xff]
        %v430 = vld [vmem:[%s220 + $0x2c0] sm:$0xff]
        %v431 = vld [vmem:[%s220 + $0x2c8] sm:$0xff]
        %v432 = vld [vmem:[%s220 + $0x2d0] sm:$0xff]
        %v433 = vld [vmem:[%s220 + $0x2d8] sm:$0xff]
        %v434 = vld [vmem:[%s220 + $0x2e0] sm:$0xff]
        %v435 = vld [vmem:[%s220 + $0x2e8] sm:$0xff]
        %v436 = vld [vmem:[%s220 + $0x2f0] sm:$0xff]
        %v437 = vld [vmem:[%s220 + $0x2f8] sm:$0xff]
        %v438 = vld [vmem:[%s220 + $0x300] sm:$0xff]
        %v439 = vld [vmem:[%s220 + $0x308] sm:$0xff]
        %v440 = vld [vmem:[%s220 + $0x310] sm:$0xff]
        %v441 = vld [vmem:[%s220 + $0x318] sm:$0xff]
        %v442 = vld [vmem:[%s220 + $0x320] sm:$0xff]
        %v443 = vld [vmem:[%s220 + $0x328] sm:$0xff]
        %v444 = vld [vmem:[%s220 + $0x330] sm:$0xff]
        %v445 = vld [vmem:[%s220 + $0x338] sm:$0xff]
        %v446 = vld [vmem:[%s220 + $0x340] sm:$0xff]
        %v447 = vld [vmem:[%s220 + $0x348] sm:$0xff]
        %v448 = vld [vmem:[%s220 + $0x350] sm:$0xff]
        %v449 = vld [vmem:[%s220 + $0x358] sm:$0xff]
        %v450 = vld [vmem:[%s220 + $0x360] sm:$0xff]
        %v451 = vld [vmem:[%s220 + $0x368] sm:$0xff]
        %v452 = vld [vmem:[%s220 + $0x370] sm:$0xff]
        %v453 = vld [vmem:[%s220 + $0x378] sm:$0xff]
        %v454 = vld [vmem:[%s220 + $0x380] sm:$0xff]
        %v455 = vld [vmem:[%s220 + $0x388] sm:$0xff]
        %v456 = vld [vmem:[%s220 + $0x390] sm:$0xff]
        %v457 = vld [vmem:[%s220 + $0x398] sm:$0xff]
        %v458 = vld [vmem:[%s220 + $0x3a0] sm:$0xff]
        %v459 = vld [vmem:[%s220 + $0x3a8] sm:$0xff]
        %v460 = vld [vmem:[%s220 + $0x3b0] sm:$0xff]
        %v461 = vld [vmem:[%s220 + $0x3b8] sm:$0xff]
        %v462 = vld [vmem:[%s220 + $0x3c0] sm:$0xff]
        %v463 = vld [vmem:[%s220 + $0x3c8] sm:$0xff]
        %v464 = vld [vmem:[%s220 + $0x3d0] sm:$0xff]
        %v465 = vld [vmem:[%s220 + $0x3d8] sm:$0xff]
        %v466 = vld [vmem:[%s220 + $0x3e0] sm:$0xff]
        %v467 = vld [vmem:[%s220 + $0x3e8] sm:$0xff]
        %v468 = vld [vmem:[%s220 + $0x3f0] sm:$0xff]
        %v469 = vld [vmem:[%s220 + $0x3f8] sm:$0xff]
        %v470 = vld [vmem:[%s220 + $0x400] sm:$0xff]
        %v471 = vld [vmem:[%s220 + $0x408] sm:$0xff]
        %v472 = vld [vmem:[%s220 + $0x410] sm:$0xff]
        %v473 = vld [vmem:[%s220 + $0x418] sm:$0xff]
        %v474 = vld [vmem:[%s220 + $0x420] sm:$0xff]
        %v475 = vld [vmem:[%s220 + $0x428] sm:$0xff]
        %v476 = vld [vmem:[%s220 + $0x430] sm:$0xff]
        %v477 = vld [vmem:[%s220 + $0x438] sm:$0xff]
        %v478 = vld [vmem:[%s220 + $0x440] sm:$0xff]
        %v479 = vld [vmem:[%s220 + $0x448] sm:$0xff]
        %v480 = vld [vmem:[%s220 + $0x450] sm:$0xff]
        %v481 = vld [vmem:[%s220 + $0x458] sm:$0xff]
        %v482 = vld [vmem:[%s220 + $0x460] sm:$0xff]
        %v483 = vld [vmem:[%s220 + $0x468] sm:$0xff]
        %v484 = vld [vmem:[%s220 + $0x470] sm:$0xff]
        %v485 = vld [vmem:[%s220 + $0x478] sm:$0xff]
        %v486 = vld [vmem:[%s220 + $0x480] sm:$0xff]
        %v487 = vld [vmem:[%s220 + $0x488] sm:$0xff]
        %v488 = vld [vmem:[%s220 + $0x490] sm:$0xff]
        %v489 = vld [vmem:[%s220 + $0x498] sm:$0xff]
        %v490 = vld [vmem:[%s220 + $0x4a0] sm:$0xff]
        %v491 = vld [vmem:[%s220 + $0x4a8] sm:$0xff]
        %v492 = vld [vmem:[%s220 + $0x4b0] sm:$0xff]
        %v493 = vld [vmem:[%s220 + $0x4b8] sm:$0xff]
        %v494 = vld [vmem:[%s220 + $0x4c0] sm:$0xff]
        %v495 = vld [vmem:[%s220 + $0x4c8] sm:$0xff]
        %v496 = vld [vmem:[%s220 + $0x4d0] sm:$0xff]
        %v497 = vld [vmem:[%s220 + $0x4d8] sm:$0xff]
        %v498 = vld [vmem:[%s220 + $0x4e0] sm:$0xff]
        %v499 = vld [vmem:[%s220 + $0x4e8] sm:$0xff]
        %v500 = vld [vmem:[%s220 + $0x4f0] sm:$0xff]
        %v501 = vld [vmem:[%s220 + $0x4f8] sm:$0xff]
        %v502 = vld [vmem:[%s220 + $0x500] sm:$0xff]
        %v503 = vld [vmem:[%s220 + $0x508] sm:$0xff]
        %v504 = vld [vmem:[%s220 + $0x510] sm:$0xff]
        %v505 = vld [vmem:[%s220 + $0x518] sm:$0xff]
        %v506 = vld [vmem:[%s220 + $0x520] sm:$0xff]
        %v507 = vld [vmem:[%s220 + $0x528] sm:$0xff]
        %v508 = vld [vmem:[%s220 + $0x530] sm:$0xff]
        %v509 = vld [vmem:[%s220 + $0x538] sm:$0xff]
        %v510 = vld [vmem:[%s220 + $0x540] sm:$0xff]
        %v511 = vld [vmem:[%s220 + $0x548] sm:$0xff]
        %v512 = vld [vmem:[%s220 + $0x550] sm:$0xff]
        %v513 = vld [vmem:[%s220 + $0x558] sm:$0xff]
        %v514 = vld [vmem:[%s220 + $0x560] sm:$0xff]
        %v515 = vld [vmem:[%s220 + $0x568] sm:$0xff]
        %v516 = vld [vmem:[%s220 + $0x570] sm:$0xff]
        %v517 = vld [vmem:[%s220 + $0x578] sm:$0xff]
        %v518 = vld [vmem:[%s220 + $0x580] sm:$0xff]
        %v519 = vld [vmem:[%s220 + $0x588] sm:$0xff]
        %v520 = vld [vmem:[%s220 + $0x590] sm:$0xff]
        %v521 = vld [vmem:[%s220 + $0x598] sm:$0xff]
        %v522 = vld [vmem:[%s220 + $0x5a0] sm:$0xff]
        %v523 = vld [vmem:[%s220 + $0x5a8] sm:$0xff]
        %v524 = vld [vmem:[%s220 + $0x5b0] sm:$0xff]
        %v525 = vld [vmem:[%s220 + $0x5b8] sm:$0xff]
        %v526 = vld [vmem:[%s220 + $0x5c0] sm:$0xff]
        %v527 = vld [vmem:[%s220 + $0x5c8] sm:$0xff]
        %v528 = vld [vmem:[%s220 + $0x5d0] sm:$0xff]
        %v529 = vld [vmem:[%s220 + $0x5d8] sm:$0xff]
        %v530 = vld [vmem:[%s220 + $0x5e0] sm:$0xff]
        %v531 = vld [vmem:[%s220 + $0x5e8] sm:$0xff]
        %v532 = vld [vmem:[%s220 + $0x5f0] sm:$0xff]
        %v533 = vld [vmem:[%s220 + $0x5f8] sm:$0xff]
        %v534 = vld [vmem:[%s220 + $0x600] sm:$0xff]
        %v535 = vld [vmem:[%s220 + $0x608] sm:$0xff]
        %v536 = vld [vmem:[%s220 + $0x610] sm:$0xff]
        %v537 = vld [vmem:[%s220 + $0x618] sm:$0xff]
        %v538 = vld [vmem:[%s220 + $0x620] sm:$0xff]
        %v539 = vld [vmem:[%s220 + $0x628] sm:$0xff]
        %v540 = vld [vmem:[%s220 + $0x630] sm:$0xff]
        %v541 = vld [vmem:[%s220 + $0x638] sm:$0xff]
        %v542 = vld [vmem:[%s220 + $0x640] sm:$0xff]
        %v543 = vld [vmem:[%s220 + $0x648] sm:$0xff]
        %v544 = vld [vmem:[%s220 + $0x650] sm:$0xff]
        %v545 = vld [vmem:[%s220 + $0x658] sm:$0xff]
        %v546 = vld [vmem:[%s220 + $0x660] sm:$0xff]
        %v547 = vld [vmem:[%s220 + $0x668] sm:$0xff]
        %v548 = vld [vmem:[%s220 + $0x670] sm:$0xff]
        %v549 = vld [vmem:[%s220 + $0x678] sm:$0xff]
        %v550 = vld [vmem:[%s220 + $0x680] sm:$0xff]
        %v551 = vld [vmem:[%s220 + $0x688] sm:$0xff]
        %v552 = vld [vmem:[%s220 + $0x690] sm:$0xff]
        %v553 = vld [vmem:[%s220 + $0x698] sm:$0xff]
        %v554 = vld [vmem:[%s220 + $0x6a0] sm:$0xff]
        %v555 = vld [vmem:[%s220 + $0x6a8] sm:$0xff]
        %v556 = vld [vmem:[%s220 + $0x6b0] sm:$0xff]
        %v557 = vld [vmem:[%s220 + $0x6b8] sm:$0xff]
        %v558 = vld [vmem:[%s220 + $0x6c0] sm:$0xff]
        %v559 = vld [vmem:[%s220 + $0x6c8] sm:$0xff]
        %v560 = vld [vmem:[%s220 + $0x6d0] sm:$0xff]
        %v561 = vld [vmem:[%s220 + $0x6d8] sm:$0xff]
        %v562 = vld [vmem:[%s220 + $0x6e0] sm:$0xff]
        %v563 = vld [vmem:[%s220 + $0x6e8] sm:$0xff]
        %v564 = vld [vmem:[%s220 + $0x6f0] sm:$0xff]
        %v565 = vld [vmem:[%s220 + $0x6f8] sm:$0xff]
        %v566 = vld [vmem:[%s220 + $0x700] sm:$0xff]
        %v567 = vld [vmem:[%s220 + $0x708] sm:$0xff]
        %v568 = vld [vmem:[%s220 + $0x710] sm:$0xff]
        %v569 = vld [vmem:[%s220 + $0x718] sm:$0xff]
        %v570 = vld [vmem:[%s220 + $0x720] sm:$0xff]
        %v571 = vld [vmem:[%s220 + $0x728] sm:$0xff]
        %v572 = vld [vmem:[%s220 + $0x730] sm:$0xff]
        %v573 = vld [vmem:[%s220 + $0x738] sm:$0xff]
        %v574 = vld [vmem:[%s220 + $0x740] sm:$0xff]
        %v575 = vld [vmem:[%s220 + $0x748] sm:$0xff]
        %v576 = vld [vmem:[%s220 + $0x750] sm:$0xff]
        %v577 = vld [vmem:[%s220 + $0x758] sm:$0xff]
        %v578 = vld [vmem:[%s220 + $0x760] sm:$0xff]
        %v579 = vld [vmem:[%s220 + $0x768] sm:$0xff]
        %v580 = vld [vmem:[%s220 + $0x770] sm:$0xff]
        %v581 = vld [vmem:[%s220 + $0x778] sm:$0xff]
        %v582 = vld [vmem:[%s220 + $0x780] sm:$0xff]
        %v583 = vld [vmem:[%s220 + $0x788] sm:$0xff]
        %v584 = vld [vmem:[%s220 + $0x790] sm:$0xff]
        %v585 = vld [vmem:[%s220 + $0x798] sm:$0xff]
        %v586 = vld [vmem:[%s220 + $0x7a0] sm:$0xff]
        %v587 = vld [vmem:[%s220 + $0x7a8] sm:$0xff]
        %v588 = vld [vmem:[%s220 + $0x7b0] sm:$0xff]
        %v589 = vld [vmem:[%s220 + $0x7b8] sm:$0xff]
        %v590 = vld [vmem:[%s220 + $0x7c0] sm:$0xff]
        %v591 = vld [vmem:[%s220 + $0x7c8] sm:$0xff]
        %v592 = vld [vmem:[%s220 + $0x7d0] sm:$0xff]
        %v593 = vld [vmem:[%s220 + $0x7d8] sm:$0xff]
        %v594 = vld [vmem:[%s220 + $0x7e0] sm:$0xff]
        %v595 = vld [vmem:[%s220 + $0x7e8] sm:$0xff]
        %v596 = vld [vmem:[%s220 + $0x7f0] sm:$0xff]
        %v597 = vld [vmem:[%s220 + $0x7f8] sm:$0xff]
        %v598 = vld [vmem:[%s220 + $0x800] sm:$0xff]
        %v599 = vld [vmem:[%s220 + $0x808] sm:$0xff]
        %v600 = vld [vmem:[%s220 + $0x810] sm:$0xff]
        %v601 = vld [vmem:[%s220 + $0x818] sm:$0xff]
        %v602 = vld [vmem:[%s220 + $0x820] sm:$0xff]
        %v603 = vld [vmem:[%s220 + $0x828] sm:$0xff]
        %v604 = vld [vmem:[%s220 + $0x830] sm:$0xff]
        %v605 = vld [vmem:[%s220 + $0x838] sm:$0xff]
        %v606 = vld [vmem:[%s220 + $0x840] sm:$0xff]
        %v607 = vld [vmem:[%s220 + $0x848] sm:$0xff]
        %v608 = vld [vmem:[%s220 + $0x850] sm:$0xff]
        %v609 = vld [vmem:[%s220 + $0x858] sm:$0xff]
        %v610 = vld [vmem:[%s220 + $0x860] sm:$0xff]
        %v611 = vld [vmem:[%s220 + $0x868] sm:$0xff]
        %v612 = vld [vmem:[%s220 + $0x870] sm:$0xff]
        %v613 = vld [vmem:[%s220 + $0x878] sm:$0xff]
        %v614 = vld [vmem:[%s220 + $0x880] sm:$0xff]
        %v615 = vld [vmem:[%s220 + $0x888] sm:$0xff]
        %v616 = vld [vmem:[%s220 + $0x890] sm:$0xff]
        %v617 = vld [vmem:[%s220 + $0x898] sm:$0xff]
        %v618 = vld [vmem:[%s220 + $0x8a0] sm:$0xff]
        %v619 = vld [vmem:[%s220 + $0x8a8] sm:$0xff]
        %v620 = vld [vmem:[%s220 + $0x8b0] sm:$0xff]
        %v621 = vld [vmem:[%s220 + $0x8b8] sm:$0xff]
        %v622 = vld [vmem:[%s220 + $0x8c0] sm:$0xff]
        %v623 = vld [vmem:[%s220 + $0x8c8] sm:$0xff]
        %v624 = vld [vmem:[%s220 + $0x8d0] sm:$0xff]
        %v625 = vld [vmem:[%s220 + $0x8d8] sm:$0xff]
        %v626 = vld [vmem:[%s220 + $0x8e0] sm:$0xff]
        %v627 = vld [vmem:[%s220 + $0x8e8] sm:$0xff]
        %v628 = vld [vmem:[%s220 + $0x8f0] sm:$0xff]
        %v629 = vld [vmem:[%s220 + $0x8f8] sm:$0xff]
        %v630 = vld [vmem:[%s220 + $0x900] sm:$0xff]
        %v631 = vld [vmem:[%s220 + $0x908] sm:$0xff]
        %v632 = vld [vmem:[%s220 + $0x910] sm:$0xff]
        %v633 = vld [vmem:[%s220 + $0x918] sm:$0xff]
        %v634 = vld [vmem:[%s220 + $0x920] sm:$0xff]
        %v635 = vld [vmem:[%s220 + $0x928] sm:$0xff]
        %v636 = vld [vmem:[%s220 + $0x930] sm:$0xff]
        %v637 = vld [vmem:[%s220 + $0x938] sm:$0xff]
        %v638 = vld [vmem:[%s220 + $0x940] sm:$0xff]
        %v639 = vld [vmem:[%s220 + $0x948] sm:$0xff]
        %v640 = vld [vmem:[%s220 + $0x950] sm:$0xff]
        %v641 = vld [vmem:[%s220 + $0x958] sm:$0xff]
        %v642 = vld [vmem:[%s220 + $0x960] sm:$0xff]
        %v643 = vld [vmem:[%s220 + $0x968] sm:$0xff]
        %v644 = vld [vmem:[%s220 + $0x970] sm:$0xff]
        %v645 = vld [vmem:[%s220 + $0x978] sm:$0xff]
        %v646 = vld [vmem:[%s220 + $0x980] sm:$0xff]
        %v647 = vld [vmem:[%s220 + $0x988] sm:$0xff]
        %v648 = vld [vmem:[%s220 + $0x990] sm:$0xff]
        %v649 = vld [vmem:[%s220 + $0x998] sm:$0xff]
        %v650 = vld [vmem:[%s220 + $0x9a0] sm:$0xff]
        %v651 = vld [vmem:[%s220 + $0x9a8] sm:$0xff]
        %v652 = vld [vmem:[%s220 + $0x9b0] sm:$0xff]
        %v653 = vld [vmem:[%s220 + $0x9b8] sm:$0xff]
        %v654 = vld [vmem:[%s220 + $0x9c0] sm:$0xff]
        %v655 = vld [vmem:[%s220 + $0x9c8] sm:$0xff]
        %v656 = vld [vmem:[%s220 + $0x9d0] sm:$0xff]
        %v657 = vld [vmem:[%s220 + $0x9d8] sm:$0xff]
        %v658 = vld [vmem:[%s220 + $0x9e0] sm:$0xff]
        %v659 = vld [vmem:[%s220 + $0x9e8] sm:$0xff]
        %v660 = vld [vmem:[%s220 + $0x9f0] sm:$0xff]
        %v661 = vld [vmem:[%s220 + $0x9f8] sm:$0xff]
        %v662 = vld [vmem:[%s220 + $0xa00] sm:$0xff]
        %v663 = vld [vmem:[%s220 + $0xa08] sm:$0xff]
        %v664 = vld [vmem:[%s220 + $0xa10] sm:$0xff]
        %v665 = vld [vmem:[%s220 + $0xa18] sm:$0xff]
        %v666 = vld [vmem:[%s220 + $0xa20] sm:$0xff]
        %v667 = vld [vmem:[%s220 + $0xa28] sm:$0xff]
        %v668 = vld [vmem:[%s220 + $0xa30] sm:$0xff]
        %v669 = vld [vmem:[%s220 + $0xa38] sm:$0xff]
        %v670 = vld [vmem:[%s220 + $0xa40] sm:$0xff]
        %v671 = vld [vmem:[%s220 + $0xa48] sm:$0xff]
        %v672 = vld [vmem:[%s220 + $0xa50] sm:$0xff]
        %v673 = vld [vmem:[%s220 + $0xa58] sm:$0xff]
        %v674 = vld [vmem:[%s220 + $0xa60] sm:$0xff]
        %v675 = vld [vmem:[%s220 + $0xa68] sm:$0xff]
        %v676 = vld [vmem:[%s220 + $0xa70] sm:$0xff]
        %v677 = vld [vmem:[%s220 + $0xa78] sm:$0xff]
        %v678 = vld [vmem:[%s220 + $0xa80] sm:$0xff]
        %v679 = vld [vmem:[%s220 + $0xa88] sm:$0xff]
        %v680 = vld [vmem:[%s220 + $0xa90] sm:$0xff]
        %v681 = vld [vmem:[%s220 + $0xa98] sm:$0xff]
        %v682 = vld [vmem:[%s220 + $0xaa0] sm:$0xff]
        %v683 = vld [vmem:[%s220 + $0xaa8] sm:$0xff]
        %v684 = vld [vmem:[%s220 + $0xab0] sm:$0xff]
        %v685 = vld [vmem:[%s220 + $0xab8] sm:$0xff]
        %v686 = vld [vmem:[%s220 + $0xac0] sm:$0xff]
        %v687 = vld [vmem:[%s220 + $0xac8] sm:$0xff]
        %v688 = vld [vmem:[%s220 + $0xad0] sm:$0xff]
        %v689 = vld [vmem:[%s220 + $0xad8] sm:$0xff]
        %v690 = vld [vmem:[%s220 + $0xae0] sm:$0xff]
        %v691 = vld [vmem:[%s220 + $0xae8] sm:$0xff]
        %v692 = vld [vmem:[%s220 + $0xaf0] sm:$0xff]
        %v693 = vld [vmem:[%s220 + $0xaf8] sm:$0xff]
        %v694 = vld [vmem:[%s220 + $0xb00] sm:$0xff]
        %v695 = vld [vmem:[%s220 + $0xb08] sm:$0xff]
        %v696 = vld [vmem:[%s220 + $0xb10] sm:$0xff]
        %v697 = vld [vmem:[%s220 + $0xb18] sm:$0xff]
        %v698 = vld [vmem:[%s220 + $0xb20] sm:$0xff]
        %v699 = vld [vmem:[%s220 + $0xb28] sm:$0xff]
        %v700 = vld [vmem:[%s220 + $0xb30] sm:$0xff]
        %v701 = vld [vmem:[%s220 + $0xb38] sm:$0xff]
        %v702 = vld [vmem:[%s220 + $0xb40] sm:$0xff]
        %v703 = vld [vmem:[%s220 + $0xb48] sm:$0xff]
        %v704 = vld [vmem:[%s220 + $0xb50] sm:$0xff]
        %v705 = vld [vmem:[%s220 + $0xb58] sm:$0xff]
        %v706 = vld [vmem:[%s220 + $0xb60] sm:$0xff]
        %v707 = vld [vmem:[%s220 + $0xb68] sm:$0xff]
        %v708 = vld [vmem:[%s220 + $0xb70] sm:$0xff]
        %v709 = vld [vmem:[%s220 + $0xb78] sm:$0xff]
        %v710 = vld [vmem:[%s220 + $0xb80] sm:$0xff]
        %v711 = vld [vmem:[%s220 + $0xb88] sm:$0xff]
        %v712 = vld [vmem:[%s220 + $0xb90] sm:$0xff]
        %v713 = vld [vmem:[%s220 + $0xb98] sm:$0xff]
        %v714 = vld [vmem:[%s220 + $0xba0] sm:$0xff]
        %v715 = vld [vmem:[%s220 + $0xba8] sm:$0xff]
        %v716 = vld [vmem:[%s220 + $0xbb0] sm:$0xff]
        %v717 = vld [vmem:[%s220 + $0xbb8] sm:$0xff]
        %v718 = vld [vmem:[%s220 + $0xbc0] sm:$0xff]
        %v719 = vld [vmem:[%s220 + $0xbc8] sm:$0xff]
        %v720 = vld [vmem:[%s220 + $0xbd0] sm:$0xff]
        %v721 = vld [vmem:[%s220 + $0xbd8] sm:$0xff]
        %v722 = vld [vmem:[%s220 + $0xbe0] sm:$0xff]
        %v723 = vld [vmem:[%s220 + $0xbe8] sm:$0xff]
        %v724 = vld [vmem:[%s220 + $0xbf0] sm:$0xff]
        %v725 = vld [vmem:[%s220 + $0xbf8] sm:$0xff]
        %v726 = vld [vmem:[%s220 + $0xc00] sm:$0xff]
        %v727 = vld [vmem:[%s220 + $0xc08] sm:$0xff]
        %v728 = vld [vmem:[%s220 + $0xc10] sm:$0xff]
        %v729 = vld [vmem:[%s220 + $0xc18] sm:$0xff]
        %v730 = vld [vmem:[%s220 + $0xc20] sm:$0xff]
        %v731 = vld [vmem:[%s220 + $0xc28] sm:$0xff]
        %v732 = vld [vmem:[%s220 + $0xc30] sm:$0xff]
        %v733 = vld [vmem:[%s220 + $0xc38] sm:$0xff]
        %v734 = vld [vmem:[%s220 + $0xc40] sm:$0xff]
        %v735 = vld [vmem:[%s220 + $0xc48] sm:$0xff]
        %v736 = vld [vmem:[%s220 + $0xc50] sm:$0xff]
        %v737 = vld [vmem:[%s220 + $0xc58] sm:$0xff]
        %v738 = vld [vmem:[%s220 + $0xc60] sm:$0xff]
        %v739 = vld [vmem:[%s220 + $0xc68] sm:$0xff]
        %v740 = vld [vmem:[%s220 + $0xc70] sm:$0xff]
        %v741 = vld [vmem:[%s220 + $0xc78] sm:$0xff]
        %v742 = vld [vmem:[%s220 + $0xc80] sm:$0xff]
        %v743 = vld [vmem:[%s220 + $0xc88] sm:$0xff]
        %v744 = vld [vmem:[%s220 + $0xc90] sm:$0xff]
        %v745 = vld [vmem:[%s220 + $0xc98] sm:$0xff]
        %v746 = vld [vmem:[%s220 + $0xca0] sm:$0xff]
        %v747 = vld [vmem:[%s220 + $0xca8] sm:$0xff]
        %v748 = vld [vmem:[%s220 + $0xcb0] sm:$0xff]
        %v749 = vld [vmem:[%s220 + $0xcb8] sm:$0xff]
        %v750 = vld [vmem:[%s220 + $0xcc0] sm:$0xff]
        %v751 = vld [vmem:[%s220 + $0xcc8] sm:$0xff]
        %v752 = vld [vmem:[%s220 + $0xcd0] sm:$0xff]
        %v753 = vld [vmem:[%s220 + $0xcd8] sm:$0xff]
        %v754 = vld [vmem:[%s220 + $0xce0] sm:$0xff]
        %v755 = vld [vmem:[%s220 + $0xce8] sm:$0xff]
        %v756 = vld [vmem:[%s220 + $0xcf0] sm:$0xff]
        %v757 = vld [vmem:[%s220 + $0xcf8] sm:$0xff]
        %v758 = vld [vmem:[%s220 + $0xd00] sm:$0xff]
        %v759 = vld [vmem:[%s220 + $0xd08] sm:$0xff]
        %v760 = vld [vmem:[%s220 + $0xd10] sm:$0xff]
        %v761 = vld [vmem:[%s220 + $0xd18] sm:$0xff]
        %v762 = vld [vmem:[%s220 + $0xd20] sm:$0xff]
        %v763 = vld [vmem:[%s220 + $0xd28] sm:$0xff]
        %v764 = vld [vmem:[%s220 + $0xd30] sm:$0xff]
        %v765 = vld [vmem:[%s220 + $0xd38] sm:$0xff]
        %v766 = vld [vmem:[%s220 + $0xd40] sm:$0xff]
        %v767 = vld [vmem:[%s220 + $0xd48] sm:$0xff]
        %v768 = vld [vmem:[%s220 + $0xd50] sm:$0xff]
        %v769 = vld [vmem:[%s220 + $0xd58] sm:$0xff]
        %v770 = vld [vmem:[%s220 + $0xd60] sm:$0xff]
        %v771 = vld [vmem:[%s220 + $0xd68] sm:$0xff]
        %v772 = vld [vmem:[%s220 + $0xd70] sm:$0xff]
        %v773 = vld [vmem:[%s220 + $0xd78] sm:$0xff]
        %v774 = vld [vmem:[%s220 + $0xd80] sm:$0xff]
        %v775 = vld [vmem:[%s220 + $0xd88] sm:$0xff]
        %v776 = vld [vmem:[%s220 + $0xd90] sm:$0xff]
        %v777 = vld [vmem:[%s220 + $0xd98] sm:$0xff]
        %v778 = vld [vmem:[%s220 + $0xda0] sm:$0xff]
        %v779 = vld [vmem:[%s220 + $0xda8] sm:$0xff]
        %v780 = vld [vmem:[%s220 + $0xdb0] sm:$0xff]
        %v781 = vld [vmem:[%s220 + $0xdb8] sm:$0xff]
        %v782 = vld [vmem:[%s220 + $0xdc0] sm:$0xff]
        %v783 = vld [vmem:[%s220 + $0xdc8] sm:$0xff]
        %v784 = vld [vmem:[%s220 + $0xdd0] sm:$0xff]
        %v785 = vld [vmem:[%s220 + $0xdd8] sm:$0xff]
        %v786 = vld [vmem:[%s220 + $0xde0] sm:$0xff]
        %v787 = vld [vmem:[%s220 + $0xde8] sm:$0xff]
        %v788 = vld [vmem:[%s220 + $0xdf0] sm:$0xff]
        %v789 = vld [vmem:[%s220 + $0xdf8] sm:$0xff]
        %v790 = vld [vmem:[%s220 + $0xe00] sm:$0xff]
        %v791 = vld [vmem:[%s220 + $0xe08] sm:$0xff]
        %v792 = vld [vmem:[%s220 + $0xe10] sm:$0xff]
        %v793 = vld [vmem:[%s220 + $0xe18] sm:$0xff]
        %v794 = vld [vmem:[%s220 + $0xe20] sm:$0xff]
        %v795 = vld [vmem:[%s220 + $0xe28] sm:$0xff]
        %v796 = vld [vmem:[%s220 + $0xe30] sm:$0xff]
        %v797 = vld [vmem:[%s220 + $0xe38] sm:$0xff]
        %v798 = vld [vmem:[%s220 + $0xe40] sm:$0xff]
        %v799 = vld [vmem:[%s220 + $0xe48] sm:$0xff]
        %v800 = vld [vmem:[%s220 + $0xe50] sm:$0xff]
        %v801 = vld [vmem:[%s220 + $0xe58] sm:$0xff]
        %v802 = vld [vmem:[%s220 + $0xe60] sm:$0xff]
        %v803 = vld [vmem:[%s220 + $0xe68] sm:$0xff]
        %v804 = vld [vmem:[%s220 + $0xe70] sm:$0xff]
        %v805 = vld [vmem:[%s220 + $0xe78] sm:$0xff]
        %v806 = vld [vmem:[%s220 + $0xe80] sm:$0xff]
        %v807 = vld [vmem:[%s220 + $0xe88] sm:$0xff]
        %v808 = vld [vmem:[%s220 + $0xe90] sm:$0xff]
        %v809 = vld [vmem:[%s220 + $0xe98] sm:$0xff]
        %v810 = vld [vmem:[%s220 + $0xea0] sm:$0xff]
        %v811 = vld [vmem:[%s220 + $0xea8] sm:$0xff]
        %v812 = vld [vmem:[%s220 + $0xeb0] sm:$0xff]
        %v813 = vld [vmem:[%s220 + $0xeb8] sm:$0xff]
        %v814 = vld [vmem:[%s220 + $0xec0] sm:$0xff]
        %v815 = vld [vmem:[%s220 + $0xec8] sm:$0xff]
        %v816 = vld [vmem:[%s220 + $0xed0] sm:$0xff]
        %v817 = vld [vmem:[%s220 + $0xed8] sm:$0xff]
        %v818 = vld [vmem:[%s220 + $0xee0] sm:$0xff]
        %v819 = vld [vmem:[%s220 + $0xee8] sm:$0xff]
        %v820 = vld [vmem:[%s220 + $0xef0] sm:$0xff]
        %v821 = vld [vmem:[%s220 + $0xef8] sm:$0xff]
        %v822 = vld [vmem:[%s220 + $0xf00] sm:$0xff]
        %v823 = vld [vmem:[%s220 + $0xf08] sm:$0xff]
        %v824 = vld [vmem:[%s220 + $0xf10] sm:$0xff]
        %v825 = vld [vmem:[%s220 + $0xf18] sm:$0xff]
        %v826 = vld [vmem:[%s220 + $0xf20] sm:$0xff]
        %v827 = vld [vmem:[%s220 + $0xf28] sm:$0xff]
        %v828 = vld [vmem:[%s220 + $0xf30] sm:$0xff]
        %v829 = vld [vmem:[%s220 + $0xf38] sm:$0xff]
        %v830 = vld [vmem:[%s220 + $0xf40] sm:$0xff]
        %v831 = vld [vmem:[%s220 + $0xf48] sm:$0xff]
        %v832 = vld [vmem:[%s220 + $0xf50] sm:$0xff]
        %v833 = vld [vmem:[%s220 + $0xf58] sm:$0xff]
        %v834 = vld [vmem:[%s220 + $0xf60] sm:$0xff]
        %v835 = vld [vmem:[%s220 + $0xf68] sm:$0xff]
        %v836 = vld [vmem:[%s220 + $0xf70] sm:$0xff]
        %v837 = vld [vmem:[%s220 + $0xf78] sm:$0xff]
        %v838 = vld [vmem:[%s220 + $0xf80] sm:$0xff]
        %v839 = vld [vmem:[%s220 + $0xf88] sm:$0xff]
        %v840 = vld [vmem:[%s220 + $0xf90] sm:$0xff]
        %v841 = vld [vmem:[%s220 + $0xf98] sm:$0xff]
        %v842 = vld [vmem:[%s220 + $0xfa0] sm:$0xff]
        %v843 = vld [vmem:[%s220 + $0xfa8] sm:$0xff]
        %v844 = vld [vmem:[%s220 + $0xfb0] sm:$0xff]
        %v845 = vld [vmem:[%s220 + $0xfb8] sm:$0xff]
        %v846 = vld [vmem:[%s220 + $0xfc0] sm:$0xff]
        %v847 = vld [vmem:[%s220 + $0xfc8] sm:$0xff]
        %v848 = vld [vmem:[%s220 + $0xfd0] sm:$0xff]
        %v849 = vld [vmem:[%s220 + $0xfd8] sm:$0xff]
        %v850 = vld [vmem:[%s220 + $0xfe0] sm:$0xff]
        %v851 = vld [vmem:[%s220 + $0xfe8] sm:$0xff]
        %v852 = vld [vmem:[%s220 + $0xff0] sm:$0xff]
        %v853 = vld [vmem:[%s220 + $0xff8] sm:$0xff]
        %v854 = vld [vmem:[%s220 + $0x1000] sm:$0xff]
        %v855 = vld [vmem:[%s220 + $0x1008] sm:$0xff]
        %v856 = vld [vmem:[%s220 + $0x1010] sm:$0xff]
        %v857 = vld [vmem:[%s220 + $0x1018] sm:$0xff]
        %v858 = vld [vmem:[%s220 + $0x1020] sm:$0xff]
        %v859 = vld [vmem:[%s220 + $0x1028] sm:$0xff]
        %v860 = vld [vmem:[%s220 + $0x1030] sm:$0xff]
        %v861 = vld [vmem:[%s220 + $0x1038] sm:$0xff]
        %v862 = vld [vmem:[%s220 + $0x1040] sm:$0xff]
        %v863 = vld [vmem:[%s220 + $0x1048] sm:$0xff]
        %v864 = vld [vmem:[%s220 + $0x1050] sm:$0xff]
        %v865 = vld [vmem:[%s220 + $0x1058] sm:$0xff]
        %v866 = vld [vmem:[%s220 + $0x1060] sm:$0xff]
        %v867 = vld [vmem:[%s220 + $0x1068] sm:$0xff]
        %v868 = vld [vmem:[%s220 + $0x1070] sm:$0xff]
        %v869 = vld [vmem:[%s220 + $0x1078] sm:$0xff]
        %v870 = vld [vmem:[%s220 + $0x1080] sm:$0xff]
        %v871 = vld [vmem:[%s220 + $0x1088] sm:$0xff]
        %v872 = vld [vmem:[%s220 + $0x1090] sm:$0xff]
        %v873 = vld [vmem:[%s220 + $0x1098] sm:$0xff]
        %v874 = vld [vmem:[%s220 + $0x10a0] sm:$0xff]
        %v875 = vld [vmem:[%s220 + $0x10a8] sm:$0xff]
        %v876 = vld [vmem:[%s220 + $0x10b0] sm:$0xff]
        %v877 = vld [vmem:[%s220 + $0x10b8] sm:$0xff]
        %v878 = vld [vmem:[%s220 + $0x10c0] sm:$0xff]
        %v879 = vld [vmem:[%s220 + $0x10c8] sm:$0xff]
        %v880 = vld [vmem:[%s220 + $0x10d0] sm:$0xff]
        %v881 = vld [vmem:[%s220 + $0x10d8] sm:$0xff]
        %v882 = vld [vmem:[%s220 + $0x10e0] sm:$0xff]
        %v883 = vld [vmem:[%s220 + $0x10e8] sm:$0xff]
        %v884 = vld [vmem:[%s220 + $0x10f0] sm:$0xff]
        %v885 = vld [vmem:[%s220 + $0x10f8] sm:$0xff]
        %v886 = vld [vmem:[%s220 + $0x1100] sm:$0xff]
        %v887 = vld [vmem:[%s220 + $0x1108] sm:$0xff]
        %v888 = vld [vmem:[%s220 + $0x1110] sm:$0xff]
        %v889 = vld [vmem:[%s220 + $0x1118] sm:$0xff]
        %v890 = vld [vmem:[%s220 + $0x1120] sm:$0xff]
        %v891 = vld [vmem:[%s220 + $0x1128] sm:$0xff]
        %v892 = vld [vmem:[%s220 + $0x1130] sm:$0xff]
        %v893 = vld [vmem:[%s220 + $0x1138] sm:$0xff]
        %v894 = vld [vmem:[%s220 + $0x1140] sm:$0xff]
        %v895 = vld [vmem:[%s220 + $0x1148] sm:$0xff]
        %v896 = vld [vmem:[%s220 + $0x1150] sm:$0xff]
        %v897 = vld [vmem:[%s220 + $0x1158] sm:$0xff]
        %v898 = vld [vmem:[%s220 + $0x1160] sm:$0xff]
        %v899 = vld [vmem:[%s220 + $0x1168] sm:$0xff]
        %v900 = vld [vmem:[%s220 + $0x1170] sm:$0xff]
        %v901 = vld [vmem:[%s220 + $0x1178] sm:$0xff]
        %v902 = vld [vmem:[%s220 + $0x1180] sm:$0xff]
        %v903 = vld [vmem:[%s220 + $0x1188] sm:$0xff]
        %v904 = vld [vmem:[%s220 + $0x1190] sm:$0xff]
        %v905 = vld [vmem:[%s220 + $0x1198] sm:$0xff]
        %v906 = vld [vmem:[%s220 + $0x11a0] sm:$0xff]
        %v907 = vld [vmem:[%s220 + $0x11a8] sm:$0xff]
        %v908 = vld [vmem:[%s220 + $0x11b0] sm:$0xff]
        %v909 = vld [vmem:[%s220 + $0x11b8] sm:$0xff]
        %v910 = vld [vmem:[%s220 + $0x11c0] sm:$0xff]
        %v911 = vld [vmem:[%s220 + $0x11c8] sm:$0xff]
        %v912 = vld [vmem:[%s220 + $0x11d0] sm:$0xff]
        %v913 = vld [vmem:[%s220 + $0x11d8] sm:$0xff]
        %v914 = vld [vmem:[%s220 + $0x11e0] sm:$0xff]
        %v915 = vld [vmem:[%s220 + $0x11e8] sm:$0xff]
        %v916 = vld [vmem:[%s220 + $0x11f0] sm:$0xff]
        %v917 = vld [vmem:[%s220 + $0x11f8] sm:$0xff]
        %v918 = vld [vmem:[%s220 + $0x1200] sm:$0xff]
        %v919 = vld [vmem:[%s220 + $0x1208] sm:$0xff]
        %v920 = vld [vmem:[%s220 + $0x1210] sm:$0xff]
        %v921 = vld [vmem:[%s220 + $0x1218] sm:$0xff]
        %v922 = vld [vmem:[%s220 + $0x1220] sm:$0xff]
        %v923 = vld [vmem:[%s220 + $0x1228] sm:$0xff]
        %v924 = vld [vmem:[%s220 + $0x1230] sm:$0xff]
        %v925 = vld [vmem:[%s220 + $0x1238] sm:$0xff]
        %v926 = vld [vmem:[%s220 + $0x1240] sm:$0xff]
        %v927 = vld [vmem:[%s220 + $0x1248] sm:$0xff]
        %v928 = vld [vmem:[%s220 + $0x1250] sm:$0xff]
        %v929 = vld [vmem:[%s220 + $0x1258] sm:$0xff]
        %v930 = vld [vmem:[%s220 + $0x1260] sm:$0xff]
        %v931 = vld [vmem:[%s220 + $0x1268] sm:$0xff]
        %v932 = vld [vmem:[%s220 + $0x1270] sm:$0xff]
        %v933 = vld [vmem:[%s220 + $0x1278] sm:$0xff]
        %v934 = vld [vmem:[%s220 + $0x1280] sm:$0xff]
        %v935 = vld [vmem:[%s220 + $0x1288] sm:$0xff]
        %v936 = vld [vmem:[%s220 + $0x1290] sm:$0xff]
        %v937 = vld [vmem:[%s220 + $0x1298] sm:$0xff]
        %v938 = vld [vmem:[%s220 + $0x12a0] sm:$0xff]
        %v939 = vld [vmem:[%s220 + $0x12a8] sm:$0xff]
        %v940 = vld [vmem:[%s220 + $0x12b0] sm:$0xff]
        %v941 = vld [vmem:[%s220 + $0x12b8] sm:$0xff]
        %v942 = vld [vmem:[%s220 + $0x12c0] sm:$0xff]
        %v943 = vld [vmem:[%s220 + $0x12c8] sm:$0xff]
        %v944 = vld [vmem:[%s220 + $0x12d0] sm:$0xff]
        %v945 = vld [vmem:[%s220 + $0x12d8] sm:$0xff]
        %v946 = vld [vmem:[%s220 + $0x12e0] sm:$0xff]
        %v947 = vld [vmem:[%s220 + $0x12e8] sm:$0xff]
        %v948 = vld [vmem:[%s220 + $0x12f0] sm:$0xff]
        %v949 = vld [vmem:[%s220 + $0x12f8] sm:$0xff]
        %v950 = vld [vmem:[%s220 + $0x1300] sm:$0xff]
        %v951 = vld [vmem:[%s220 + $0x1308] sm:$0xff]
        %v952 = vld [vmem:[%s220 + $0x1310] sm:$0xff]
        %v953 = vld [vmem:[%s220 + $0x1318] sm:$0xff]
        %v954 = vld [vmem:[%s220 + $0x1320] sm:$0xff]
        %v955 = vld [vmem:[%s220 + $0x1328] sm:$0xff]
        %v956 = vld [vmem:[%s220 + $0x1330] sm:$0xff]
        %v957 = vld [vmem:[%s220 + $0x1338] sm:$0xff]
        %v958 = vld [vmem:[%s220 + $0x1340] sm:$0xff]
        %v959 = vld [vmem:[%s220 + $0x1348] sm:$0xff]
        %v960 = vld [vmem:[%s220 + $0x1350] sm:$0xff]
        %v961 = vld [vmem:[%s220 + $0x1358] sm:$0xff]
        %v962 = vld [vmem:[%s220 + $0x1360] sm:$0xff]
        %v963 = vld [vmem:[%s220 + $0x1368] sm:$0xff]
        %v964 = vld [vmem:[%s220 + $0x1370] sm:$0xff]
        %v965 = vld [vmem:[%s220 + $0x1378] sm:$0xff]
        %v966 = vld [vmem:[%s220 + $0x1380] sm:$0xff]
        %v967 = vld [vmem:[%s220 + $0x1388] sm:$0xff]
        %v968 = vld [vmem:[%s220 + $0x1390] sm:$0xff]
        %v969 = vld [vmem:[%s220 + $0x1398] sm:$0xff]
        %v970 = vld [vmem:[%s220 + $0x13a0] sm:$0xff]
        %v971 = vld [vmem:[%s220 + $0x13a8] sm:$0xff]
        %v972 = vld [vmem:[%s220 + $0x13b0] sm:$0xff]
        %v973 = vld [vmem:[%s220 + $0x13b8] sm:$0xff]
        %v974 = vld [vmem:[%s220 + $0x13c0] sm:$0xff]
        %v975 = vld [vmem:[%s220 + $0x13c8] sm:$0xff]
        %v976 = vld [vmem:[%s220 + $0x13d0] sm:$0xff]
        %v977 = vld [vmem:[%s220 + $0x13d8] sm:$0xff]
        %v978 = vld [vmem:[%s220 + $0x13e0] sm:$0xff]
        %v979 = vld [vmem:[%s220 + $0x13e8] sm:$0xff]
        %v980 = vld [vmem:[%s220 + $0x13f0] sm:$0xff]
        %v981 = vld [vmem:[%s220 + $0x13f8] sm:$0xff]
        %v982 = vld [vmem:[%s220 + $0x1400] sm:$0xff]
        %v983 = vld [vmem:[%s220 + $0x1408] sm:$0xff]
        %v984 = vld [vmem:[%s220 + $0x1410] sm:$0xff]
        %v985 = vld [vmem:[%s220 + $0x1418] sm:$0xff]
        %v986 = vld [vmem:[%s220 + $0x1420] sm:$0xff]
        %v987 = vld [vmem:[%s220 + $0x1428] sm:$0xff]
        %v988 = vld [vmem:[%s220 + $0x1430] sm:$0xff]
        %v989 = vld [vmem:[%s220 + $0x1438] sm:$0xff]
        %v990 = vld [vmem:[%s220 + $0x1440] sm:$0xff]
        %v991 = vld [vmem:[%s220 + $0x1448] sm:$0xff]
        %v992 = vld [vmem:[%s220 + $0x1450] sm:$0xff]
        %v993 = vld [vmem:[%s220 + $0x1458] sm:$0xff]
        %v994 = vld [vmem:[%s220 + $0x1460] sm:$0xff]
        %v995 = vld [vmem:[%s220 + $0x1468] sm:$0xff]
        %v996 = vld [vmem:[%s220 + $0x1470] sm:$0xff]
        %v997 = vld [vmem:[%s220 + $0x1478] sm:$0xff]
        %v998 = vld [vmem:[%s220 + $0x1480] sm:$0xff]
        %v999 = vld [vmem:[%s220 + $0x1488] sm:$0xff]
        %v1000 = vld [vmem:[%s220 + $0x1490] sm:$0xff]
        %v1001 = vld [vmem:[%s220 + $0x1498] sm:$0xff]
        %v1002 = vld [vmem:[%s220 + $0x14a0] sm:$0xff]
        %v1003 = vld [vmem:[%s220 + $0x14a8] sm:$0xff]
        %v1004 = vld [vmem:[%s220 + $0x14b0] sm:$0xff]
        %v1005 = vld [vmem:[%s220 + $0x14b8] sm:$0xff]
        %v1006 = vld [vmem:[%s220 + $0x14c0] sm:$0xff]
        %v1007 = vld [vmem:[%s220 + $0x14c8] sm:$0xff]
        %v1008 = vld [vmem:[%s220 + $0x14d0] sm:$0xff]
        %v1009 = vld [vmem:[%s220 + $0x14d8] sm:$0xff]
        %v1010 = vld [vmem:[%s220 + $0x14e0] sm:$0xff]
        %v1011 = vld [vmem:[%s220 + $0x14e8] sm:$0xff]
        %v1012 = vld [vmem:[%s220 + $0x14f0] sm:$0xff]
        %v1013 = vld [vmem:[%s220 + $0x14f8] sm:$0xff]
        %v1014 = vld [vmem:[%s220 + $0x1500] sm:$0xff]
        %v1015 = vld [vmem:[%s220 + $0x1508] sm:$0xff]
        %v1016 = vld [vmem:[%s220 + $0x1510] sm:$0xff]
        %v1017 = vld [vmem:[%s220 + $0x1518] sm:$0xff]
        %v1018 = vld [vmem:[%s220 + $0x1520] sm:$0xff]
        %v1019 = vld [vmem:[%s220 + $0x1528] sm:$0xff]
        %v1020 = vld [vmem:[%s220 + $0x1530] sm:$0xff]
        %v1021 = vld [vmem:[%s220 + $0x1538] sm:$0xff]
        %v1022 = vld [vmem:[%s220 + $0x1540] sm:$0xff]
        %v1023 = vld [vmem:[%s220 + $0x1548] sm:$0xff]
        %v1024 = vld [vmem:[%s220 + $0x1550] sm:$0xff]
        %v1025 = vld [vmem:[%s220 + $0x1558] sm:$0xff]
        %v1026 = vld [vmem:[%s220 + $0x1560] sm:$0xff]
        %v1027 = vld [vmem:[%s220 + $0x1568] sm:$0xff]
        %v1028 = vld [vmem:[%s220 + $0x1570] sm:$0xff]
        %v1029 = vld [vmem:[%s220 + $0x1578] sm:$0xff]
        %v1030 = vld [vmem:[%s220 + $0x1580] sm:$0xff]
        %v1031 = vld [vmem:[%s220 + $0x1588] sm:$0xff]
        %v1032 = vld [vmem:[%s220 + $0x1590] sm:$0xff]
        %v1033 = vld [vmem:[%s220 + $0x1598] sm:$0xff]
        %v1034 = vld [vmem:[%s220 + $0x15a0] sm:$0xff]
        %v1035 = vld [vmem:[%s220 + $0x15a8] sm:$0xff]
        %v1036 = vld [vmem:[%s220 + $0x15b0] sm:$0xff]
        %v1037 = vld [vmem:[%s220 + $0x15b8] sm:$0xff]
        %v1038 = vld [vmem:[%s220 + $0x15c0] sm:$0xff]
        %v1039 = vld [vmem:[%s220 + $0x15c8] sm:$0xff]
        %v1040 = vld [vmem:[%s220 + $0x15d0] sm:$0xff]
        %v1041 = vld [vmem:[%s220 + $0x15d8] sm:$0xff]
        %v1042 = vld [vmem:[%s220 + $0x15e0] sm:$0xff]
        %v1043 = vld [vmem:[%s220 + $0x15e8] sm:$0xff]
        %v1044 = vld [vmem:[%s220 + $0x15f0] sm:$0xff]
        %v1045 = vld [vmem:[%s220 + $0x15f8] sm:$0xff]
        %v1046 = vld [vmem:[%s220 + $0x1600] sm:$0xff]
        %v1047 = vld [vmem:[%s220 + $0x1608] sm:$0xff]
        %v1048 = vld [vmem:[%s220 + $0x1610] sm:$0xff]
        %v1049 = vld [vmem:[%s220 + $0x1618] sm:$0xff]
        %v1050 = vld [vmem:[%s220 + $0x1620] sm:$0xff]
        %v1051 = vld [vmem:[%s220 + $0x1628] sm:$0xff]
        %v1052 = vld [vmem:[%s220 + $0x1630] sm:$0xff]
        %v1053 = vld [vmem:[%s220 + $0x1638] sm:$0xff]
        %v1054 = vld [vmem:[%s220 + $0x1640] sm:$0xff]
        %v1055 = vld [vmem:[%s220 + $0x1648] sm:$0xff]
        %v1056 = vld [vmem:[%s220 + $0x1650] sm:$0xff]
        %v1057 = vld [vmem:[%s220 + $0x1658] sm:$0xff]
        %v1058 = vld [vmem:[%s220 + $0x1660] sm:$0xff]
        %v1059 = vld [vmem:[%s220 + $0x1668] sm:$0xff]
        %v1060 = vld [vmem:[%s220 + $0x1670] sm:$0xff]
        %v1061 = vld [vmem:[%s220 + $0x1678] sm:$0xff]
        %v1062 = vld [vmem:[%s220 + $0x1680] sm:$0xff]
        %v1063 = vld [vmem:[%s220 + $0x1688] sm:$0xff]
        %v1064 = vld [vmem:[%s220 + $0x1690] sm:$0xff]
        %v1065 = vld [vmem:[%s220 + $0x1698] sm:$0xff]
        %v1066 = vld [vmem:[%s220 + $0x16a0] sm:$0xff]
        %v1067 = vld [vmem:[%s220 + $0x16a8] sm:$0xff]
        %v1068 = vld [vmem:[%s220 + $0x16b0] sm:$0xff]
        %v1069 = vld [vmem:[%s220 + $0x16b8] sm:$0xff]
        %v1070 = vld [vmem:[%s220 + $0x16c0] sm:$0xff]
        %v1071 = vld [vmem:[%s220 + $0x16c8] sm:$0xff]
        %v1072 = vld [vmem:[%s220 + $0x16d0] sm:$0xff]
        %v1073 = vld [vmem:[%s220 + $0x16d8] sm:$0xff]
        %v1074 = vld [vmem:[%s220 + $0x16e0] sm:$0xff]
        %v1075 = vld [vmem:[%s220 + $0x16e8] sm:$0xff]
        %v1076 = vld [vmem:[%s220 + $0x16f0] sm:$0xff]
        %v1077 = vld [vmem:[%s220 + $0x16f8] sm:$0xff]
        %v1078 = vld [vmem:[%s220 + $0x1700] sm:$0xff]
        %v1079 = vld [vmem:[%s220 + $0x1708] sm:$0xff]
        %v1080 = vld [vmem:[%s220 + $0x1710] sm:$0xff]
        %v1081 = vld [vmem:[%s220 + $0x1718] sm:$0xff]
        %v1082 = vld [vmem:[%s220 + $0x1720] sm:$0xff]
        %v1083 = vld [vmem:[%s220 + $0x1728] sm:$0xff]
        %v1084 = vld [vmem:[%s220 + $0x1730] sm:$0xff]
        %v1085 = vld [vmem:[%s220 + $0x1738] sm:$0xff]
        %v1086 = vld [vmem:[%s220 + $0x1740] sm:$0xff]
        %v1087 = vld [vmem:[%s220 + $0x1748] sm:$0xff]
        %v1088 = vld [vmem:[%s220 + $0x1750] sm:$0xff]
        %v1089 = vld [vmem:[%s220 + $0x1758] sm:$0xff]
        %v1090 = vld [vmem:[%s220 + $0x1760] sm:$0xff]
        %v1091 = vld [vmem:[%s220 + $0x1768] sm:$0xff]
        %v1092 = vld [vmem:[%s220 + $0x1770] sm:$0xff]
        %v1093 = vld [vmem:[%s220 + $0x1778] sm:$0xff]
        %v1094 = vld [vmem:[%s220 + $0x1780] sm:$0xff]
        %v1095 = vld [vmem:[%s220 + $0x1788] sm:$0xff]
        %v1096 = vld [vmem:[%s220 + $0x1790] sm:$0xff]
        %v1097 = vld [vmem:[%s220 + $0x1798] sm:$0xff]
        %v1098 = vld [vmem:[%s220 + $0x17a0] sm:$0xff]
        %v1099 = vld [vmem:[%s220 + $0x17a8] sm:$0xff]
        %v1100 = vld [vmem:[%s220 + $0x17b0] sm:$0xff]
        %v1101 = vld [vmem:[%s220 + $0x17b8] sm:$0xff]
        %v1102 = vld [vmem:[%s220 + $0x17c0] sm:$0xff]
        %v1103 = vld [vmem:[%s220 + $0x17c8] sm:$0xff]
        %v1104 = vld [vmem:[%s220 + $0x17d0] sm:$0xff]
        %v1105 = vld [vmem:[%s220 + $0x17d8] sm:$0xff]
        %v1106 = vld [vmem:[%s220 + $0x17e0] sm:$0xff]
        %v1107 = vld [vmem:[%s220 + $0x17e8] sm:$0xff]
        %v1108 = vld [vmem:[%s220 + $0x17f0] sm:$0xff]
        %v1109 = vld [vmem:[%s220 + $0x17f8] sm:$0xff]
        %v1110 = vld [vmem:[%s220 + $0x1800] sm:$0xff]
        %v1111 = vld [vmem:[%s220 + $0x1808] sm:$0xff]
        %v1112 = vld [vmem:[%s220 + $0x1810] sm:$0xff]
        %v1113 = vld [vmem:[%s220 + $0x1818] sm:$0xff]
        %v1114 = vld [vmem:[%s220 + $0x1820] sm:$0xff]
        %v1115 = vld [vmem:[%s220 + $0x1828] sm:$0xff]
        %v1116 = vld [vmem:[%s220 + $0x1830] sm:$0xff]
        %v1117 = vld [vmem:[%s220 + $0x1838] sm:$0xff]
        %v1118 = vld [vmem:[%s220 + $0x1840] sm:$0xff]
        %v1119 = vld [vmem:[%s220 + $0x1848] sm:$0xff]
        %v1120 = vld [vmem:[%s220 + $0x1850] sm:$0xff]
        %v1121 = vld [vmem:[%s220 + $0x1858] sm:$0xff]
        %v1122 = vld [vmem:[%s220 + $0x1860] sm:$0xff]
        %v1123 = vld [vmem:[%s220 + $0x1868] sm:$0xff]
        %v1124 = vld [vmem:[%s220 + $0x1870] sm:$0xff]
        %v1125 = vld [vmem:[%s220 + $0x1878] sm:$0xff]
        %v1126 = vld [vmem:[%s220 + $0x1880] sm:$0xff]
        %v1127 = vld [vmem:[%s220 + $0x1888] sm:$0xff]
        %v1128 = vld [vmem:[%s220 + $0x1890] sm:$0xff]
        %v1129 = vld [vmem:[%s220 + $0x1898] sm:$0xff]
        %v1130 = vld [vmem:[%s220 + $0x18a0] sm:$0xff]
        %v1131 = vld [vmem:[%s220 + $0x18a8] sm:$0xff]
        %v1132 = vld [vmem:[%s220 + $0x18b0] sm:$0xff]
        %v1133 = vld [vmem:[%s220 + $0x18b8] sm:$0xff]
        %v1134 = vld [vmem:[%s220 + $0x18c0] sm:$0xff]
        %v1135 = vld [vmem:[%s220 + $0x18c8] sm:$0xff]
        %v1136 = vld [vmem:[%s220 + $0x18d0] sm:$0xff]
        %v1137 = vld [vmem:[%s220 + $0x18d8] sm:$0xff]
        %v1138 = vld [vmem:[%s220 + $0x18e0] sm:$0xff]
        %v1139 = vld [vmem:[%s220 + $0x18e8] sm:$0xff]
        %v1140 = vld [vmem:[%s220 + $0x18f0] sm:$0xff]
        %v1141 = vld [vmem:[%s220 + $0x18f8] sm:$0xff]
        %v1142 = vld [vmem:[%s220 + $0x1900] sm:$0xff]
        %v1143 = vld [vmem:[%s220 + $0x1908] sm:$0xff]
        %v1144 = vld [vmem:[%s220 + $0x1910] sm:$0xff]
        %v1145 = vld [vmem:[%s220 + $0x1918] sm:$0xff]
        %v1146 = vld [vmem:[%s220 + $0x1920] sm:$0xff]
        %v1147 = vld [vmem:[%s220 + $0x1928] sm:$0xff]
        %v1148 = vld [vmem:[%s220 + $0x1930] sm:$0xff]
        %v1149 = vld [vmem:[%s220 + $0x1938] sm:$0xff]
        %v1150 = vld [vmem:[%s220 + $0x1940] sm:$0xff]
        %v1151 = vld [vmem:[%s220 + $0x1948] sm:$0xff]
        %v1152 = vld [vmem:[%s220 + $0x1950] sm:$0xff]
        %v1153 = vld [vmem:[%s220 + $0x1958] sm:$0xff]
        %v1154 = vld [vmem:[%s220 + $0x1960] sm:$0xff]
        %v1155 = vld [vmem:[%s220 + $0x1968] sm:$0xff]
        %v1156 = vld [vmem:[%s220 + $0x1970] sm:$0xff]
        %v1157 = vld [vmem:[%s220 + $0x1978] sm:$0xff]
        %v1158 = vld [vmem:[%s220 + $0x1980] sm:$0xff]
        %v1159 = vld [vmem:[%s220 + $0x1988] sm:$0xff]
        %v1160 = vld [vmem:[%s220 + $0x1990] sm:$0xff]
        %v1161 = vld [vmem:[%s220 + $0x1998] sm:$0xff]
        %v1162 = vld [vmem:[%s220 + $0x19a0] sm:$0xff]
        %v1163 = vld [vmem:[%s220 + $0x19a8] sm:$0xff]
        %v1164 = vld [vmem:[%s220 + $0x19b0] sm:$0xff]
        %v1165 = vld [vmem:[%s220 + $0x19b8] sm:$0xff]
        %v1166 = vld [vmem:[%s220 + $0x19c0] sm:$0xff]
        %v1167 = vld [vmem:[%s220 + $0x19c8] sm:$0xff]
        %v1168 = vld [vmem:[%s220 + $0x19d0] sm:$0xff]
        %v1169 = vld [vmem:[%s220 + $0x19d8] sm:$0xff]
        %v1170 = vld [vmem:[%s220 + $0x19e0] sm:$0xff]
        %v1171 = vld [vmem:[%s220 + $0x19e8] sm:$0xff]
        %v1172 = vld [vmem:[%s220 + $0x19f0] sm:$0xff]
        %v1173 = vld [vmem:[%s220 + $0x19f8] sm:$0xff]
        %v1174 = vld [vmem:[%s220 + $0x1a00] sm:$0xff]
        %v1175 = vld [vmem:[%s220 + $0x1a08] sm:$0xff]
        %v1176 = vld [vmem:[%s220 + $0x1a10] sm:$0xff]
        %v1177 = vld [vmem:[%s220 + $0x1a18] sm:$0xff]
        %v1178 = vld [vmem:[%s220 + $0x1a20] sm:$0xff]
        %v1179 = vld [vmem:[%s220 + $0x1a28] sm:$0xff]
        %v1180 = vld [vmem:[%s220 + $0x1a30] sm:$0xff]
        %v1181 = vld [vmem:[%s220 + $0x1a38] sm:$0xff]
        %v1182 = vld [vmem:[%s220 + $0x1a40] sm:$0xff]
        %v1183 = vld [vmem:[%s220 + $0x1a48] sm:$0xff]
        %v1184 = vld [vmem:[%s220 + $0x1a50] sm:$0xff]
        %v1185 = vld [vmem:[%s220 + $0x1a58] sm:$0xff]
        %v1186 = vld [vmem:[%s220 + $0x1a60] sm:$0xff]
        %v1187 = vld [vmem:[%s220 + $0x1a68] sm:$0xff]
        %v1188 = vld [vmem:[%s220 + $0x1a70] sm:$0xff]
        %v1189 = vld [vmem:[%s220 + $0x1a78] sm:$0xff]
        %v1190 = vld [vmem:[%s220 + $0x1a80] sm:$0xff]
        %v1191 = vld [vmem:[%s220 + $0x1a88] sm:$0xff]
        %v1192 = vld [vmem:[%s220 + $0x1a90] sm:$0xff]
        %v1193 = vld [vmem:[%s220 + $0x1a98] sm:$0xff]
        %v1194 = vld [vmem:[%s220 + $0x1aa0] sm:$0xff]
        %v1195 = vld [vmem:[%s220 + $0x1aa8] sm:$0xff]
        %v1196 = vld [vmem:[%s220 + $0x1ab0] sm:$0xff]
        %v1197 = vld [vmem:[%s220 + $0x1ab8] sm:$0xff]
        %v1198 = vld [vmem:[%s220 + $0x1ac0] sm:$0xff]
        %v1199 = vld [vmem:[%s220 + $0x1ac8] sm:$0xff]
        %v1200 = vld [vmem:[%s220 + $0x1ad0] sm:$0xff]
        %v1201 = vld [vmem:[%s220 + $0x1ad8] sm:$0xff]
        %v1202 = vld [vmem:[%s220 + $0x1ae0] sm:$0xff]
        %v1203 = vld [vmem:[%s220 + $0x1ae8] sm:$0xff]
        %v1204 = vld [vmem:[%s220 + $0x1af0] sm:$0xff]
        %v1205 = vld [vmem:[%s220 + $0x1af8] sm:$0xff]
        %v1206 = vld [vmem:[%s220 + $0x1b00] sm:$0xff]
        %v1207 = vld [vmem:[%s220 + $0x1b08] sm:$0xff]
        %v1208 = vld [vmem:[%s220 + $0x1b10] sm:$0xff]
        %v1209 = vld [vmem:[%s220 + $0x1b18] sm:$0xff]
        %v1210 = vld [vmem:[%s220 + $0x1b20] sm:$0xff]
        %v1211 = vld [vmem:[%s220 + $0x1b28] sm:$0xff]
        %v1212 = vld [vmem:[%s220 + $0x1b30] sm:$0xff]
        %v1213 = vld [vmem:[%s220 + $0x1b38] sm:$0xff]
        %v1214 = vld [vmem:[%s220 + $0x1b40] sm:$0xff]
        %v1215 = vld [vmem:[%s220 + $0x1b48] sm:$0xff]
        %v1216 = vld [vmem:[%s220 + $0x1b50] sm:$0xff]
        %v1217 = vld [vmem:[%s220 + $0x1b58] sm:$0xff]
        %v1218 = vld [vmem:[%s220 + $0x1b60] sm:$0xff]
        %v1219 = vld [vmem:[%s220 + $0x1b68] sm:$0xff]
        %v1220 = vld [vmem:[%s220 + $0x1b70] sm:$0xff]
        %v1221 = vld [vmem:[%s220 + $0x1b78] sm:$0xff]
        %v1222 = vld [vmem:[%s220 + $0x1b80] sm:$0xff]
        %v1223 = vld [vmem:[%s220 + $0x1b88] sm:$0xff]
        %v1224 = vld [vmem:[%s220 + $0x1b90] sm:$0xff]
        %v1225 = vld [vmem:[%s220 + $0x1b98] sm:$0xff]
        %v1226 = vld [vmem:[%s220 + $0x1ba0] sm:$0xff]
        %v1227 = vld [vmem:[%s220 + $0x1ba8] sm:$0xff]
        %v1228 = vld [vmem:[%s220 + $0x1bb0] sm:$0xff]
        %v1229 = vld [vmem:[%s220 + $0x1bb8] sm:$0xff]
        %v1230 = vld [vmem:[%s220 + $0x1bc0] sm:$0xff]
        %v1231 = vld [vmem:[%s220 + $0x1bc8] sm:$0xff]
        %v1232 = vld [vmem:[%s220 + $0x1bd0] sm:$0xff]
        %v1233 = vld [vmem:[%s220 + $0x1bd8] sm:$0xff]
        %v1234 = vld [vmem:[%s220 + $0x1be0] sm:$0xff]
        %v1235 = vld [vmem:[%s220 + $0x1be8] sm:$0xff]
        %v1236 = vld [vmem:[%s220 + $0x1bf0] sm:$0xff]
        %v1237 = vld [vmem:[%s220 + $0x1bf8] sm:$0xff]
        %v1238 = vld [vmem:[%s220 + $0x1c00] sm:$0xff]
        %v1239 = vld [vmem:[%s220 + $0x1c08] sm:$0xff]
        %v1240 = vld [vmem:[%s220 + $0x1c10] sm:$0xff]
        %v1241 = vld [vmem:[%s220 + $0x1c18] sm:$0xff]
        %v1242 = vld [vmem:[%s220 + $0x1c20] sm:$0xff]
        %v1243 = vld [vmem:[%s220 + $0x1c28] sm:$0xff]
        %v1244 = vld [vmem:[%s220 + $0x1c30] sm:$0xff]
        %v1245 = vld [vmem:[%s220 + $0x1c38] sm:$0xff]
        %v1246 = vld [vmem:[%s220 + $0x1c40] sm:$0xff]
        %v1247 = vld [vmem:[%s220 + $0x1c48] sm:$0xff]
        %v1248 = vld [vmem:[%s220 + $0x1c50] sm:$0xff]
        %v1249 = vld [vmem:[%s220 + $0x1c58] sm:$0xff]
        %v1250 = vld [vmem:[%s220 + $0x1c60] sm:$0xff]
        %v1251 = vld [vmem:[%s220 + $0x1c68] sm:$0xff]
        %v1252 = vld [vmem:[%s220 + $0x1c70] sm:$0xff]
        %v1253 = vld [vmem:[%s220 + $0x1c78] sm:$0xff]
        %v1254 = vld [vmem:[%s220 + $0x1c80] sm:$0xff]
        %v1255 = vld [vmem:[%s220 + $0x1c88] sm:$0xff]
        %v1256 = vld [vmem:[%s220 + $0x1c90] sm:$0xff]
        %v1257 = vld [vmem:[%s220 + $0x1c98] sm:$0xff]
        %v1258 = vld [vmem:[%s220 + $0x1ca0] sm:$0xff]
        %v1259 = vld [vmem:[%s220 + $0x1ca8] sm:$0xff]
        %v1260 = vld [vmem:[%s220 + $0x1cb0] sm:$0xff]
        %v1261 = vld [vmem:[%s220 + $0x1cb8] sm:$0xff]
        %v1262 = vld [vmem:[%s220 + $0x1cc0] sm:$0xff]
        %v1263 = vld [vmem:[%s220 + $0x1cc8] sm:$0xff]
        %v1264 = vld [vmem:[%s220 + $0x1cd0] sm:$0xff]
        %v1265 = vld [vmem:[%s220 + $0x1cd8] sm:$0xff]
        %v1266 = vld [vmem:[%s220 + $0x1ce0] sm:$0xff]
        %v1267 = vld [vmem:[%s220 + $0x1ce8] sm:$0xff]
        %v1268 = vld [vmem:[%s220 + $0x1cf0] sm:$0xff]
        %v1269 = vld [vmem:[%s220 + $0x1cf8] sm:$0xff]
        %v1270 = vld [vmem:[%s220 + $0x1d00] sm:$0xff]
        %v1271 = vld [vmem:[%s220 + $0x1d08] sm:$0xff]
        %v1272 = vld [vmem:[%s220 + $0x1d10] sm:$0xff]
        %v1273 = vld [vmem:[%s220 + $0x1d18] sm:$0xff]
        %v1274 = vld [vmem:[%s220 + $0x1d20] sm:$0xff]
        %v1275 = vld [vmem:[%s220 + $0x1d28] sm:$0xff]
        %v1276 = vld [vmem:[%s220 + $0x1d30] sm:$0xff]
        %v1277 = vld [vmem:[%s220 + $0x1d38] sm:$0xff]
        %v1278 = vld [vmem:[%s220 + $0x1d40] sm:$0xff]
        %v1279 = vld [vmem:[%s220 + $0x1d48] sm:$0xff]
        %v1280 = vld [vmem:[%s220 + $0x1d50] sm:$0xff]
        %v1281 = vld [vmem:[%s220 + $0x1d58] sm:$0xff]
        %v1282 = vld [vmem:[%s220 + $0x1d60] sm:$0xff]
        %v1283 = vld [vmem:[%s220 + $0x1d68] sm:$0xff]
        %v1284 = vld [vmem:[%s220 + $0x1d70] sm:$0xff]
        %v1285 = vld [vmem:[%s220 + $0x1d78] sm:$0xff]
        %v1286 = vld [vmem:[%s220 + $0x1d80] sm:$0xff]
        %v1287 = vld [vmem:[%s220 + $0x1d88] sm:$0xff]
        %v1288 = vld [vmem:[%s220 + $0x1d90] sm:$0xff]
        %v1289 = vld [vmem:[%s220 + $0x1d98] sm:$0xff]
        %v1290 = vld [vmem:[%s220 + $0x1da0] sm:$0xff]
        %v1291 = vld [vmem:[%s220 + $0x1da8] sm:$0xff]
        %v1292 = vld [vmem:[%s220 + $0x1db0] sm:$0xff]
        %v1293 = vld [vmem:[%s220 + $0x1db8] sm:$0xff]
        %v1294 = vld [vmem:[%s220 + $0x1dc0] sm:$0xff]
        %v1295 = vld [vmem:[%s220 + $0x1dc8] sm:$0xff]
        %v1296 = vld [vmem:[%s220 + $0x1dd0] sm:$0xff]
        %v1297 = vld [vmem:[%s220 + $0x1dd8] sm:$0xff]
        %v1298 = vld [vmem:[%s220 + $0x1de0] sm:$0xff]
        %v1299 = vld [vmem:[%s220 + $0x1de8] sm:$0xff]
        %v1300 = vld [vmem:[%s220 + $0x1df0] sm:$0xff]
        %v1301 = vld [vmem:[%s220 + $0x1df8] sm:$0xff]
        %v1302 = vld [vmem:[%s220 + $0x1e00] sm:$0xff]
        %v1303 = vld [vmem:[%s220 + $0x1e08] sm:$0xff]
        %v1304 = vld [vmem:[%s220 + $0x1e10] sm:$0xff]
        %v1305 = vld [vmem:[%s220 + $0x1e18] sm:$0xff]
        %v1306 = vld [vmem:[%s220 + $0x1e20] sm:$0xff]
        %v1307 = vld [vmem:[%s220 + $0x1e28] sm:$0xff]
        %v1308 = vld [vmem:[%s220 + $0x1e30] sm:$0xff]
        %v1309 = vld [vmem:[%s220 + $0x1e38] sm:$0xff]
        %v1310 = vld [vmem:[%s220 + $0x1e40] sm:$0xff]
        %v1311 = vld [vmem:[%s220 + $0x1e48] sm:$0xff]
        %v1312 = vld [vmem:[%s220 + $0x1e50] sm:$0xff]
        %v1313 = vld [vmem:[%s220 + $0x1e58] sm:$0xff]
        %v1314 = vld [vmem:[%s220 + $0x1e60] sm:$0xff]
        %v1315 = vld [vmem:[%s220 + $0x1e68] sm:$0xff]
        %v1316 = vld [vmem:[%s220 + $0x1e70] sm:$0xff]
        %v1317 = vld [vmem:[%s220 + $0x1e78] sm:$0xff]
        %v1318 = vld [vmem:[%s220 + $0x1e80] sm:$0xff]
        %v1319 = vld [vmem:[%s220 + $0x1e88] sm:$0xff]
        %v1320 = vld [vmem:[%s220 + $0x1e90] sm:$0xff]
        %v1321 = vld [vmem:[%s220 + $0x1e98] sm:$0xff]
        %v1322 = vld [vmem:[%s220 + $0x1ea0] sm:$0xff]
        %v1323 = vld [vmem:[%s220 + $0x1ea8] sm:$0xff]
        %v1324 = vld [vmem:[%s220 + $0x1eb0] sm:$0xff]
        %v1325 = vld [vmem:[%s220 + $0x1eb8] sm:$0xff]
        %v1326 = vld [vmem:[%s220 + $0x1ec0] sm:$0xff]
        %v1327 = vld [vmem:[%s220 + $0x1ec8] sm:$0xff]
        %v1328 = vld [vmem:[%s220 + $0x1ed0] sm:$0xff]
        %v1329 = vld [vmem:[%s220 + $0x1ed8] sm:$0xff]
        %v1330 = vld [vmem:[%s220 + $0x1ee0] sm:$0xff]
        %v1331 = vld [vmem:[%s220 + $0x1ee8] sm:$0xff]
        %v1332 = vld [vmem:[%s220 + $0x1ef0] sm:$0xff]
        %v1333 = vld [vmem:[%s220 + $0x1ef8] sm:$0xff]
        %v1334 = vld [vmem:[%s220 + $0x1f00] sm:$0xff]
        %v1335 = vld [vmem:[%s220 + $0x1f08] sm:$0xff]
        %v1336 = vld [vmem:[%s220 + $0x1f10] sm:$0xff]
        %v1337 = vld [vmem:[%s220 + $0x1f18] sm:$0xff]
        %v1338 = vld [vmem:[%s220 + $0x1f20] sm:$0xff]
        %v1339 = vld [vmem:[%s220 + $0x1f28] sm:$0xff]
        %v1340 = vld [vmem:[%s220 + $0x1f30] sm:$0xff]
        %v1341 = vld [vmem:[%s220 + $0x1f38] sm:$0xff]
        %v1342 = vld [vmem:[%s220 + $0x1f40] sm:$0xff]
        %v1343 = vld [vmem:[%s220 + $0x1f48] sm:$0xff]
        %v1344 = vld [vmem:[%s220 + $0x1f50] sm:$0xff]
        %v1345 = vld [vmem:[%s220 + $0x1f58] sm:$0xff]
        %v1346 = vld [vmem:[%s220 + $0x1f60] sm:$0xff]
        %v1347 = vld [vmem:[%s220 + $0x1f68] sm:$0xff]
        %v1348 = vld [vmem:[%s220 + $0x1f70] sm:$0xff]
        %v1349 = vld [vmem:[%s220 + $0x1f78] sm:$0xff]
        %v1350 = vld [vmem:[%s220 + $0x1f80] sm:$0xff]
        %v1351 = vld [vmem:[%s220 + $0x1f88] sm:$0xff]
        %v1352 = vld [vmem:[%s220 + $0x1f90] sm:$0xff]
        %v1353 = vld [vmem:[%s220 + $0x1f98] sm:$0xff]
        %v1354 = vld [vmem:[%s220 + $0x1fa0] sm:$0xff]
        %v1355 = vld [vmem:[%s220 + $0x1fa8] sm:$0xff]
        %v1356 = vld [vmem:[%s220 + $0x1fb0] sm:$0xff]
        %v1357 = vld [vmem:[%s220 + $0x1fb8] sm:$0xff]
        %v1358 = vld [vmem:[%s220 + $0x1fc0] sm:$0xff]
        %v1359 = vld [vmem:[%s220 + $0x1fc8] sm:$0xff]
        %v1360 = vld [vmem:[%s220 + $0x1fd0] sm:$0xff]
        %v1361 = vld [vmem:[%s220 + $0x1fd8] sm:$0xff]
        %v1362 = vld [vmem:[%s220 + $0x1fe0] sm:$0xff]
        %v1363 = vld [vmem:[%s220 + $0x1fe8] sm:$0xff]
        %v1364 = vld [vmem:[%s220 + $0x1ff0] sm:$0xff]
        %v1365 = vld [vmem:[%s220 + $0x1ff8] sm:$0xff]
        %v1366 = vld [vmem:[%s220 + $0x2000] sm:$0xff]
        %v1367 = vld [vmem:[%s220 + $0x2008] sm:$0xff]
        %v1368 = vld [vmem:[%s220 + $0x2010] sm:$0xff]
        %v1369 = vld [vmem:[%s220 + $0x2018] sm:$0xff]
        %v1370 = vld [vmem:[%s220 + $0x2020] sm:$0xff]
        %v1371 = vld [vmem:[%s220 + $0x2028] sm:$0xff]
        %v1372 = vld [vmem:[%s220 + $0x2030] sm:$0xff]
        %v1373 = vld [vmem:[%s220 + $0x2038] sm:$0xff]
        %v1374 = vld [vmem:[%s220 + $0x2040] sm:$0xff]
        %v1375 = vld [vmem:[%s220 + $0x2048] sm:$0xff]
        %v1376 = vld [vmem:[%s220 + $0x2050] sm:$0xff]
        %v1377 = vld [vmem:[%s220 + $0x2058] sm:$0xff]
        %v1378 = vld [vmem:[%s220 + $0x2060] sm:$0xff]
        %v1379 = vld [vmem:[%s220 + $0x2068] sm:$0xff]
        %v1380 = vld [vmem:[%s220 + $0x2070] sm:$0xff]
        %v1381 = vld [vmem:[%s220 + $0x2078] sm:$0xff]
        %v1382 = vld [vmem:[%s220 + $0x2080] sm:$0xff]
        %v1383 = vld [vmem:[%s220 + $0x2088] sm:$0xff]
        %v1384 = vld [vmem:[%s220 + $0x2090] sm:$0xff]
        %v1385 = vld [vmem:[%s220 + $0x2098] sm:$0xff]
        %v1386 = vld [vmem:[%s220 + $0x20a0] sm:$0xff]
        %v1387 = vld [vmem:[%s220 + $0x20a8] sm:$0xff]
        %v1388 = vld [vmem:[%s220 + $0x20b0] sm:$0xff]
        %v1389 = vld [vmem:[%s220 + $0x20b8] sm:$0xff]
        %v1390 = vld [vmem:[%s220 + $0x20c0] sm:$0xff]
        %v1391 = vld [vmem:[%s220 + $0x20c8] sm:$0xff]
        %v1392 = vld [vmem:[%s220 + $0x20d0] sm:$0xff]
        %v1393 = vld [vmem:[%s220 + $0x20d8] sm:$0xff]
        %v1394 = vld [vmem:[%s220 + $0x20e0] sm:$0xff]
        %v1395 = vld [vmem:[%s220 + $0x20e8] sm:$0xff]
        %v1396 = vld [vmem:[%s220 + $0x20f0] sm:$0xff]
        %v1397 = vld [vmem:[%s220 + $0x20f8] sm:$0xff]
        %v1398 = vld [vmem:[%s220 + $0x2100] sm:$0xff]
        %v1399 = vld [vmem:[%s220 + $0x2108] sm:$0xff]
        %v1400 = vld [vmem:[%s220 + $0x2110] sm:$0xff]
        %v1401 = vld [vmem:[%s220 + $0x2118] sm:$0xff]
        %v1402 = vld [vmem:[%s220 + $0x2120] sm:$0xff]
        %v1403 = vld [vmem:[%s220 + $0x2128] sm:$0xff]
        %v1404 = vld [vmem:[%s220 + $0x2130] sm:$0xff]
        %v1405 = vld [vmem:[%s220 + $0x2138] sm:$0xff]
        %v1406 = vld [vmem:[%s220 + $0x2140] sm:$0xff]
        %v1407 = vld [vmem:[%s220 + $0x2148] sm:$0xff]
        %v1408 = vld [vmem:[%s220 + $0x2150] sm:$0xff]
        %v1409 = vld [vmem:[%s220 + $0x2158] sm:$0xff]
        %v1410 = vld [vmem:[%s220 + $0x2160] sm:$0xff]
        %v1411 = vld [vmem:[%s220 + $0x2168] sm:$0xff]
        %v1412 = vld [vmem:[%s220 + $0x2170] sm:$0xff]
        %v1413 = vld [vmem:[%s220 + $0x2178] sm:$0xff]
        %v1414 = vld [vmem:[%s220 + $0x2180] sm:$0xff]
        %v1415 = vld [vmem:[%s220 + $0x2188] sm:$0xff]
        %v1416 = vld [vmem:[%s220 + $0x2190] sm:$0xff]
        %v1417 = vld [vmem:[%s220 + $0x2198] sm:$0xff]
        %v1418 = vld [vmem:[%s220 + $0x21a0] sm:$0xff]
        %v1419 = vld [vmem:[%s220 + $0x21a8] sm:$0xff]
        %v1420 = vld [vmem:[%s220 + $0x21b0] sm:$0xff]
        %v1421 = vld [vmem:[%s220 + $0x21b8] sm:$0xff]
        %v1422 = vld [vmem:[%s220 + $0x21c0] sm:$0xff]
        %v1423 = vld [vmem:[%s220 + $0x21c8] sm:$0xff]
        %v1424 = vld [vmem:[%s220 + $0x21d0] sm:$0xff]
        %v1425 = vld [vmem:[%s220 + $0x21d8] sm:$0xff]
        %v1426 = vld [vmem:[%s220 + $0x21e0] sm:$0xff]
        %v1427 = vld [vmem:[%s220 + $0x21e8] sm:$0xff]
        %v1428 = vld [vmem:[%s220 + $0x21f0] sm:$0xff]
        %v1429 = vld [vmem:[%s220 + $0x21f8] sm:$0xff]
        %v1430 = vld [vmem:[%s220 + $0x2200] sm:$0xff]
        %v1431 = vld [vmem:[%s220 + $0x2208] sm:$0xff]
        %v1432 = vld [vmem:[%s220 + $0x2210] sm:$0xff]
        %v1433 = vld [vmem:[%s220 + $0x2218] sm:$0xff]
        %v1434 = vld [vmem:[%s220 + $0x2220] sm:$0xff]
        %v1435 = vld [vmem:[%s220 + $0x2228] sm:$0xff]
        %v1436 = vld [vmem:[%s220 + $0x2230] sm:$0xff]
        %v1437 = vld [vmem:[%s220 + $0x2238] sm:$0xff]
        %v1438 = vld [vmem:[%s220 + $0x2240] sm:$0xff]
        %v1439 = vld [vmem:[%s220 + $0x2248] sm:$0xff]
        %v1440 = vld [vmem:[%s220 + $0x2250] sm:$0xff]
        %v1441 = vld [vmem:[%s220 + $0x2258] sm:$0xff]
        %v1442 = vld [vmem:[%s220 + $0x2260] sm:$0xff]
        %v1443 = vld [vmem:[%s220 + $0x2268] sm:$0xff]
        %v1444 = vld [vmem:[%s220 + $0x2270] sm:$0xff]
        %v1445 = vld [vmem:[%s220 + $0x2278] sm:$0xff]
        %v1446 = vld [vmem:[%s220 + $0x2280] sm:$0xff]
        %v1447 = vld [vmem:[%s220 + $0x2288] sm:$0xff]
        %v1448 = vld [vmem:[%s220 + $0x2290] sm:$0xff]
        %v1449 = vld [vmem:[%s220 + $0x2298] sm:$0xff]
        %v1450 = vld [vmem:[%s220 + $0x22a0] sm:$0xff]
        %v1451 = vld [vmem:[%s220 + $0x22a8] sm:$0xff]
        %v1452 = vld [vmem:[%s220 + $0x22b0] sm:$0xff]
        %v1453 = vld [vmem:[%s220 + $0x22b8] sm:$0xff]
        %v1454 = vld [vmem:[%s220 + $0x22c0] sm:$0xff]
        %v1455 = vld [vmem:[%s220 + $0x22c8] sm:$0xff]
        %v1456 = vld [vmem:[%s220 + $0x22d0] sm:$0xff]
        %v1457 = vld [vmem:[%s220 + $0x22d8] sm:$0xff]
        %v1458 = vld [vmem:[%s220 + $0x22e0] sm:$0xff]
        %v1459 = vld [vmem:[%s220 + $0x22e8] sm:$0xff]
        %v1460 = vld [vmem:[%s220 + $0x22f0] sm:$0xff]
        %v1461 = vld [vmem:[%s220 + $0x22f8] sm:$0xff]
        %v1462 = vld [vmem:[%s220 + $0x2300] sm:$0xff]
        %v1463 = vld [vmem:[%s220 + $0x2308] sm:$0xff]
        %v1464 = vld [vmem:[%s220 + $0x2310] sm:$0xff]
        %v1465 = vld [vmem:[%s220 + $0x2318] sm:$0xff]
        %v1466 = vld [vmem:[%s220 + $0x2320] sm:$0xff]
        %v1467 = vld [vmem:[%s220 + $0x2328] sm:$0xff]
        %v1468 = vld [vmem:[%s220 + $0x2330] sm:$0xff]
        %v1469 = vld [vmem:[%s220 + $0x2338] sm:$0xff]
        %v1470 = vld [vmem:[%s220 + $0x2340] sm:$0xff]
        %v1471 = vld [vmem:[%s220 + $0x2348] sm:$0xff]
        %v1472 = vld [vmem:[%s220 + $0x2350] sm:$0xff]
        %v1473 = vld [vmem:[%s220 + $0x2358] sm:$0xff]
        %v1474 = vld [vmem:[%s220 + $0x2360] sm:$0xff]
        %v1475 = vld [vmem:[%s220 + $0x2368] sm:$0xff]
        %v1476 = vld [vmem:[%s220 + $0x2370] sm:$0xff]
        %v1477 = vld [vmem:[%s220 + $0x2378] sm:$0xff]
        %v1478 = vld [vmem:[%s220 + $0x2380] sm:$0xff]
        %v1479 = vld [vmem:[%s220 + $0x2388] sm:$0xff]
        %v1480 = vld [vmem:[%s220 + $0x2390] sm:$0xff]
        %v1481 = vld [vmem:[%s220 + $0x2398] sm:$0xff]
        %v1482 = vld [vmem:[%s220 + $0x23a0] sm:$0xff]
        %v1483 = vld [vmem:[%s220 + $0x23a8] sm:$0xff]
        %v1484 = vld [vmem:[%s220 + $0x23b0] sm:$0xff]
        %v1485 = vld [vmem:[%s220 + $0x23b8] sm:$0xff]
        %v1486 = vld [vmem:[%s220 + $0x23c0] sm:$0xff]
        %v1487 = vld [vmem:[%s220 + $0x23c8] sm:$0xff]
        %v1488 = vld [vmem:[%s220 + $0x23d0] sm:$0xff]
        %v1489 = vld [vmem:[%s220 + $0x23d8] sm:$0xff]
        %v1490 = vld [vmem:[%s220 + $0x23e0] sm:$0xff]
        %v1491 = vld [vmem:[%s220 + $0x23e8] sm:$0xff]
        %v1492 = vld [vmem:[%s220 + $0x23f0] sm:$0xff]
        %v1493 = vld [vmem:[%s220 + $0x23f8] sm:$0xff]
        %v1494 = vld [vmem:[%s220 + $0x2400] sm:$0xff]
        %v1495 = vld [vmem:[%s220 + $0x2408] sm:$0xff]
        %v1496 = vld [vmem:[%s220 + $0x2410] sm:$0xff]
        %v1497 = vld [vmem:[%s220 + $0x2418] sm:$0xff]
        %v1498 = vld [vmem:[%s220 + $0x2420] sm:$0xff]
        %v1499 = vld [vmem:[%s220 + $0x2428] sm:$0xff]
        %v1500 = vld [vmem:[%s220 + $0x2430] sm:$0xff]
        %v1501 = vld [vmem:[%s220 + $0x2438] sm:$0xff]
        %v1502 = vld [vmem:[%s220 + $0x2440] sm:$0xff]
        %v1503 = vld [vmem:[%s220 + $0x2448] sm:$0xff]
        %v1504 = vld [vmem:[%s220 + $0x2450] sm:$0xff]
        %v1505 = vld [vmem:[%s220 + $0x2458] sm:$0xff]
        %v1506 = vld [vmem:[%s220 + $0x2460] sm:$0xff]
        %v1507 = vld [vmem:[%s220 + $0x2468] sm:$0xff]
        %v1508 = vld [vmem:[%s220 + $0x2470] sm:$0xff]
        %v1509 = vld [vmem:[%s220 + $0x2478] sm:$0xff]
        %v1510 = vld [vmem:[%s220 + $0x2480] sm:$0xff]
        %v1511 = vld [vmem:[%s220 + $0x2488] sm:$0xff]
        %v1512 = vld [vmem:[%s220 + $0x2490] sm:$0xff]
        %v1513 = vld [vmem:[%s220 + $0x2498] sm:$0xff]
        %v1514 = vld [vmem:[%s220 + $0x24a0] sm:$0xff]
        %v1515 = vld [vmem:[%s220 + $0x24a8] sm:$0xff]
        %v1516 = vld [vmem:[%s220 + $0x24b0] sm:$0xff]
        %v1517 = vld [vmem:[%s220 + $0x24b8] sm:$0xff]
        %v1518 = vld [vmem:[%s220 + $0x24c0] sm:$0xff]
        %v1519 = vld [vmem:[%s220 + $0x24c8] sm:$0xff]
        %v1520 = vld [vmem:[%s220 + $0x24d0] sm:$0xff]
        %v1521 = vld [vmem:[%s220 + $0x24d8] sm:$0xff]
        %v1522 = vld [vmem:[%s220 + $0x24e0] sm:$0xff]
        %v1523 = vld [vmem:[%s220 + $0x24e8] sm:$0xff]
        %v1524 = vld [vmem:[%s220 + $0x24f0] sm:$0xff]
        %v1525 = vld [vmem:[%s220 + $0x24f8] sm:$0xff]
        %v1526 = vld [vmem:[%s220 + $0x2500] sm:$0xff]
        %v1527 = vld [vmem:[%s220 + $0x2508] sm:$0xff]
        %v1528 = vld [vmem:[%s220 + $0x2510] sm:$0xff]
        %v1529 = vld [vmem:[%s220 + $0x2518] sm:$0xff]
        %v1530 = vld [vmem:[%s220 + $0x2520] sm:$0xff]
        %v1531 = vld [vmem:[%s220 + $0x2528] sm:$0xff]
        %v1532 = vld [vmem:[%s220 + $0x2530] sm:$0xff]
        %v1533 = vld [vmem:[%s220 + $0x2538] sm:$0xff]
        %v1534 = vld [vmem:[%s220 + $0x2540] sm:$0xff]
        %v1535 = vld [vmem:[%s220 + $0x2548] sm:$0xff]
        %v1536 = vld [vmem:[%s220 + $0x2550] sm:$0xff]
        %v1537 = vld [vmem:[%s220 + $0x2558] sm:$0xff]
        %v1538 = vld [vmem:[%s220 + $0x2560] sm:$0xff]
        %v1539 = vld [vmem:[%s220 + $0x2568] sm:$0xff]
        %v1540 = vld [vmem:[%s220 + $0x2570] sm:$0xff]
        %v1541 = vld [vmem:[%s220 + $0x2578] sm:$0xff]
        %v1542 = vld [vmem:[%s220 + $0x2580] sm:$0xff]
        %v1543 = vld [vmem:[%s220 + $0x2588] sm:$0xff]
        %v1544 = vld [vmem:[%s220 + $0x2590] sm:$0xff]
        %v1545 = vld [vmem:[%s220 + $0x2598] sm:$0xff]
        %v1546 = vld [vmem:[%s220 + $0x25a0] sm:$0xff]
        %v1547 = vld [vmem:[%s220 + $0x25a8] sm:$0xff]
        %v1548 = vld [vmem:[%s220 + $0x25b0] sm:$0xff]
        %v1549 = vld [vmem:[%s220 + $0x25b8] sm:$0xff]
        %v1550 = vld [vmem:[%s220 + $0x25c0] sm:$0xff]
        %v1551 = vld [vmem:[%s220 + $0x25c8] sm:$0xff]
        %v1552 = vld [vmem:[%s220 + $0x25d0] sm:$0xff]
        %v1553 = vld [vmem:[%s220 + $0x25d8] sm:$0xff]
        %v1554 = vld [vmem:[%s220 + $0x25e0] sm:$0xff]
        %v1555 = vld [vmem:[%s220 + $0x25e8] sm:$0xff]
        %v1556 = vld [vmem:[%s220 + $0x25f0] sm:$0xff]
        %v1557 = vld [vmem:[%s220 + $0x25f8] sm:$0xff]
        %v1558 = vld [vmem:[%s220 + $0x2600] sm:$0xff]
        %v1559 = vld [vmem:[%s220 + $0x2608] sm:$0xff]
        %v1560 = vld [vmem:[%s220 + $0x2610] sm:$0xff]
        %v1561 = vld [vmem:[%s220 + $0x2618] sm:$0xff]
        %v1562 = vld [vmem:[%s220 + $0x2620] sm:$0xff]
        %v1563 = vld [vmem:[%s220 + $0x2628] sm:$0xff]
        %v1564 = vld [vmem:[%s220 + $0x2630] sm:$0xff]
        %v1565 = vld [vmem:[%s220 + $0x2638] sm:$0xff]
        %v1566 = vld [vmem:[%s220 + $0x2640] sm:$0xff]
        %v1567 = vld [vmem:[%s220 + $0x2648] sm:$0xff]
        %v1568 = vld [vmem:[%s220 + $0x2650] sm:$0xff]
        %v1569 = vld [vmem:[%s220 + $0x2658] sm:$0xff]
        %v1570 = vld [vmem:[%s220 + $0x2660] sm:$0xff]
        %v1571 = vld [vmem:[%s220 + $0x2668] sm:$0xff]
        %v1572 = vld [vmem:[%s220 + $0x2670] sm:$0xff]
        %v1573 = vld [vmem:[%s220 + $0x2678] sm:$0xff]
        %v1574 = vld [vmem:[%s220 + $0x2680] sm:$0xff]
        %v1575 = vld [vmem:[%s220 + $0x2688] sm:$0xff]
        %v1576 = vld [vmem:[%s220 + $0x2690] sm:$0xff]
        %v1577 = vld [vmem:[%s220 + $0x2698] sm:$0xff]
        %v1578 = vld [vmem:[%s220 + $0x26a0] sm:$0xff]
        %v1579 = vld [vmem:[%s220 + $0x26a8] sm:$0xff]
        %v1580 = vld [vmem:[%s220 + $0x26b0] sm:$0xff]
        %v1581 = vld [vmem:[%s220 + $0x26b8] sm:$0xff]
        %v1582 = vld [vmem:[%s220 + $0x26c0] sm:$0xff]
        %v1583 = vld [vmem:[%s220 + $0x26c8] sm:$0xff]
        %v1584 = vld [vmem:[%s220 + $0x26d0] sm:$0xff]
        %v1585 = vld [vmem:[%s220 + $0x26d8] sm:$0xff]
        %v1586 = vld [vmem:[%s220 + $0x26e0] sm:$0xff]
        %v1587 = vld [vmem:[%s220 + $0x26e8] sm:$0xff]
        %v1588 = vld [vmem:[%s220 + $0x26f0] sm:$0xff]
        %v1589 = vld [vmem:[%s220 + $0x26f8] sm:$0xff]
        %v1590 = vld [vmem:[%s220 + $0x2700] sm:$0xff]
        %v1591 = vld [vmem:[%s220 + $0x2708] sm:$0xff]
        %v1592 = vld [vmem:[%s220 + $0x2710] sm:$0xff]
        %v1593 = vld [vmem:[%s220 + $0x2718] sm:$0xff]
        %v1594 = vld [vmem:[%s220 + $0x2720] sm:$0xff]
        %v1595 = vld [vmem:[%s220 + $0x2728] sm:$0xff]
        %v1596 = vld [vmem:[%s220 + $0x2730] sm:$0xff]
        %v1597 = vld [vmem:[%s220 + $0x2738] sm:$0xff]
        %v1598 = vld [vmem:[%s220 + $0x2740] sm:$0xff]
        %v1599 = vld [vmem:[%s220 + $0x2748] sm:$0xff]
        %v1600 = vld [vmem:[%s220 + $0x2750] sm:$0xff]
        %v1601 = vld [vmem:[%s220 + $0x2758] sm:$0xff]
        %v1602 = vld [vmem:[%s220 + $0x2760] sm:$0xff]
        %v1603 = vld [vmem:[%s220 + $0x2768] sm:$0xff]
        %v1604 = vld [vmem:[%s220 + $0x2770] sm:$0xff]
        %v1605 = vld [vmem:[%s220 + $0x2778] sm:$0xff]
        %v1606 = vld [vmem:[%s220 + $0x2780] sm:$0xff]
        %v1607 = vld [vmem:[%s220 + $0x2788] sm:$0xff]
        %v1608 = vld [vmem:[%s220 + $0x2790] sm:$0xff]
        %v1609 = vld [vmem:[%s220 + $0x2798] sm:$0xff]
        %v1610 = vld [vmem:[%s220 + $0x27a0] sm:$0xff]
        %v1611 = vld [vmem:[%s220 + $0x27a8] sm:$0xff]
        %v1612 = vld [vmem:[%s220 + $0x27b0] sm:$0xff]
        %v1613 = vld [vmem:[%s220 + $0x27b8] sm:$0xff]
        %v1614 = vld [vmem:[%s220 + $0x27c0] sm:$0xff]
        %v1615 = vld [vmem:[%s220 + $0x27c8] sm:$0xff]
        %v1616 = vld [vmem:[%s220 + $0x27d0] sm:$0xff]
        %v1617 = vld [vmem:[%s220 + $0x27d8] sm:$0xff]
        %v1618 = vld [vmem:[%s220 + $0x27e0] sm:$0xff]
        %v1619 = vld [vmem:[%s220 + $0x27e8] sm:$0xff]
        %v1620 = vld [vmem:[%s220 + $0x27f0] sm:$0xff]
        %v1621 = vld [vmem:[%s220 + $0x27f8] sm:$0xff]
        %v1622 = vld [vmem:[%s220 + $0x2800] sm:$0xff]
        %v1623 = vld [vmem:[%s220 + $0x2808] sm:$0xff]
        %v1624 = vld [vmem:[%s220 + $0x2810] sm:$0xff]
        %v1625 = vld [vmem:[%s220 + $0x2818] sm:$0xff]
        %v1626 = vld [vmem:[%s220 + $0x2820] sm:$0xff]
        %v1627 = vld [vmem:[%s220 + $0x2828] sm:$0xff]
        %v1628 = vld [vmem:[%s220 + $0x2830] sm:$0xff]
        %v1629 = vld [vmem:[%s220 + $0x2838] sm:$0xff]
        %v1630 = vld [vmem:[%s220 + $0x2840] sm:$0xff]
        %v1631 = vld [vmem:[%s220 + $0x2848] sm:$0xff]
        %v1632 = vld [vmem:[%s220 + $0x2850] sm:$0xff]
        %v1633 = vld [vmem:[%s220 + $0x2858] sm:$0xff]
        %v1634 = vld [vmem:[%s220 + $0x2860] sm:$0xff]
        %v1635 = vld [vmem:[%s220 + $0x2868] sm:$0xff]
        %v1636 = vld [vmem:[%s220 + $0x2870] sm:$0xff]
        %v1637 = vld [vmem:[%s220 + $0x2878] sm:$0xff]
        %v1638 = vld [vmem:[%s220 + $0x2880] sm:$0xff]
        %v1639 = vld [vmem:[%s220 + $0x2888] sm:$0xff]
        %v1640 = vld [vmem:[%s220 + $0x2890] sm:$0xff]
        %v1641 = vld [vmem:[%s220 + $0x2898] sm:$0xff]
        %v1642 = vld [vmem:[%s220 + $0x28a0] sm:$0xff]
        %v1643 = vld [vmem:[%s220 + $0x28a8] sm:$0xff]
        %v1644 = vld [vmem:[%s220 + $0x28b0] sm:$0xff]
        %v1645 = vld [vmem:[%s220 + $0x28b8] sm:$0xff]
        %v1646 = vld [vmem:[%s220 + $0x28c0] sm:$0xff]
        %v1647 = vld [vmem:[%s220 + $0x28c8] sm:$0xff]
        %v1648 = vld [vmem:[%s220 + $0x28d0] sm:$0xff]
        %v1649 = vld [vmem:[%s220 + $0x28d8] sm:$0xff]
        %v1650 = vld [vmem:[%s220 + $0x28e0] sm:$0xff]
        %v1651 = vld [vmem:[%s220 + $0x28e8] sm:$0xff]
        %v1652 = vld [vmem:[%s220 + $0x28f0] sm:$0xff]
        %v1653 = vld [vmem:[%s220 + $0x28f8] sm:$0xff]
        %v1654 = vld [vmem:[%s220 + $0x2900] sm:$0xff]
        %v1655 = vld [vmem:[%s220 + $0x2908] sm:$0xff]
        %v1656 = vld [vmem:[%s220 + $0x2910] sm:$0xff]
        %v1657 = vld [vmem:[%s220 + $0x2918] sm:$0xff]
        %v1658 = vld [vmem:[%s220 + $0x2920] sm:$0xff]
        %v1659 = vld [vmem:[%s220 + $0x2928] sm:$0xff]
        %v1660 = vld [vmem:[%s220 + $0x2930] sm:$0xff]
        %v1661 = vld [vmem:[%s220 + $0x2938] sm:$0xff]
        %v1662 = vld [vmem:[%s220 + $0x2940] sm:$0xff]
        %v1663 = vld [vmem:[%s220 + $0x2948] sm:$0xff]
        %v1664 = vld [vmem:[%s220 + $0x2950] sm:$0xff]
        %v1665 = vld [vmem:[%s220 + $0x2958] sm:$0xff]
        %v1666 = vld [vmem:[%s220 + $0x2960] sm:$0xff]
        %v1667 = vld [vmem:[%s220 + $0x2968] sm:$0xff]
        %v1668 = vld [vmem:[%s220 + $0x2970] sm:$0xff]
        %v1669 = vld [vmem:[%s220 + $0x2978] sm:$0xff]
        %v1670 = vld [vmem:[%s220 + $0x2980] sm:$0xff]
        %v1671 = vld [vmem:[%s220 + $0x2988] sm:$0xff]
        %v1672 = vld [vmem:[%s220 + $0x2990] sm:$0xff]
        %v1673 = vld [vmem:[%s220 + $0x2998] sm:$0xff]
        %v1674 = vld [vmem:[%s220 + $0x29a0] sm:$0xff]
        %v1675 = vld [vmem:[%s220 + $0x29a8] sm:$0xff]
        %v1676 = vld [vmem:[%s220 + $0x29b0] sm:$0xff]
        %v1677 = vld [vmem:[%s220 + $0x29b8] sm:$0xff]
        %v1678 = vld [vmem:[%s220 + $0x29c0] sm:$0xff]
        %v1679 = vld [vmem:[%s220 + $0x29c8] sm:$0xff]
        %v1680 = vld [vmem:[%s220 + $0x29d0] sm:$0xff]
        %v1681 = vld [vmem:[%s220 + $0x29d8] sm:$0xff]
        %v1682 = vld [vmem:[%s220 + $0x29e0] sm:$0xff]
        %v1683 = vld [vmem:[%s220 + $0x29e8] sm:$0xff]
        %v1684 = vld [vmem:[%s220 + $0x29f0] sm:$0xff]
        %v1685 = vld [vmem:[%s220 + $0x29f8] sm:$0xff]
        %v1686 = vld [vmem:[%s220 + $0x2a00] sm:$0xff]
        %v1687 = vld [vmem:[%s220 + $0x2a08] sm:$0xff]
        %v1688 = vld [vmem:[%s220 + $0x2a10] sm:$0xff]
        %v1689 = vld [vmem:[%s220 + $0x2a18] sm:$0xff]
        %v1690 = vld [vmem:[%s220 + $0x2a20] sm:$0xff]
        %v1691 = vld [vmem:[%s220 + $0x2a28] sm:$0xff]
        %v1692 = vld [vmem:[%s220 + $0x2a30] sm:$0xff]
        %v1693 = vld [vmem:[%s220 + $0x2a38] sm:$0xff]
        %v1694 = vld [vmem:[%s220 + $0x2a40] sm:$0xff]
        %v1695 = vld [vmem:[%s220 + $0x2a48] sm:$0xff]
        %v1696 = vld [vmem:[%s220 + $0x2a50] sm:$0xff]
        %v1697 = vld [vmem:[%s220 + $0x2a58] sm:$0xff]
        %v1698 = vld [vmem:[%s220 + $0x2a60] sm:$0xff]
        %v1699 = vld [vmem:[%s220 + $0x2a68] sm:$0xff]
        %v1700 = vld [vmem:[%s220 + $0x2a70] sm:$0xff]
        %v1701 = vld [vmem:[%s220 + $0x2a78] sm:$0xff]
        %v1702 = vld [vmem:[%s220 + $0x2a80] sm:$0xff]
        %v1703 = vld [vmem:[%s220 + $0x2a88] sm:$0xff]
        %v1704 = vld [vmem:[%s220 + $0x2a90] sm:$0xff]
        %v1705 = vld [vmem:[%s220 + $0x2a98] sm:$0xff]
        %v1706 = vld [vmem:[%s220 + $0x2aa0] sm:$0xff]
        %v1707 = vld [vmem:[%s220 + $0x2aa8] sm:$0xff]
        %v1708 = vld [vmem:[%s220 + $0x2ab0] sm:$0xff]
        %v1709 = vld [vmem:[%s220 + $0x2ab8] sm:$0xff]
        %v1710 = vld [vmem:[%s220 + $0x2ac0] sm:$0xff]
        %v1711 = vld [vmem:[%s220 + $0x2ac8] sm:$0xff]
        %v1712 = vld [vmem:[%s220 + $0x2ad0] sm:$0xff]
        %v1713 = vld [vmem:[%s220 + $0x2ad8] sm:$0xff]
        %v1714 = vld [vmem:[%s220 + $0x2ae0] sm:$0xff]
        %v1715 = vld [vmem:[%s220 + $0x2ae8] sm:$0xff]
        %v1716 = vld [vmem:[%s220 + $0x2af0] sm:$0xff]
        %v1717 = vld [vmem:[%s220 + $0x2af8] sm:$0xff]
        %v1718 = vld [vmem:[%s220 + $0x2b00] sm:$0xff]
        %v1719 = vld [vmem:[%s220 + $0x2b08] sm:$0xff]
        %v1720 = vld [vmem:[%s220 + $0x2b10] sm:$0xff]
        %v1721 = vld [vmem:[%s220 + $0x2b18] sm:$0xff]
        %v1722 = vld [vmem:[%s220 + $0x2b20] sm:$0xff]
        %v1723 = vld [vmem:[%s220 + $0x2b28] sm:$0xff]
        %v1724 = vld [vmem:[%s220 + $0x2b30] sm:$0xff]
        %v1725 = vld [vmem:[%s220 + $0x2b38] sm:$0xff]
        %v1726 = vld [vmem:[%s220 + $0x2b40] sm:$0xff]
        %v1727 = vld [vmem:[%s220 + $0x2b48] sm:$0xff]
        %v1728 = vld [vmem:[%s220 + $0x2b50] sm:$0xff]
        %v1729 = vld [vmem:[%s220 + $0x2b58] sm:$0xff]
        %v1730 = vld [vmem:[%s220 + $0x2b60] sm:$0xff]
        %v1731 = vld [vmem:[%s220 + $0x2b68] sm:$0xff]
        %v1732 = vld [vmem:[%s220 + $0x2b70] sm:$0xff]
        %v1733 = vld [vmem:[%s220 + $0x2b78] sm:$0xff]
        %v1734 = vld [vmem:[%s220 + $0x2b80] sm:$0xff]
        %v1735 = vld [vmem:[%s220 + $0x2b88] sm:$0xff]
        %v1736 = vld [vmem:[%s220 + $0x2b90] sm:$0xff]
        %v1737 = vld [vmem:[%s220 + $0x2b98] sm:$0xff]
        %v1738 = vld [vmem:[%s220 + $0x2ba0] sm:$0xff]
        %v1739 = vld [vmem:[%s220 + $0x2ba8] sm:$0xff]
        %v1740 = vld [vmem:[%s220 + $0x2bb0] sm:$0xff]
        %v1741 = vld [vmem:[%s220 + $0x2bb8] sm:$0xff]
        %v1742 = vld [vmem:[%s220 + $0x2bc0] sm:$0xff]
        %v1743 = vld [vmem:[%s220 + $0x2bc8] sm:$0xff]
        %v1744 = vld [vmem:[%s220 + $0x2bd0] sm:$0xff]
        %v1745 = vld [vmem:[%s220 + $0x2bd8] sm:$0xff]
        %v1746 = vld [vmem:[%s220 + $0x2be0] sm:$0xff]
        %v1747 = vld [vmem:[%s220 + $0x2be8] sm:$0xff]
        %v1748 = vld [vmem:[%s220 + $0x2bf0] sm:$0xff]
        %v1749 = vld [vmem:[%s220 + $0x2bf8] sm:$0xff]
        %v1750 = vld [vmem:[%s220 + $0x2c00] sm:$0xff]
        %v1751 = vld [vmem:[%s220 + $0x2c08] sm:$0xff]
        %v1752 = vld [vmem:[%s220 + $0x2c10] sm:$0xff]
        %v1753 = vld [vmem:[%s220 + $0x2c18] sm:$0xff]
        %v1754 = vld [vmem:[%s220 + $0x2c20] sm:$0xff]
        %v1755 = vld [vmem:[%s220 + $0x2c28] sm:$0xff]
        %v1756 = vld [vmem:[%s220 + $0x2c30] sm:$0xff]
        %v1757 = vld [vmem:[%s220 + $0x2c38] sm:$0xff]
        %v1758 = vld [vmem:[%s220 + $0x2c40] sm:$0xff]
        %v1759 = vld [vmem:[%s220 + $0x2c48] sm:$0xff]
        %v1760 = vld [vmem:[%s220 + $0x2c50] sm:$0xff]
        %v1761 = vld [vmem:[%s220 + $0x2c58] sm:$0xff]
        %v1762 = vld [vmem:[%s220 + $0x2c60] sm:$0xff]
        %v1763 = vld [vmem:[%s220 + $0x2c68] sm:$0xff]
        %v1764 = vld [vmem:[%s220 + $0x2c70] sm:$0xff]
        %v1765 = vld [vmem:[%s220 + $0x2c78] sm:$0xff]
        %v1766 = vld [vmem:[%s220 + $0x2c80] sm:$0xff]
        %v1767 = vld [vmem:[%s220 + $0x2c88] sm:$0xff]
        %v1768 = vld [vmem:[%s220 + $0x2c90] sm:$0xff]
        %v1769 = vld [vmem:[%s220 + $0x2c98] sm:$0xff]
        %v1770 = vld [vmem:[%s220 + $0x2ca0] sm:$0xff]
        %v1771 = vld [vmem:[%s220 + $0x2ca8] sm:$0xff]
        %v1772 = vld [vmem:[%s220 + $0x2cb0] sm:$0xff]
        %v1773 = vld [vmem:[%s220 + $0x2cb8] sm:$0xff]
        %v1774 = vld [vmem:[%s220 + $0x2cc0] sm:$0xff]
        %v1775 = vld [vmem:[%s220 + $0x2cc8] sm:$0xff]
        %v1776 = vld [vmem:[%s220 + $0x2cd0] sm:$0xff]
        %v1777 = vld [vmem:[%s220 + $0x2cd8] sm:$0xff]
        %v1778 = vld [vmem:[%s220 + $0x2ce0] sm:$0xff]
        %v1779 = vld [vmem:[%s220 + $0x2ce8] sm:$0xff]
        %v1780 = vld [vmem:[%s220 + $0x2cf0] sm:$0xff]
        %v1781 = vld [vmem:[%s220 + $0x2cf8] sm:$0xff]
        %v1782 = vld [vmem:[%s220 + $0x2d00] sm:$0xff]
        %v1783 = vld [vmem:[%s220 + $0x2d08] sm:$0xff]
        %v1784 = vld [vmem:[%s220 + $0x2d10] sm:$0xff]
        %v1785 = vld [vmem:[%s220 + $0x2d18] sm:$0xff]
        %v1786 = vld [vmem:[%s220 + $0x2d20] sm:$0xff]
        %v1787 = vld [vmem:[%s220 + $0x2d28] sm:$0xff]
        %v1788 = vld [vmem:[%s220 + $0x2d30] sm:$0xff]
        %v1789 = vld [vmem:[%s220 + $0x2d38] sm:$0xff]
        %v1790 = vld [vmem:[%s220 + $0x2d40] sm:$0xff]
        %v1791 = vld [vmem:[%s220 + $0x2d48] sm:$0xff]
        %v1792 = vld [vmem:[%s220 + $0x2d50] sm:$0xff]
        %v1793 = vld [vmem:[%s220 + $0x2d58] sm:$0xff]
        %v1794 = vld [vmem:[%s220 + $0x2d60] sm:$0xff]
        %v1795 = vld [vmem:[%s220 + $0x2d68] sm:$0xff]
        %v1796 = vld [vmem:[%s220 + $0x2d70] sm:$0xff]
        %v1797 = vld [vmem:[%s220 + $0x2d78] sm:$0xff]
        %v1798 = vld [vmem:[%s220 + $0x2d80] sm:$0xff]
        %v1799 = vld [vmem:[%s220 + $0x2d88] sm:$0xff]
        %v1800 = vld [vmem:[%s220 + $0x2d90] sm:$0xff]
        %v1801 = vld [vmem:[%s220 + $0x2d98] sm:$0xff]
        %v1802 = vld [vmem:[%s220 + $0x2da0] sm:$0xff]
        %v1803 = vld [vmem:[%s220 + $0x2da8] sm:$0xff]
        %v1804 = vld [vmem:[%s220 + $0x2db0] sm:$0xff]
        %v1805 = vld [vmem:[%s220 + $0x2db8] sm:$0xff]
        %v1806 = vld [vmem:[%s220 + $0x2dc0] sm:$0xff]
        %v1807 = vld [vmem:[%s220 + $0x2dc8] sm:$0xff]
        %v1808 = vld [vmem:[%s220 + $0x2dd0] sm:$0xff]
        %v1809 = vld [vmem:[%s220 + $0x2dd8] sm:$0xff]
        %v1810 = vld [vmem:[%s220 + $0x2de0] sm:$0xff]
        %v1811 = vld [vmem:[%s220 + $0x2de8] sm:$0xff]
        %v1812 = vld [vmem:[%s220 + $0x2df0] sm:$0xff]
        %v1813 = vld [vmem:[%s220 + $0x2df8] sm:$0xff]
        %v1814 = vld [vmem:[%s220 + $0x2e00] sm:$0xff]
        %v1815 = vld [vmem:[%s220 + $0x2e08] sm:$0xff]
        %v1816 = vld [vmem:[%s220 + $0x2e10] sm:$0xff]
        %v1817 = vld [vmem:[%s220 + $0x2e18] sm:$0xff]
        %v1818 = vld [vmem:[%s220 + $0x2e20] sm:$0xff]
        %v1819 = vld [vmem:[%s220 + $0x2e28] sm:$0xff]
        %v1820 = vld [vmem:[%s220 + $0x2e30] sm:$0xff]
        %v1821 = vld [vmem:[%s220 + $0x2e38] sm:$0xff]
        %v1822 = vld [vmem:[%s220 + $0x2e40] sm:$0xff]
        %v1823 = vld [vmem:[%s220 + $0x2e48] sm:$0xff]
        %v1824 = vld [vmem:[%s220 + $0x2e50] sm:$0xff]
        %v1825 = vld [vmem:[%s220 + $0x2e58] sm:$0xff]
        %v1826 = vld [vmem:[%s220 + $0x2e60] sm:$0xff]
        %v1827 = vld [vmem:[%s220 + $0x2e68] sm:$0xff]
        %v1828 = vld [vmem:[%s220 + $0x2e70] sm:$0xff]
        %v1829 = vld [vmem:[%s220 + $0x2e78] sm:$0xff]
        %v1830 = vld [vmem:[%s220 + $0x2e80] sm:$0xff]
        %v1831 = vld [vmem:[%s220 + $0x2e88] sm:$0xff]
        %v1832 = vld [vmem:[%s220 + $0x2e90] sm:$0xff]
        %v1833 = vld [vmem:[%s220 + $0x2e98] sm:$0xff]
        %v1834 = vld [vmem:[%s220 + $0x2ea0] sm:$0xff]
        %v1835 = vld [vmem:[%s220 + $0x2ea8] sm:$0xff]
        %v1836 = vld [vmem:[%s220 + $0x2eb0] sm:$0xff]
        %v1837 = vld [vmem:[%s220 + $0x2eb8] sm:$0xff]
        %v1838 = vld [vmem:[%s220 + $0x2ec0] sm:$0xff]
        %v1839 = vld [vmem:[%s220 + $0x2ec8] sm:$0xff]
        %v1840 = vld [vmem:[%s220 + $0x2ed0] sm:$0xff]
        %v1841 = vld [vmem:[%s220 + $0x2ed8] sm:$0xff]
        %v1842 = vld [vmem:[%s220 + $0x2ee0] sm:$0xff]
        %v1843 = vld [vmem:[%s220 + $0x2ee8] sm:$0xff]
        %v1844 = vld [vmem:[%s220 + $0x2ef0] sm:$0xff]
        %v1845 = vld [vmem:[%s220 + $0x2ef8] sm:$0xff]
        %v1846 = vld [vmem:[%s220 + $0x2f00] sm:$0xff]
        %v1847 = vld [vmem:[%s220 + $0x2f08] sm:$0xff]
        %v1848 = vld [vmem:[%s220 + $0x2f10] sm:$0xff]
        %v1849 = vld [vmem:[%s220 + $0x2f18] sm:$0xff]
        %v1850 = vld [vmem:[%s220 + $0x2f20] sm:$0xff]
        %v1851 = vld [vmem:[%s220 + $0x2f28] sm:$0xff]
        %v1852 = vld [vmem:[%s220 + $0x2f30] sm:$0xff]
        %v1853 = vld [vmem:[%s220 + $0x2f38] sm:$0xff]
        %v1854 = vld [vmem:[%s220 + $0x2f40] sm:$0xff]
        %v1855 = vld [vmem:[%s220 + $0x2f48] sm:$0xff]
        %v1856 = vld [vmem:[%s220 + $0x2f50] sm:$0xff]
        %v1857 = vld [vmem:[%s220 + $0x2f58] sm:$0xff]
        %v1858 = vld [vmem:[%s220 + $0x2f60] sm:$0xff]
        %v1859 = vld [vmem:[%s220 + $0x2f68] sm:$0xff]
        %v1860 = vld [vmem:[%s220 + $0x2f70] sm:$0xff]
        %v1861 = vld [vmem:[%s220 + $0x2f78] sm:$0xff]
        %v1862 = vld [vmem:[%s220 + $0x2f80] sm:$0xff]
        %v1863 = vld [vmem:[%s220 + $0x2f88] sm:$0xff]
        %v1864 = vld [vmem:[%s220 + $0x2f90] sm:$0xff]
        %v1865 = vld [vmem:[%s220 + $0x2f98] sm:$0xff]
        %v1866 = vld [vmem:[%s220 + $0x2fa0] sm:$0xff]
        %v1867 = vld [vmem:[%s220 + $0x2fa8] sm:$0xff]
        %v1868 = vld [vmem:[%s220 + $0x2fb0] sm:$0xff]
        %v1869 = vld [vmem:[%s220 + $0x2fb8] sm:$0xff]
        %v1870 = vld [vmem:[%s220 + $0x2fc0] sm:$0xff]
        %v1871 = vld [vmem:[%s220 + $0x2fc8] sm:$0xff]
        %v1872 = vld [vmem:[%s220 + $0x2fd0] sm:$0xff]
        %v1873 = vld [vmem:[%s220 + $0x2fd8] sm:$0xff]
        %v1874 = vld [vmem:[%s220 + $0x2fe0] sm:$0xff]
        %v1875 = vld [vmem:[%s220 + $0x2fe8] sm:$0xff]
        %v1876 = vld [vmem:[%s220 + $0x2ff0] sm:$0xff]
        %v1877 = vld [vmem:[%s220 + $0x2ff8] sm:$0xff]
        %v1878 = vld [vmem:[%s220 + $0x3000] sm:$0xff]
        %v1879 = vld [vmem:[%s220 + $0x3008] sm:$0xff]
        %v1880 = vld [vmem:[%s220 + $0x3010] sm:$0xff]
        %v1881 = vld [vmem:[%s220 + $0x3018] sm:$0xff]
        %v1882 = vld [vmem:[%s220 + $0x3020] sm:$0xff]
        %v1883 = vld [vmem:[%s220 + $0x3028] sm:$0xff]
        %v1884 = vld [vmem:[%s220 + $0x3030] sm:$0xff]
        %v1885 = vld [vmem:[%s220 + $0x3038] sm:$0xff]
        %v1886 = vld [vmem:[%s220 + $0x3040] sm:$0xff]
        %v1887 = vld [vmem:[%s220 + $0x3048] sm:$0xff]
        %v1888 = vld [vmem:[%s220 + $0x3050] sm:$0xff]
        %v1889 = vld [vmem:[%s220 + $0x3058] sm:$0xff]
        %v1890 = vld [vmem:[%s220 + $0x3060] sm:$0xff]
        %v1891 = vld [vmem:[%s220 + $0x3068] sm:$0xff]
        %v1892 = vld [vmem:[%s220 + $0x3070] sm:$0xff]
        %v1893 = vld [vmem:[%s220 + $0x3078] sm:$0xff]
        %v1894 = vld [vmem:[%s220 + $0x3080] sm:$0xff]
        %v1895 = vld [vmem:[%s220 + $0x3088] sm:$0xff]
        %v1896 = vld [vmem:[%s220 + $0x3090] sm:$0xff]
        %v1897 = vld [vmem:[%s220 + $0x3098] sm:$0xff]
        %v1898 = vld [vmem:[%s220 + $0x30a0] sm:$0xff]
        %v1899 = vld [vmem:[%s220 + $0x30a8] sm:$0xff]
        %v1900 = vld [vmem:[%s220 + $0x30b0] sm:$0xff]
        %v1901 = vld [vmem:[%s220 + $0x30b8] sm:$0xff]
        %v1902 = vld [vmem:[%s220 + $0x30c0] sm:$0xff]
        %v1903 = vld [vmem:[%s220 + $0x30c8] sm:$0xff]
        %v1904 = vld [vmem:[%s220 + $0x30d0] sm:$0xff]
        %v1905 = vld [vmem:[%s220 + $0x30d8] sm:$0xff]
        %v1906 = vld [vmem:[%s220 + $0x30e0] sm:$0xff]
        %v1907 = vld [vmem:[%s220 + $0x30e8] sm:$0xff]
        %v1908 = vld [vmem:[%s220 + $0x30f0] sm:$0xff]
        %v1909 = vld [vmem:[%s220 + $0x30f8] sm:$0xff]
        %v1910 = vld [vmem:[%s220 + $0x3100] sm:$0xff]
        %v1911 = vld [vmem:[%s220 + $0x3108] sm:$0xff]
        %v1912 = vld [vmem:[%s220 + $0x3110] sm:$0xff]
        %v1913 = vld [vmem:[%s220 + $0x3118] sm:$0xff]
        %v1914 = vld [vmem:[%s220 + $0x3120] sm:$0xff]
        %v1915 = vld [vmem:[%s220 + $0x3128] sm:$0xff]
        %v1916 = vld [vmem:[%s220 + $0x3130] sm:$0xff]
        %v1917 = vld [vmem:[%s220 + $0x3138] sm:$0xff]
        %v1918 = vld [vmem:[%s220 + $0x3140] sm:$0xff]
        %v1919 = vld [vmem:[%s220 + $0x3148] sm:$0xff]
        %v1920 = vld [vmem:[%s220 + $0x3150] sm:$0xff]
        %v1921 = vld [vmem:[%s220 + $0x3158] sm:$0xff]
        %v1922 = vld [vmem:[%s220 + $0x3160] sm:$0xff]
        %v1923 = vld [vmem:[%s220 + $0x3168] sm:$0xff]
        %v1924 = vld [vmem:[%s220 + $0x3170] sm:$0xff]
        %v1925 = vld [vmem:[%s220 + $0x3178] sm:$0xff]
        %v1926 = vld [vmem:[%s220 + $0x3180] sm:$0xff]
        %v1927 = vld [vmem:[%s220 + $0x3188] sm:$0xff]
        %v1928 = vld [vmem:[%s220 + $0x3190] sm:$0xff]
        %v1929 = vld [vmem:[%s220 + $0x3198] sm:$0xff]
        %v1930 = vld [vmem:[%s220 + $0x31a0] sm:$0xff]
        %v1931 = vld [vmem:[%s220 + $0x31a8] sm:$0xff]
        %v1932 = vld [vmem:[%s220 + $0x31b0] sm:$0xff]
        %v1933 = vld [vmem:[%s220 + $0x31b8] sm:$0xff]
        %v1934 = vld [vmem:[%s220 + $0x31c0] sm:$0xff]
        %v1935 = vld [vmem:[%s220 + $0x31c8] sm:$0xff]
        %v1936 = vld [vmem:[%s220 + $0x31d0] sm:$0xff]
        %v1937 = vld [vmem:[%s220 + $0x31d8] sm:$0xff]
        %v1938 = vld [vmem:[%s220 + $0x31e0] sm:$0xff]
        %v1939 = vld [vmem:[%s220 + $0x31e8] sm:$0xff]
        %v1940 = vld [vmem:[%s220 + $0x31f0] sm:$0xff]
        %v1941 = vld [vmem:[%s220 + $0x31f8] sm:$0xff]
        %v1942 = vld [vmem:[%s220 + $0x3200] sm:$0xff]
        %v1943 = vld [vmem:[%s220 + $0x3208] sm:$0xff]
        %v1944 = vld [vmem:[%s220 + $0x3210] sm:$0xff]
        %v1945 = vld [vmem:[%s220 + $0x3218] sm:$0xff]
        %v1946 = vld [vmem:[%s220 + $0x3220] sm:$0xff]
        %v1947 = vld [vmem:[%s220 + $0x3228] sm:$0xff]
        %v1948 = vld [vmem:[%s220 + $0x3230] sm:$0xff]
        %v1949 = vld [vmem:[%s220 + $0x3238] sm:$0xff]
        %v1950 = vld [vmem:[%s220 + $0x3240] sm:$0xff]
        %v1951 = vld [vmem:[%s220 + $0x3248] sm:$0xff]
        %v1952 = vld [vmem:[%s220 + $0x3250] sm:$0xff]
        %v1953 = vld [vmem:[%s220 + $0x3258] sm:$0xff]
        %v1954 = vld [vmem:[%s220 + $0x3260] sm:$0xff]
        %v1955 = vld [vmem:[%s220 + $0x3268] sm:$0xff]
        %v1956 = vld [vmem:[%s220 + $0x3270] sm:$0xff]
        %v1957 = vld [vmem:[%s220 + $0x3278] sm:$0xff]
        %v1958 = vld [vmem:[%s220 + $0x3280] sm:$0xff]
        %v1959 = vld [vmem:[%s220 + $0x3288] sm:$0xff]
        %v1960 = vld [vmem:[%s220 + $0x3290] sm:$0xff]
        %v1961 = vld [vmem:[%s220 + $0x3298] sm:$0xff]
        %v1962 = vld [vmem:[%s220 + $0x32a0] sm:$0xff]
        %v1963 = vld [vmem:[%s220 + $0x32a8] sm:$0xff]
        %v1964 = vld [vmem:[%s220 + $0x32b0] sm:$0xff]
        %v1965 = vld [vmem:[%s220 + $0x32b8] sm:$0xff]
        %v1966 = vld [vmem:[%s220 + $0x32c0] sm:$0xff]
        %v1967 = vld [vmem:[%s220 + $0x32c8] sm:$0xff]
        %v1968 = vld [vmem:[%s220 + $0x32d0] sm:$0xff]
        %v1969 = vld [vmem:[%s220 + $0x32d8] sm:$0xff]
        %v1970 = vld [vmem:[%s220 + $0x32e0] sm:$0xff]
        %v1971 = vld [vmem:[%s220 + $0x32e8] sm:$0xff]
        %v1972 = vld [vmem:[%s220 + $0x32f0] sm:$0xff]
        %v1973 = vld [vmem:[%s220 + $0x32f8] sm:$0xff]
        %v1974 = vld [vmem:[%s220 + $0x3300] sm:$0xff]
        %v1975 = vld [vmem:[%s220 + $0x3308] sm:$0xff]
        %v1976 = vld [vmem:[%s220 + $0x3310] sm:$0xff]
        %v1977 = vld [vmem:[%s220 + $0x3318] sm:$0xff]
        %v1978 = vld [vmem:[%s220 + $0x3320] sm:$0xff]
        %v1979 = vld [vmem:[%s220 + $0x3328] sm:$0xff]
        %v1980 = vld [vmem:[%s220 + $0x3330] sm:$0xff]
        %v1981 = vld [vmem:[%s220 + $0x3338] sm:$0xff]
        %v1982 = vld [vmem:[%s220 + $0x3340] sm:$0xff]
        %v1983 = vld [vmem:[%s220 + $0x3348] sm:$0xff]
        %v1984 = vld [vmem:[%s220 + $0x3350] sm:$0xff]
        %v1985 = vld [vmem:[%s220 + $0x3358] sm:$0xff]
        %v1986 = vld [vmem:[%s220 + $0x3360] sm:$0xff]
        %v1987 = vld [vmem:[%s220 + $0x3368] sm:$0xff]
        %v1988 = vld [vmem:[%s220 + $0x3370] sm:$0xff]
        %v1989 = vld [vmem:[%s220 + $0x3378] sm:$0xff]
        %v1990 = vld [vmem:[%s220 + $0x3380] sm:$0xff]
        %v1991 = vld [vmem:[%s220 + $0x3388] sm:$0xff]
        %v1992 = vld [vmem:[%s220 + $0x3390] sm:$0xff]
        %v1993 = vld [vmem:[%s220 + $0x3398] sm:$0xff]
        %v1994 = vld [vmem:[%s220 + $0x33a0] sm:$0xff]
        %v1995 = vld [vmem:[%s220 + $0x33a8] sm:$0xff]
        %v1996 = vld [vmem:[%s220 + $0x33b0] sm:$0xff]
        %v1997 = vld [vmem:[%s220 + $0x33b8] sm:$0xff]
        %v1998 = vld [vmem:[%s220 + $0x33c0] sm:$0xff]
        %v1999 = vld [vmem:[%s220 + $0x33c8] sm:$0xff]
        %v2000 = vld [vmem:[%s220 + $0x33d0] sm:$0xff]
        %v2001 = vld [vmem:[%s220 + $0x33d8] sm:$0xff]
        %v2002 = vld [vmem:[%s220 + $0x33e0] sm:$0xff]
        %v2003 = vld [vmem:[%s220 + $0x33e8] sm:$0xff]
        %v2004 = vld [vmem:[%s220 + $0x33f0] sm:$0xff]
        %v2005 = vld [vmem:[%s220 + $0x33f8] sm:$0xff]
        %v2006 = vld [vmem:[%s220 + $0x3400] sm:$0xff]
        %v2007 = vld [vmem:[%s220 + $0x3408] sm:$0xff]
        %v2008 = vld [vmem:[%s220 + $0x3410] sm:$0xff]
        %v2009 = vld [vmem:[%s220 + $0x3418] sm:$0xff]
        %v2010 = vld [vmem:[%s220 + $0x3420] sm:$0xff]
        %v2011 = vld [vmem:[%s220 + $0x3428] sm:$0xff]
        %v2012 = vld [vmem:[%s220 + $0x3430] sm:$0xff]
        %v2013 = vld [vmem:[%s220 + $0x3438] sm:$0xff]
        %v2014 = vld [vmem:[%s220 + $0x3440] sm:$0xff]
        %v2015 = vld [vmem:[%s220 + $0x3448] sm:$0xff]
        %v2016 = vld [vmem:[%s220 + $0x3450] sm:$0xff]
        %v2017 = vld [vmem:[%s220 + $0x3458] sm:$0xff]
        %v2018 = vld [vmem:[%s220 + $0x3460] sm:$0xff]
        %v2019 = vld [vmem:[%s220 + $0x3468] sm:$0xff]
        %v2020 = vld [vmem:[%s220 + $0x3470] sm:$0xff]
        %v2021 = vld [vmem:[%s220 + $0x3478] sm:$0xff]
        %v2022 = vld [vmem:[%s220 + $0x3480] sm:$0xff]
        %v2023 = vld [vmem:[%s220 + $0x3488] sm:$0xff]
        %v2024 = vld [vmem:[%s220 + $0x3490] sm:$0xff]
        %v2025 = vld [vmem:[%s220 + $0x3498] sm:$0xff]
        %v2026 = vld [vmem:[%s220 + $0x34a0] sm:$0xff]
        %v2027 = vld [vmem:[%s220 + $0x34a8] sm:$0xff]
        %v2028 = vld [vmem:[%s220 + $0x34b0] sm:$0xff]
        %v2029 = vld [vmem:[%s220 + $0x34b8] sm:$0xff]
        %v2030 = vld [vmem:[%s220 + $0x34c0] sm:$0xff]
        %v2031 = vld [vmem:[%s220 + $0x34c8] sm:$0xff]
        %v2032 = vld [vmem:[%s220 + $0x34d0] sm:$0xff]
        %v2033 = vld [vmem:[%s220 + $0x34d8] sm:$0xff]
        %v2034 = vld [vmem:[%s220 + $0x34e0] sm:$0xff]
        %v2035 = vld [vmem:[%s220 + $0x34e8] sm:$0xff]
        %v2036 = vld [vmem:[%s220 + $0x34f0] sm:$0xff]
        %v2037 = vld [vmem:[%s220 + $0x34f8] sm:$0xff]
        %v2038 = vld [vmem:[%s220 + $0x3500] sm:$0xff]
        %v2039 = vld [vmem:[%s220 + $0x3508] sm:$0xff]
        %v2040 = vld [vmem:[%s220 + $0x3510] sm:$0xff]
        %v2041 = vld [vmem:[%s220 + $0x3518] sm:$0xff]
        %v2042 = vld [vmem:[%s220 + $0x3520] sm:$0xff]
        %v2043 = vld [vmem:[%s220 + $0x3528] sm:$0xff]
        %v2044 = vld [vmem:[%s220 + $0x3530] sm:$0xff]
        %v2045 = vld [vmem:[%s220 + $0x3538] sm:$0xff]
        %v2046 = vld [vmem:[%s220 + $0x3540] sm:$0xff]
        %v2047 = vld [vmem:[%s220 + $0x3548] sm:$0xff]
        %v2048 = vld [vmem:[%s220 + $0x3550] sm:$0xff]
        %v2049 = vld [vmem:[%s220 + $0x3558] sm:$0xff]
        %v2050 = vld [vmem:[%s220 + $0x3560] sm:$0xff]
        %v2051 = vld [vmem:[%s220 + $0x3568] sm:$0xff]
        %v2052 = vld [vmem:[%s220 + $0x3570] sm:$0xff]
        %v2053 = vld [vmem:[%s220 + $0x3578] sm:$0xff]
        %v2054 = vld [vmem:[%s220 + $0x3580] sm:$0xff]
        %v2055 = vld [vmem:[%s220 + $0x3588] sm:$0xff]
        %v2056 = vld [vmem:[%s220 + $0x3590] sm:$0xff]
        %v2057 = vld [vmem:[%s220 + $0x3598] sm:$0xff]
        %v2058 = vld [vmem:[%s220 + $0x35a0] sm:$0xff]
        %v2059 = vld [vmem:[%s220 + $0x35a8] sm:$0xff]
        %v2060 = vld [vmem:[%s220 + $0x35b0] sm:$0xff]
        %v2061 = vld [vmem:[%s220 + $0x35b8] sm:$0xff]
        %v2062 = vld [vmem:[%s220 + $0x35c0] sm:$0xff]
        %v2063 = vld [vmem:[%s220 + $0x35c8] sm:$0xff]
        %v2064 = vld [vmem:[%s220 + $0x35d0] sm:$0xff]
        %v2065 = vld [vmem:[%s220 + $0x35d8] sm:$0xff]
        %v2066 = vld [vmem:[%s220 + $0x35e0] sm:$0xff]
        %v2067 = vld [vmem:[%s220 + $0x35e8] sm:$0xff]
        %v2068 = vld [vmem:[%s220 + $0x35f0] sm:$0xff]
        %v2069 = vld [vmem:[%s220 + $0x35f8] sm:$0xff]
        %v2070 = vld [vmem:[%s220 + $0x3600] sm:$0xff]
        %v2071 = vld [vmem:[%s220 + $0x3608] sm:$0xff]
        %v2072 = vld [vmem:[%s220 + $0x3610] sm:$0xff]
        %v2073 = vld [vmem:[%s220 + $0x3618] sm:$0xff]
        %v2074 = vld [vmem:[%s220 + $0x3620] sm:$0xff]
        %v2075 = vld [vmem:[%s220 + $0x3628] sm:$0xff]
        %v2076 = vld [vmem:[%s220 + $0x3630] sm:$0xff]
        %v2077 = vld [vmem:[%s220 + $0x3638] sm:$0xff]
        %v2078 = vld [vmem:[%s220 + $0x3640] sm:$0xff]
        %v2079 = vld [vmem:[%s220 + $0x3648] sm:$0xff]
        %v2080 = vld [vmem:[%s220 + $0x3650] sm:$0xff]
        %v2081 = vld [vmem:[%s220 + $0x3658] sm:$0xff]
        %v2082 = vld [vmem:[%s220 + $0x3660] sm:$0xff]
        %v2083 = vld [vmem:[%s220 + $0x3668] sm:$0xff]
        %v2084 = vld [vmem:[%s220 + $0x3670] sm:$0xff]
        %v2085 = vld [vmem:[%s220 + $0x3678] sm:$0xff]
        %v2086 = vld [vmem:[%s220 + $0x3680] sm:$0xff]
        %v2087 = vld [vmem:[%s220 + $0x3688] sm:$0xff]
        %v2088 = vld [vmem:[%s220 + $0x3690] sm:$0xff]
        %v2089 = vld [vmem:[%s220 + $0x3698] sm:$0xff]
        %v2090 = vld [vmem:[%s220 + $0x36a0] sm:$0xff]
        %v2091 = vld [vmem:[%s220 + $0x36a8] sm:$0xff]
        %v2092 = vld [vmem:[%s220 + $0x36b0] sm:$0xff]
        %v2093 = vld [vmem:[%s220 + $0x36b8] sm:$0xff]
        %v2094 = vld [vmem:[%s220 + $0x36c0] sm:$0xff]
        %v2095 = vld [vmem:[%s220 + $0x36c8] sm:$0xff]
        %v2096 = vld [vmem:[%s220 + $0x36d0] sm:$0xff]
        %v2097 = vld [vmem:[%s220 + $0x36d8] sm:$0xff]
        %v2098 = vld [vmem:[%s220 + $0x36e0] sm:$0xff]
        %v2099 = vld [vmem:[%s220 + $0x36e8] sm:$0xff]
        %v2100 = vld [vmem:[%s220 + $0x36f0] sm:$0xff]
        %v2101 = vld [vmem:[%s220 + $0x36f8] sm:$0xff]
        %v2102 = vld [vmem:[%s220 + $0x3700] sm:$0xff]
        %v2103 = vld [vmem:[%s220 + $0x3708] sm:$0xff]
        %v2104 = vld [vmem:[%s220 + $0x3710] sm:$0xff]
        %v2105 = vld [vmem:[%s220 + $0x3718] sm:$0xff]
        %v2106 = vld [vmem:[%s220 + $0x3720] sm:$0xff]
        %v2107 = vld [vmem:[%s220 + $0x3728] sm:$0xff]
        %v2108 = vld [vmem:[%s220 + $0x3730] sm:$0xff]
        %v2109 = vld [vmem:[%s220 + $0x3738] sm:$0xff]
        %v2110 = vld [vmem:[%s220 + $0x3740] sm:$0xff]
        %v2111 = vld [vmem:[%s220 + $0x3748] sm:$0xff]
        %v2112 = vld [vmem:[%s220 + $0x3750] sm:$0xff]
        %v2113 = vld [vmem:[%s220 + $0x3758] sm:$0xff]
        %v2114 = vld [vmem:[%s220 + $0x3760] sm:$0xff]
        %v2115 = vld [vmem:[%s220 + $0x3768] sm:$0xff]
        %v2116 = vld [vmem:[%s220 + $0x3770] sm:$0xff]
        %v2117 = vld [vmem:[%s220 + $0x3778] sm:$0xff]
        %v2118 = vld [vmem:[%s220 + $0x3780] sm:$0xff]
        %v2119 = vld [vmem:[%s220 + $0x3788] sm:$0xff]
        %v2120 = vld [vmem:[%s220 + $0x3790] sm:$0xff]
        %v2121 = vld [vmem:[%s220 + $0x3798] sm:$0xff]
        %v2122 = vld [vmem:[%s220 + $0x37a0] sm:$0xff]
        %v2123 = vld [vmem:[%s220 + $0x37a8] sm:$0xff]
        %v2124 = vld [vmem:[%s220 + $0x37b0] sm:$0xff]
        %v2125 = vld [vmem:[%s220 + $0x37b8] sm:$0xff]
        %v2126 = vld [vmem:[%s220 + $0x37c0] sm:$0xff]
        %v2127 = vld [vmem:[%s220 + $0x37c8] sm:$0xff]
        %v2128 = vld [vmem:[%s220 + $0x37d0] sm:$0xff]
        %v2129 = vld [vmem:[%s220 + $0x37d8] sm:$0xff]
        %v2130 = vld [vmem:[%s220 + $0x37e0] sm:$0xff]
        %v2131 = vld [vmem:[%s220 + $0x37e8] sm:$0xff]
        %v2132 = vld [vmem:[%s220 + $0x37f0] sm:$0xff]
        %v2133 = vld [vmem:[%s220 + $0x37f8] sm:$0xff]
        %v2134 = vld [vmem:[%s220 + $0x3800] sm:$0xff]
        %v2135 = vld [vmem:[%s220 + $0x3808] sm:$0xff]
        %v2136 = vld [vmem:[%s220 + $0x3810] sm:$0xff]
        %v2137 = vld [vmem:[%s220 + $0x3818] sm:$0xff]
        %v2138 = vld [vmem:[%s220 + $0x3820] sm:$0xff]
        %v2139 = vld [vmem:[%s220 + $0x3828] sm:$0xff]
        %v2140 = vld [vmem:[%s220 + $0x3830] sm:$0xff]
        %v2141 = vld [vmem:[%s220 + $0x3838] sm:$0xff]
        %v2142 = vld [vmem:[%s220 + $0x3840] sm:$0xff]
        %v2143 = vld [vmem:[%s220 + $0x3848] sm:$0xff]
        %v2144 = vld [vmem:[%s220 + $0x3850] sm:$0xff]
        %v2145 = vld [vmem:[%s220 + $0x3858] sm:$0xff]
        %v2146 = vld [vmem:[%s220 + $0x3860] sm:$0xff]
        %v2147 = vld [vmem:[%s220 + $0x3868] sm:$0xff]
        %v2148 = vld [vmem:[%s220 + $0x3870] sm:$0xff]
        %v2149 = vld [vmem:[%s220 + $0x3878] sm:$0xff]
        %v2150 = vld [vmem:[%s220 + $0x3880] sm:$0xff]
        %v2151 = vld [vmem:[%s220 + $0x3888] sm:$0xff]
        %v2152 = vld [vmem:[%s220 + $0x3890] sm:$0xff]
        %v2153 = vld [vmem:[%s220 + $0x3898] sm:$0xff]
        %v2154 = vld [vmem:[%s220 + $0x38a0] sm:$0xff]
        %v2155 = vld [vmem:[%s220 + $0x38a8] sm:$0xff]
        %v2156 = vld [vmem:[%s220 + $0x38b0] sm:$0xff]
        %v2157 = vld [vmem:[%s220 + $0x38b8] sm:$0xff]
        %v2158 = vld [vmem:[%s220 + $0x38c0] sm:$0xff]
        %v2159 = vld [vmem:[%s220 + $0x38c8] sm:$0xff]
        %v2160 = vld [vmem:[%s220 + $0x38d0] sm:$0xff]
        %v2161 = vld [vmem:[%s220 + $0x38d8] sm:$0xff]
        %v2162 = vld [vmem:[%s220 + $0x38e0] sm:$0xff]
        %v2163 = vld [vmem:[%s220 + $0x38e8] sm:$0xff]
        %v2164 = vld [vmem:[%s220 + $0x38f0] sm:$0xff]
        %v2165 = vld [vmem:[%s220 + $0x38f8] sm:$0xff]
        %v2166 = vld [vmem:[%s220 + $0x3900] sm:$0xff]
        %v2167 = vld [vmem:[%s220 + $0x3908] sm:$0xff]
        %v2168 = vld [vmem:[%s220 + $0x3910] sm:$0xff]
        %v2169 = vld [vmem:[%s220 + $0x3918] sm:$0xff]
        %v2170 = vld [vmem:[%s220 + $0x3920] sm:$0xff]
        %v2171 = vld [vmem:[%s220 + $0x3928] sm:$0xff]
        %v2172 = vld [vmem:[%s220 + $0x3930] sm:$0xff]
        %v2173 = vld [vmem:[%s220 + $0x3938] sm:$0xff]
        %v2174 = vld [vmem:[%s220 + $0x3940] sm:$0xff]
        %v2175 = vld [vmem:[%s220 + $0x3948] sm:$0xff]
        %v2176 = vld [vmem:[%s220 + $0x3950] sm:$0xff]
        %v2177 = vld [vmem:[%s220 + $0x3958] sm:$0xff]
        %v2178 = vld [vmem:[%s220 + $0x3960] sm:$0xff]
        %v2179 = vld [vmem:[%s220 + $0x3968] sm:$0xff]
        %v2180 = vld [vmem:[%s220 + $0x3970] sm:$0xff]
        %v2181 = vld [vmem:[%s220 + $0x3978] sm:$0xff]
        %v2182 = vld [vmem:[%s220 + $0x3980] sm:$0xff]
        %v2183 = vld [vmem:[%s220 + $0x3988] sm:$0xff]
        %v2184 = vld [vmem:[%s220 + $0x3990] sm:$0xff]
        %v2185 = vld [vmem:[%s220 + $0x3998] sm:$0xff]
        %v2186 = vld [vmem:[%s220 + $0x39a0] sm:$0xff]
        %v2187 = vld [vmem:[%s220 + $0x39a8] sm:$0xff]
        %v2188 = vld [vmem:[%s220 + $0x39b0] sm:$0xff]
        %v2189 = vld [vmem:[%s220 + $0x39b8] sm:$0xff]
        %v2190 = vld [vmem:[%s220 + $0x39c0] sm:$0xff]
        %v2191 = vld [vmem:[%s220 + $0x39c8] sm:$0xff]
        %v2192 = vld [vmem:[%s220 + $0x39d0] sm:$0xff]
        %v2193 = vld [vmem:[%s220 + $0x39d8] sm:$0xff]
        %v2194 = vld [vmem:[%s220 + $0x39e0] sm:$0xff]
        %v2195 = vld [vmem:[%s220 + $0x39e8] sm:$0xff]
        %v2196 = vld [vmem:[%s220 + $0x39f0] sm:$0xff]
        %v2197 = vld [vmem:[%s220 + $0x39f8] sm:$0xff]
        %v2198 = vld [vmem:[%s220 + $0x3a00] sm:$0xff]
        %v2199 = vld [vmem:[%s220 + $0x3a08] sm:$0xff]
        %v2200 = vld [vmem:[%s220 + $0x3a10] sm:$0xff]
        %v2201 = vld [vmem:[%s220 + $0x3a18] sm:$0xff]
        %v2202 = vld [vmem:[%s220 + $0x3a20] sm:$0xff]
        %v2203 = vld [vmem:[%s220 + $0x3a28] sm:$0xff]
        %v2204 = vld [vmem:[%s220 + $0x3a30] sm:$0xff]
        %v2205 = vld [vmem:[%s220 + $0x3a38] sm:$0xff]
        %v2206 = vld [vmem:[%s220 + $0x3a40] sm:$0xff]
        %v2207 = vld [vmem:[%s220 + $0x3a48] sm:$0xff]
        %v2208 = vld [vmem:[%s220 + $0x3a50] sm:$0xff]
        %v2209 = vld [vmem:[%s220 + $0x3a58] sm:$0xff]
        %v2210 = vld [vmem:[%s220 + $0x3a60] sm:$0xff]
        %v2211 = vld [vmem:[%s220 + $0x3a68] sm:$0xff]
        %v2212 = vld [vmem:[%s220 + $0x3a70] sm:$0xff]
        %v2213 = vld [vmem:[%s220 + $0x3a78] sm:$0xff]
        %v2214 = vld [vmem:[%s220 + $0x3a80] sm:$0xff]
        %v2215 = vld [vmem:[%s220 + $0x3a88] sm:$0xff]
        %v2216 = vld [vmem:[%s220 + $0x3a90] sm:$0xff]
        %v2217 = vld [vmem:[%s220 + $0x3a98] sm:$0xff]
        %v2218 = vld [vmem:[%s220 + $0x3aa0] sm:$0xff]
        %v2219 = vld [vmem:[%s220 + $0x3aa8] sm:$0xff]
        %v2220 = vld [vmem:[%s220 + $0x3ab0] sm:$0xff]
        %v2221 = vld [vmem:[%s220 + $0x3ab8] sm:$0xff]
        %v2222 = vld [vmem:[%s220 + $0x3ac0] sm:$0xff]
        %v2223 = vld [vmem:[%s220 + $0x3ac8] sm:$0xff]
        %v2224 = vld [vmem:[%s220 + $0x3ad0] sm:$0xff]
        %v2225 = vld [vmem:[%s220 + $0x3ad8] sm:$0xff]
        %v2226 = vld [vmem:[%s220 + $0x3ae0] sm:$0xff]
        %v2227 = vld [vmem:[%s220 + $0x3ae8] sm:$0xff]
        %v2228 = vld [vmem:[%s220 + $0x3af0] sm:$0xff]
        %v2229 = vld [vmem:[%s220 + $0x3af8] sm:$0xff]
        %v2230 = vld [vmem:[%s220 + $0x3b00] sm:$0xff]
        %v2231 = vld [vmem:[%s220 + $0x3b08] sm:$0xff]
        %v2232 = vld [vmem:[%s220 + $0x3b10] sm:$0xff]
        %v2233 = vld [vmem:[%s220 + $0x3b18] sm:$0xff]
        %v2234 = vld [vmem:[%s220 + $0x3b20] sm:$0xff]
        %v2235 = vld [vmem:[%s220 + $0x3b28] sm:$0xff]
        %v2236 = vld [vmem:[%s220 + $0x3b30] sm:$0xff]
        %v2237 = vld [vmem:[%s220 + $0x3b38] sm:$0xff]
        %v2238 = vld [vmem:[%s220 + $0x3b40] sm:$0xff]
        %v2239 = vld [vmem:[%s220 + $0x3b48] sm:$0xff]
        %v2240 = vld [vmem:[%s220 + $0x3b50] sm:$0xff]
        %v2241 = vld [vmem:[%s220 + $0x3b58] sm:$0xff]
        %v2242 = vld [vmem:[%s220 + $0x3b60] sm:$0xff]
        %v2243 = vld [vmem:[%s220 + $0x3b68] sm:$0xff]
        %v2244 = vld [vmem:[%s220 + $0x3b70] sm:$0xff]
        %v2245 = vld [vmem:[%s220 + $0x3b78] sm:$0xff]
        %v2246 = vld [vmem:[%s220 + $0x3b80] sm:$0xff]
        %v2247 = vld [vmem:[%s220 + $0x3b88] sm:$0xff]
        %v2248 = vld [vmem:[%s220 + $0x3b90] sm:$0xff]
        %v2249 = vld [vmem:[%s220 + $0x3b98] sm:$0xff]
        %v2250 = vld [vmem:[%s220 + $0x3ba0] sm:$0xff]
        %v2251 = vld [vmem:[%s220 + $0x3ba8] sm:$0xff]
        %v2252 = vld [vmem:[%s220 + $0x3bb0] sm:$0xff]
        %v2253 = vld [vmem:[%s220 + $0x3bb8] sm:$0xff]
        %v2254 = vld [vmem:[%s220 + $0x3bc0] sm:$0xff]
        %v2255 = vld [vmem:[%s220 + $0x3bc8] sm:$0xff]
        %v2256 = vld [vmem:[%s220 + $0x3bd0] sm:$0xff]
        %v2257 = vld [vmem:[%s220 + $0x3bd8] sm:$0xff]
        %v2258 = vld [vmem:[%s220 + $0x3be0] sm:$0xff]
        %v2259 = vld [vmem:[%s220 + $0x3be8] sm:$0xff]
        %v2260 = vld [vmem:[%s220 + $0x3bf0] sm:$0xff]
        %v2261 = vld [vmem:[%s220 + $0x3bf8] sm:$0xff]
        %v2262 = vld [vmem:[%s220 + $0x3c00] sm:$0xff]
        %v2263 = vld [vmem:[%s220 + $0x3c08] sm:$0xff]
        %v2264 = vld [vmem:[%s220 + $0x3c10] sm:$0xff]
        %v2265 = vld [vmem:[%s220 + $0x3c18] sm:$0xff]
        %v2266 = vld [vmem:[%s220 + $0x3c20] sm:$0xff]
        %v2267 = vld [vmem:[%s220 + $0x3c28] sm:$0xff]
        %v2268 = vld [vmem:[%s220 + $0x3c30] sm:$0xff]
        %v2269 = vld [vmem:[%s220 + $0x3c38] sm:$0xff]
        %v2270 = vld [vmem:[%s220 + $0x3c40] sm:$0xff]
        %v2271 = vld [vmem:[%s220 + $0x3c48] sm:$0xff]
        %v2272 = vld [vmem:[%s220 + $0x3c50] sm:$0xff]
        %v2273 = vld [vmem:[%s220 + $0x3c58] sm:$0xff]
        %v2274 = vld [vmem:[%s220 + $0x3c60] sm:$0xff]
        %v2275 = vld [vmem:[%s220 + $0x3c68] sm:$0xff]
        %v2276 = vld [vmem:[%s220 + $0x3c70] sm:$0xff]
        %v2277 = vld [vmem:[%s220 + $0x3c78] sm:$0xff]
        %v2278 = vld [vmem:[%s220 + $0x3c80] sm:$0xff]
        %v2279 = vld [vmem:[%s220 + $0x3c88] sm:$0xff]
        %v2280 = vld [vmem:[%s220 + $0x3c90] sm:$0xff]
        %v2281 = vld [vmem:[%s220 + $0x3c98] sm:$0xff]
        %v2282 = vld [vmem:[%s220 + $0x3ca0] sm:$0xff]
        %v2283 = vld [vmem:[%s220 + $0x3ca8] sm:$0xff]
        %v2284 = vld [vmem:[%s220 + $0x3cb0] sm:$0xff]
        %v2285 = vld [vmem:[%s220 + $0x3cb8] sm:$0xff]
        %v2286 = vld [vmem:[%s220 + $0x3cc0] sm:$0xff]
        %v2287 = vld [vmem:[%s220 + $0x3cc8] sm:$0xff]
        %v2288 = vld [vmem:[%s220 + $0x3cd0] sm:$0xff]
        %v2289 = vld [vmem:[%s220 + $0x3cd8] sm:$0xff]
        %v2290 = vld [vmem:[%s220 + $0x3ce0] sm:$0xff]
        %v2291 = vld [vmem:[%s220 + $0x3ce8] sm:$0xff]
        %v2292 = vld [vmem:[%s220 + $0x3cf0] sm:$0xff]
        %v2293 = vld [vmem:[%s220 + $0x3cf8] sm:$0xff]
        %v2294 = vld [vmem:[%s220 + $0x3d00] sm:$0xff]
        %v2295 = vld [vmem:[%s220 + $0x3d08] sm:$0xff]
        %v2296 = vld [vmem:[%s220 + $0x3d10] sm:$0xff]
        %v2297 = vld [vmem:[%s220 + $0x3d18] sm:$0xff]
        %v2298 = vld [vmem:[%s220 + $0x3d20] sm:$0xff]
        %v2299 = vld [vmem:[%s220 + $0x3d28] sm:$0xff]
        %v2300 = vld [vmem:[%s220 + $0x3d30] sm:$0xff]
        %v2301 = vld [vmem:[%s220 + $0x3d38] sm:$0xff]
        %v2302 = vld [vmem:[%s220 + $0x3d40] sm:$0xff]
        %v2303 = vld [vmem:[%s220 + $0x3d48] sm:$0xff]
        %v2304 = vld [vmem:[%s220 + $0x3d50] sm:$0xff]
        %v2305 = vld [vmem:[%s220 + $0x3d58] sm:$0xff]
        %v2306 = vld [vmem:[%s220 + $0x3d60] sm:$0xff]
        %v2307 = vld [vmem:[%s220 + $0x3d68] sm:$0xff]
        %v2308 = vld [vmem:[%s220 + $0x3d70] sm:$0xff]
        %v2309 = vld [vmem:[%s220 + $0x3d78] sm:$0xff]
        %v2310 = vld [vmem:[%s220 + $0x3d80] sm:$0xff]
        %v2311 = vld [vmem:[%s220 + $0x3d88] sm:$0xff]
        %v2312 = vld [vmem:[%s220 + $0x3d90] sm:$0xff]
        %v2313 = vld [vmem:[%s220 + $0x3d98] sm:$0xff]
        %v2314 = vld [vmem:[%s220 + $0x3da0] sm:$0xff]
        %v2315 = vld [vmem:[%s220 + $0x3da8] sm:$0xff]
        %v2316 = vld [vmem:[%s220 + $0x3db0] sm:$0xff]
        %v2317 = vld [vmem:[%s220 + $0x3db8] sm:$0xff]
        %v2318 = vld [vmem:[%s220 + $0x3dc0] sm:$0xff]
        %v2319 = vld [vmem:[%s220 + $0x3dc8] sm:$0xff]
        %v2320 = vld [vmem:[%s220 + $0x3dd0] sm:$0xff]
        %v2321 = vld [vmem:[%s220 + $0x3dd8] sm:$0xff]
        %v2322 = vld [vmem:[%s220 + $0x3de0] sm:$0xff]
        %v2323 = vld [vmem:[%s220 + $0x3de8] sm:$0xff]
        %v2324 = vld [vmem:[%s220 + $0x3df0] sm:$0xff]
        %v2325 = vld [vmem:[%s220 + $0x3df8] sm:$0xff]
        %v2326 = vld [vmem:[%s220 + $0x3e00] sm:$0xff]
        %v2327 = vld [vmem:[%s220 + $0x3e08] sm:$0xff]
        %v2328 = vld [vmem:[%s220 + $0x3e10] sm:$0xff]
        %v2329 = vld [vmem:[%s220 + $0x3e18] sm:$0xff]
        %v2330 = vld [vmem:[%s220 + $0x3e20] sm:$0xff]
        %v2331 = vld [vmem:[%s220 + $0x3e28] sm:$0xff]
        %v2332 = vld [vmem:[%s220 + $0x3e30] sm:$0xff]
        %v2333 = vld [vmem:[%s220 + $0x3e38] sm:$0xff]
        %v2334 = vld [vmem:[%s220 + $0x3e40] sm:$0xff]
        %v2335 = vld [vmem:[%s220 + $0x3e48] sm:$0xff]
        %v2336 = vld [vmem:[%s220 + $0x3e50] sm:$0xff]
        %v2337 = vld [vmem:[%s220 + $0x3e58] sm:$0xff]
        %v2338 = vld [vmem:[%s220 + $0x3e60] sm:$0xff]
        %v2339 = vld [vmem:[%s220 + $0x3e68] sm:$0xff]
        %v2340 = vld [vmem:[%s220 + $0x3e70] sm:$0xff]
        %v2341 = vld [vmem:[%s220 + $0x3e78] sm:$0xff]
        %v2342 = vld [vmem:[%s220 + $0x3e80] sm:$0xff]
        %v2343 = vld [vmem:[%s220 + $0x3e88] sm:$0xff]
        %v2344 = vld [vmem:[%s220 + $0x3e90] sm:$0xff]
        %v2345 = vld [vmem:[%s220 + $0x3e98] sm:$0xff]
        %v2346 = vld [vmem:[%s220 + $0x3ea0] sm:$0xff]
        %v2347 = vld [vmem:[%s220 + $0x3ea8] sm:$0xff]
        %v2348 = vld [vmem:[%s220 + $0x3eb0] sm:$0xff]
        %v2349 = vld [vmem:[%s220 + $0x3eb8] sm:$0xff]
        %v2350 = vld [vmem:[%s220 + $0x3ec0] sm:$0xff]
        %v2351 = vld [vmem:[%s220 + $0x3ec8] sm:$0xff]
        %v2352 = vld [vmem:[%s220 + $0x3ed0] sm:$0xff]
        %v2353 = vld [vmem:[%s220 + $0x3ed8] sm:$0xff]
        %v2354 = vld [vmem:[%s220 + $0x3ee0] sm:$0xff]
        %v2355 = vld [vmem:[%s220 + $0x3ee8] sm:$0xff]
        %v2356 = vld [vmem:[%s220 + $0x3ef0] sm:$0xff]
        %v2357 = vld [vmem:[%s220 + $0x3ef8] sm:$0xff]
        %v2358 = vld [vmem:[%s220 + $0x3f00] sm:$0xff]
        %v2359 = vld [vmem:[%s220 + $0x3f08] sm:$0xff]
        %v2360 = vld [vmem:[%s220 + $0x3f10] sm:$0xff]
        %v2361 = vld [vmem:[%s220 + $0x3f18] sm:$0xff]
        %v2362 = vld [vmem:[%s220 + $0x3f20] sm:$0xff]
        %v2363 = vld [vmem:[%s220 + $0x3f28] sm:$0xff]
        %v2364 = vld [vmem:[%s220 + $0x3f30] sm:$0xff]
        %v2365 = vld [vmem:[%s220 + $0x3f38] sm:$0xff]
        %v2366 = vld [vmem:[%s220 + $0x3f40] sm:$0xff]
        %v2367 = vld [vmem:[%s220 + $0x3f48] sm:$0xff]
        %v2368 = vld [vmem:[%s220 + $0x3f50] sm:$0xff]
        %v2369 = vld [vmem:[%s220 + $0x3f58] sm:$0xff]
        %v2370 = vld [vmem:[%s220 + $0x3f60] sm:$0xff]
        %v2371 = vld [vmem:[%s220 + $0x3f68] sm:$0xff]
        %v2372 = vld [vmem:[%s220 + $0x3f70] sm:$0xff]
        %v2373 = vld [vmem:[%s220 + $0x3f78] sm:$0xff]
        %v2374 = vld [vmem:[%s220 + $0x3f80] sm:$0xff]
        %v2375 = vld [vmem:[%s220 + $0x3f88] sm:$0xff]
        %v2376 = vld [vmem:[%s220 + $0x3f90] sm:$0xff]
        %v2377 = vld [vmem:[%s220 + $0x3f98] sm:$0xff]
        %v2378 = vld [vmem:[%s220 + $0x3fa0] sm:$0xff]
        %v2379 = vld [vmem:[%s220 + $0x3fa8] sm:$0xff]
        %v2380 = vld [vmem:[%s220 + $0x3fb0] sm:$0xff]
        %v2381 = vld [vmem:[%s220 + $0x3fb8] sm:$0xff]
        %v2382 = vld [vmem:[%s220 + $0x3fc0] sm:$0xff]
        %v2383 = vld [vmem:[%s220 + $0x3fc8] sm:$0xff]
        %v2384 = vld [vmem:[%s220 + $0x3fd0] sm:$0xff]
        %v2385 = vld [vmem:[%s220 + $0x3fd8] sm:$0xff]
        %v2386 = vld [vmem:[%s220 + $0x3fe0] sm:$0xff]
        %v2387 = vld [vmem:[%s220 + $0x3fe8] sm:$0xff]
        %v2388 = vld [vmem:[%s220 + $0x3ff0] sm:$0xff]
        %v2389 = vld [vmem:[%s220 + $0x3ff8] sm:$0xff]
        %v2390 = vld [vmem:[%s229] sm:$0xff]
        %v2392 = vlaneseq
        %v2393 = vshrl.u32 %v2392, 7
        %v2394 = vsub.s32 0, %v2393
        %v2395 = vrot.slane %v2390, %v2394
        %v2396 = vlaneseq
        %v2397 = vshrl.u32 %v2396, 7
        %v2398 = vsub.s32 1, %v2397
        %v2399 = vrot.slane %v2390, %v2398
        %v2400 = vlaneseq
        %v2401 = vshrl.u32 %v2400, 7
        %v2402 = vsub.s32 2, %v2401
        %v2403 = vrot.slane %v2390, %v2402
        %v2404 = vlaneseq
        %v2405 = vshrl.u32 %v2404, 7
        %v2406 = vsub.s32 3, %v2405
        %v2407 = vrot.slane %v2390, %v2406
        %v2408 = vlaneseq
        %v2409 = vshrl.u32 %v2408, 7
        %v2410 = vsub.s32 4, %v2409
        %v2411 = vrot.slane %v2390, %v2410
        %v2412 = vlaneseq
        %v2413 = vshrl.u32 %v2412, 7
        %v2414 = vsub.s32 5, %v2413
        %v2415 = vrot.slane %v2390, %v2414
        %v2416 = vlaneseq
        %v2417 = vshrl.u32 %v2416, 7
        %v2418 = vsub.s32 6, %v2417
        %v2419 = vrot.slane %v2390, %v2418
        %v2420 = vlaneseq
        %v2421 = vshrl.u32 %v2420, 7
        %v2422 = vsub.s32 7, %v2421
        %v2423 = vrot.slane %v2390, %v2422
        %2432 = vmatprep.subr.mxu0 %v463
        %2433 = vmatpush1.msra.mxu0 %v462
        %2434 = vmatprep.subr.mxu0 %v455
        %2435 = vmatpush1.msra.mxu0 %v454
        %2436 = vmatprep.subr.mxu0 %v447
        %2437 = vmatpush1.msra.mxu0 %v446
        %2438 = vmatprep.subr.mxu0 %v439
        %2439 = vmatpush1.msra.mxu0 %v438
        %2440 = vmatprep.subr.mxu0 %v431
        %2441 = vmatpush1.msra.mxu0 %v430
        %2442 = vmatprep.subr.mxu0 %v423
        %2443 = vmatpush1.msra.mxu0 %v422
        %2444 = vmatprep.subr.mxu0 %v415
        %2445 = vmatpush1.msra.mxu0 %v414
        %2446 = vmatprep.subr.mxu0 %v407
        %2447 = vmatpush1.msra.mxu0 %v406
        %2448 = vmatprep.subr.mxu0 %v399
        %2449 = vmatpush1.msra.mxu0 %v398
        %2450 = vmatprep.subr.mxu0 %v391
        %2451 = vmatpush1.msra.mxu0 %v390
        %2452 = vmatprep.subr.mxu0 %v383
        %2453 = vmatpush1.msra.mxu0 %v382
        %2454 = vmatprep.subr.mxu0 %v375
        %2455 = vmatpush1.msra.mxu0 %v374
        %2456 = vmatprep.subr.mxu0 %v367
        %2457 = vmatpush1.msra.mxu0 %v366
        %2458 = vmatprep.subr.mxu0 %v359
        %2459 = vmatpush1.msra.mxu0 %v358
        %2460 = vmatprep.subr.mxu0 %v351
        %2461 = vmatpush1.msra.mxu0 %v350
        %2462 = vmatprep.subr.mxu0 %v343
        %2463 = vmatpush1.msra.mxu0 %v342
        %2464 = vmatprep.subr.mxu0 %v591
        %2465 = vmatpush2.msra.mxu0 %v590
        %2466 = vmatprep.subr.mxu0 %v583
        %2467 = vmatpush2.msra.mxu0 %v582
        %2468 = vmatprep.subr.mxu0 %v575
        %2469 = vmatpush2.msra.mxu0 %v574
        %2470 = vmatprep.subr.mxu0 %v567
        %2471 = vmatpush2.msra.mxu0 %v566
        %2472 = vmatprep.subr.mxu0 %v559
        %2473 = vmatpush2.msra.mxu0 %v558
        %2474 = vmatprep.subr.mxu0 %v551
        %2475 = vmatpush2.msra.mxu0 %v550
        %2476 = vmatprep.subr.mxu0 %v543
        %2477 = vmatpush2.msra.mxu0 %v542
        %2478 = vmatprep.subr.mxu0 %v535
        %2479 = vmatpush2.msra.mxu0 %v534
        %2480 = vmatprep.subr.mxu0 %v527
        %2481 = vmatpush2.msra.mxu0 %v526
        %2482 = vmatprep.subr.mxu0 %v519
        %2483 = vmatpush2.msra.mxu0 %v518
        %2484 = vmatprep.subr.mxu0 %v511
        %2485 = vmatpush2.msra.mxu0 %v510
        %2486 = vmatprep.subr.mxu0 %v503
        %2487 = vmatpush2.msra.mxu0 %v502
        %2488 = vmatprep.subr.mxu0 %v495
        %2489 = vmatpush2.msra.mxu0 %v494
        %2490 = vmatprep.subr.mxu0 %v487
        %2491 = vmatpush2.msra.mxu0 %v486
        %2492 = vmatprep.subr.mxu0 %v479
        %2493 = vmatpush2.msra.mxu0 %v478
        %2494 = vmatprep.subr.mxu0 %v471
        %2495 = vmatpush2.msra.mxu0 %v470
        %2496 = vmatprep.mubr.f32.mxu0 %v327
        %2497 = vmatmul.mubr.f32.gmra.mxu0 %v326
        %v2498 = vpop.f32.mrf.mxu0
        %v2499 = vadd.f32 %v2395, %v2498
        %v2500 = vpop.f32.mrf.mxu0
        %v2501 = vadd.f32 %v2399, %v2500
        %2502 = vdwg.mxu0
        %2503 = vmatprep.subr.mxu0 %v719
        %2504 = vmatpush1.msra.mxu0 %v718
        %2505 = vmatprep.subr.mxu0 %v711
        %2506 = vmatpush1.msra.mxu0 %v710
        %2507 = vmatprep.subr.mxu0 %v703
        %2508 = vmatpush1.msra.mxu0 %v702
        %2509 = vmatprep.subr.mxu0 %v695
        %2510 = vmatpush1.msra.mxu0 %v694
        %2511 = vmatprep.subr.mxu0 %v687
        %2512 = vmatpush1.msra.mxu0 %v686
        %2513 = vmatprep.subr.mxu0 %v679
        %2514 = vmatpush1.msra.mxu0 %v678
        %2515 = vmatprep.subr.mxu0 %v671
        %2516 = vmatpush1.msra.mxu0 %v670
        %2517 = vmatprep.subr.mxu0 %v663
        %2518 = vmatpush1.msra.mxu0 %v662
        %2519 = vmatprep.subr.mxu0 %v655
        %2520 = vmatpush1.msra.mxu0 %v654
        %2521 = vmatprep.subr.mxu0 %v647
        %2522 = vmatpush1.msra.mxu0 %v646
        %2523 = vmatprep.subr.mxu0 %v639
        %2524 = vmatpush1.msra.mxu0 %v638
        %2525 = vmatprep.subr.mxu0 %v631
        %2526 = vmatpush1.msra.mxu0 %v630
        %2527 = vmatprep.subr.mxu0 %v623
        %2528 = vmatpush1.msra.mxu0 %v622
        %2529 = vmatprep.subr.mxu0 %v615
        %2530 = vmatpush1.msra.mxu0 %v614
        %2531 = vmatprep.subr.mxu0 %v607
        %2532 = vmatpush1.msra.mxu0 %v606
        %2533 = vmatprep.subr.mxu0 %v599
        %2534 = vmatpush1.msra.mxu0 %v598
        %2535 = vmatprep.subr.mxu0 %v847
        %2536 = vmatpush2.msra.mxu0 %v846
        %2537 = vmatprep.subr.mxu0 %v839
        %2538 = vmatpush2.msra.mxu0 %v838
        %2539 = vmatprep.subr.mxu0 %v831
        %2540 = vmatpush2.msra.mxu0 %v830
        %2541 = vmatprep.subr.mxu0 %v823
        %2542 = vmatpush2.msra.mxu0 %v822
        %2543 = vmatprep.subr.mxu0 %v815
        %2544 = vmatpush2.msra.mxu0 %v814
        %2545 = vmatprep.subr.mxu0 %v807
        %2546 = vmatpush2.msra.mxu0 %v806
        %2547 = vmatprep.subr.mxu0 %v799
        %2548 = vmatpush2.msra.mxu0 %v798
        %2549 = vmatprep.subr.mxu0 %v791
        %2550 = vmatpush2.msra.mxu0 %v790
        %2551 = vmatprep.subr.mxu0 %v783
        %2552 = vmatpush2.msra.mxu0 %v782
        %2553 = vmatprep.subr.mxu0 %v775
        %2554 = vmatpush2.msra.mxu0 %v774
        %2555 = vmatprep.subr.mxu0 %v767
        %2556 = vmatpush2.msra.mxu0 %v766
        %2557 = vmatprep.subr.mxu0 %v759
        %2558 = vmatpush2.msra.mxu0 %v758
        %2559 = vmatprep.subr.mxu0 %v751
        %2560 = vmatpush2.msra.mxu0 %v750
        %2561 = vmatprep.subr.mxu0 %v743
        %2562 = vmatpush2.msra.mxu0 %v742
        %2563 = vmatprep.subr.mxu0 %v735
        %2564 = vmatpush2.msra.mxu0 %v734
        %2565 = vmatprep.subr.mxu0 %v727
        %2566 = vmatpush2.msra.mxu0 %v726
        %2567 = vmatprep.mubr.f32.mxu0 %v329
        %2568 = vmatmul.mubr.f32.gmra.mxu0 %v328
        %v2569 = vpop.f32.mrf.mxu0
        %v2570 = vadd.f32 %v2499, %v2569
        %v2571 = vpop.f32.mrf.mxu0
        %v2572 = vadd.f32 %v2501, %v2571
        %2573 = vdwg.mxu0
        %2574 = vmatprep.subr.mxu0 %v975
        %2575 = vmatpush1.msra.mxu0 %v974
        %2576 = vmatprep.subr.mxu0 %v967
        %2577 = vmatpush1.msra.mxu0 %v966
        %2578 = vmatprep.subr.mxu0 %v959
        %2579 = vmatpush1.msra.mxu0 %v958
        %2580 = vmatprep.subr.mxu0 %v951
        %2581 = vmatpush1.msra.mxu0 %v950
        %2582 = vmatprep.subr.mxu0 %v943
        %2583 = vmatpush1.msra.mxu0 %v942
        %2584 = vmatprep.subr.mxu0 %v935
        %2585 = vmatpush1.msra.mxu0 %v934
        %2586 = vmatprep.subr.mxu0 %v927
        %2587 = vmatpush1.msra.mxu0 %v926
        %2588 = vmatprep.subr.mxu0 %v919
        %2589 = vmatpush1.msra.mxu0 %v918
        %2590 = vmatprep.subr.mxu0 %v911
        %2591 = vmatpush1.msra.mxu0 %v910
        %2592 = vmatprep.subr.mxu0 %v903
        %2593 = vmatpush1.msra.mxu0 %v902
        %2594 = vmatprep.subr.mxu0 %v895
        %2595 = vmatpush1.msra.mxu0 %v894
        %2596 = vmatprep.subr.mxu0 %v887
        %2597 = vmatpush1.msra.mxu0 %v886
        %2598 = vmatprep.subr.mxu0 %v879
        %2599 = vmatpush1.msra.mxu0 %v878
        %2600 = vmatprep.subr.mxu0 %v871
        %2601 = vmatpush1.msra.mxu0 %v870
        %2602 = vmatprep.subr.mxu0 %v863
        %2603 = vmatpush1.msra.mxu0 %v862
        %2604 = vmatprep.subr.mxu0 %v855
        %2605 = vmatpush1.msra.mxu0 %v854
        %2606 = vmatprep.subr.mxu0 %v1103
        %2607 = vmatpush2.msra.mxu0 %v1102
        %2608 = vmatprep.subr.mxu0 %v1095
        %2609 = vmatpush2.msra.mxu0 %v1094
        %2610 = vmatprep.subr.mxu0 %v1087
        %2611 = vmatpush2.msra.mxu0 %v1086
        %2612 = vmatprep.subr.mxu0 %v1079
        %2613 = vmatpush2.msra.mxu0 %v1078
        %2614 = vmatprep.subr.mxu0 %v1071
        %2615 = vmatpush2.msra.mxu0 %v1070
        %2616 = vmatprep.subr.mxu0 %v1063
        %2617 = vmatpush2.msra.mxu0 %v1062
        %2618 = vmatprep.subr.mxu0 %v1055
        %2619 = vmatpush2.msra.mxu0 %v1054
        %2620 = vmatprep.subr.mxu0 %v1047
        %2621 = vmatpush2.msra.mxu0 %v1046
        %2622 = vmatprep.subr.mxu0 %v1039
        %2623 = vmatpush2.msra.mxu0 %v1038
        %2624 = vmatprep.subr.mxu0 %v1031
        %2625 = vmatpush2.msra.mxu0 %v1030
        %2626 = vmatprep.subr.mxu0 %v1023
        %2627 = vmatpush2.msra.mxu0 %v1022
        %2628 = vmatprep.subr.mxu0 %v1015
        %2629 = vmatpush2.msra.mxu0 %v1014
        %2630 = vmatprep.subr.mxu0 %v1007
        %2631 = vmatpush2.msra.mxu0 %v1006
        %2632 = vmatprep.subr.mxu0 %v999
        %2633 = vmatpush2.msra.mxu0 %v998
        %2634 = vmatprep.subr.mxu0 %v991
        %2635 = vmatpush2.msra.mxu0 %v990
        %2636 = vmatprep.subr.mxu0 %v983
        %2637 = vmatpush2.msra.mxu0 %v982
        %2638 = vmatprep.mubr.f32.mxu0 %v331
        %2639 = vmatmul.mubr.f32.gmra.mxu0 %v330
        %v2640 = vpop.f32.mrf.mxu0
        %v2641 = vadd.f32 %v2570, %v2640
        %v2642 = vpop.f32.mrf.mxu0
        %v2643 = vadd.f32 %v2572, %v2642
        %2644 = vdwg.mxu0
        %2645 = vmatprep.subr.mxu0 %v1231
        %2646 = vmatpush1.msra.mxu0 %v1230
        %2647 = vmatprep.subr.mxu0 %v1223
        %2648 = vmatpush1.msra.mxu0 %v1222
        %2649 = vmatprep.subr.mxu0 %v1215
        %2650 = vmatpush1.msra.mxu0 %v1214
        %2651 = vmatprep.subr.mxu0 %v1207
        %2652 = vmatpush1.msra.mxu0 %v1206
        %2653 = vmatprep.subr.mxu0 %v1199
        %2654 = vmatpush1.msra.mxu0 %v1198
        %2655 = vmatprep.subr.mxu0 %v1191
        %2656 = vmatpush1.msra.mxu0 %v1190
        %2657 = vmatprep.subr.mxu0 %v1183
        %2658 = vmatpush1.msra.mxu0 %v1182
        %2659 = vmatprep.subr.mxu0 %v1175
        %2660 = vmatpush1.msra.mxu0 %v1174
        %2661 = vmatprep.subr.mxu0 %v1167
        %2662 = vmatpush1.msra.mxu0 %v1166
        %2663 = vmatprep.subr.mxu0 %v1159
        %2664 = vmatpush1.msra.mxu0 %v1158
        %2665 = vmatprep.subr.mxu0 %v1151
        %2666 = vmatpush1.msra.mxu0 %v1150
        %2667 = vmatprep.subr.mxu0 %v1143
        %2668 = vmatpush1.msra.mxu0 %v1142
        %2669 = vmatprep.subr.mxu0 %v1135
        %2670 = vmatpush1.msra.mxu0 %v1134
        %2671 = vmatprep.subr.mxu0 %v1127
        %2672 = vmatpush1.msra.mxu0 %v1126
        %2673 = vmatprep.subr.mxu0 %v1119
        %2674 = vmatpush1.msra.mxu0 %v1118
        %2675 = vmatprep.subr.mxu0 %v1111
        %2676 = vmatpush1.msra.mxu0 %v1110
        %2677 = vmatprep.subr.mxu0 %v1359
        %2678 = vmatpush2.msra.mxu0 %v1358
        %2679 = vmatprep.subr.mxu0 %v1351
        %2680 = vmatpush2.msra.mxu0 %v1350
        %2681 = vmatprep.subr.mxu0 %v1343
        %2682 = vmatpush2.msra.mxu0 %v1342
        %2683 = vmatprep.subr.mxu0 %v1335
        %2684 = vmatpush2.msra.mxu0 %v1334
        %2685 = vmatprep.subr.mxu0 %v1327
        %2686 = vmatpush2.msra.mxu0 %v1326
        %2687 = vmatprep.subr.mxu0 %v1319
        %2688 = vmatpush2.msra.mxu0 %v1318
        %2689 = vmatprep.subr.mxu0 %v1311
        %2690 = vmatpush2.msra.mxu0 %v1310
        %2691 = vmatprep.subr.mxu0 %v1303
        %2692 = vmatpush2.msra.mxu0 %v1302
        %2693 = vmatprep.subr.mxu0 %v1295
        %2694 = vmatpush2.msra.mxu0 %v1294
        %2695 = vmatprep.subr.mxu0 %v1287
        %2696 = vmatpush2.msra.mxu0 %v1286
        %2697 = vmatprep.subr.mxu0 %v1279
        %2698 = vmatpush2.msra.mxu0 %v1278
        %2699 = vmatprep.subr.mxu0 %v1271
        %2700 = vmatpush2.msra.mxu0 %v1270
        %2701 = vmatprep.subr.mxu0 %v1263
        %2702 = vmatpush2.msra.mxu0 %v1262
        %2703 = vmatprep.subr.mxu0 %v1255
        %2704 = vmatpush2.msra.mxu0 %v1254
        %2705 = vmatprep.subr.mxu0 %v1247
        %2706 = vmatpush2.msra.mxu0 %v1246
        %2707 = vmatprep.subr.mxu0 %v1239
        %2708 = vmatpush2.msra.mxu0 %v1238
        %2709 = vmatprep.mubr.f32.mxu0 %v333
        %2710 = vmatmul.mubr.f32.gmra.mxu0 %v332
        %v2711 = vpop.f32.mrf.mxu0
        %v2712 = vadd.f32 %v2641, %v2711
        %v2713 = vpop.f32.mrf.mxu0
        %v2714 = vadd.f32 %v2643, %v2713
        %2715 = vdwg.mxu0
        %2716 = vmatprep.subr.mxu0 %v1487
        %2717 = vmatpush1.msra.mxu0 %v1486
        %2718 = vmatprep.subr.mxu0 %v1479
        %2719 = vmatpush1.msra.mxu0 %v1478
        %2720 = vmatprep.subr.mxu0 %v1471
        %2721 = vmatpush1.msra.mxu0 %v1470
        %2722 = vmatprep.subr.mxu0 %v1463
        %2723 = vmatpush1.msra.mxu0 %v1462
        %2724 = vmatprep.subr.mxu0 %v1455
        %2725 = vmatpush1.msra.mxu0 %v1454
        %2726 = vmatprep.subr.mxu0 %v1447
        %2727 = vmatpush1.msra.mxu0 %v1446
        %2728 = vmatprep.subr.mxu0 %v1439
        %2729 = vmatpush1.msra.mxu0 %v1438
        %2730 = vmatprep.subr.mxu0 %v1431
        %2731 = vmatpush1.msra.mxu0 %v1430
        %2732 = vmatprep.subr.mxu0 %v1423
        %2733 = vmatpush1.msra.mxu0 %v1422
        %2734 = vmatprep.subr.mxu0 %v1415
        %2735 = vmatpush1.msra.mxu0 %v1414
        %2736 = vmatprep.subr.mxu0 %v1407
        %2737 = vmatpush1.msra.mxu0 %v1406
        %2738 = vmatprep.subr.mxu0 %v1399
        %2739 = vmatpush1.msra.mxu0 %v1398
        %2740 = vmatprep.subr.mxu0 %v1391
        %2741 = vmatpush1.msra.mxu0 %v1390
        %2742 = vmatprep.subr.mxu0 %v1383
        %2743 = vmatpush1.msra.mxu0 %v1382
        %2744 = vmatprep.subr.mxu0 %v1375
        %2745 = vmatpush1.msra.mxu0 %v1374
        %2746 = vmatprep.subr.mxu0 %v1367
        %2747 = vmatpush1.msra.mxu0 %v1366
        %2748 = vmatprep.subr.mxu0 %v1615
        %2749 = vmatpush2.msra.mxu0 %v1614
        %2750 = vmatprep.subr.mxu0 %v1607
        %2751 = vmatpush2.msra.mxu0 %v1606
        %2752 = vmatprep.subr.mxu0 %v1599
        %2753 = vmatpush2.msra.mxu0 %v1598
        %2754 = vmatprep.subr.mxu0 %v1591
        %2755 = vmatpush2.msra.mxu0 %v1590
        %2756 = vmatprep.subr.mxu0 %v1583
        %2757 = vmatpush2.msra.mxu0 %v1582
        %2758 = vmatprep.subr.mxu0 %v1575
        %2759 = vmatpush2.msra.mxu0 %v1574
        %2760 = vmatprep.subr.mxu0 %v1567
        %2761 = vmatpush2.msra.mxu0 %v1566
        %2762 = vmatprep.subr.mxu0 %v1559
        %2763 = vmatpush2.msra.mxu0 %v1558
        %2764 = vmatprep.subr.mxu0 %v1551
        %2765 = vmatpush2.msra.mxu0 %v1550
        %2766 = vmatprep.subr.mxu0 %v1543
        %2767 = vmatpush2.msra.mxu0 %v1542
        %2768 = vmatprep.subr.mxu0 %v1535
        %2769 = vmatpush2.msra.mxu0 %v1534
        %2770 = vmatprep.subr.mxu0 %v1527
        %2771 = vmatpush2.msra.mxu0 %v1526
        %2772 = vmatprep.subr.mxu0 %v1519
        %2773 = vmatpush2.msra.mxu0 %v1518
        %2774 = vmatprep.subr.mxu0 %v1511
        %2775 = vmatpush2.msra.mxu0 %v1510
        %2776 = vmatprep.subr.mxu0 %v1503
        %2777 = vmatpush2.msra.mxu0 %v1502
        %2778 = vmatprep.subr.mxu0 %v1495
        %2779 = vmatpush2.msra.mxu0 %v1494
        %2780 = vmatprep.mubr.f32.mxu0 %v335
        %2781 = vmatmul.mubr.f32.gmra.mxu0 %v334
        %v2782 = vpop.f32.mrf.mxu0
        %v2783 = vadd.f32 %v2712, %v2782
        %v2784 = vpop.f32.mrf.mxu0
        %v2785 = vadd.f32 %v2714, %v2784
        %2786 = vdwg.mxu0
        %2787 = vmatprep.subr.mxu0 %v1743
        %2788 = vmatpush1.msra.mxu0 %v1742
        %2789 = vmatprep.subr.mxu0 %v1735
        %2790 = vmatpush1.msra.mxu0 %v1734
        %2791 = vmatprep.subr.mxu0 %v1727
        %2792 = vmatpush1.msra.mxu0 %v1726
        %2793 = vmatprep.subr.mxu0 %v1719
        %2794 = vmatpush1.msra.mxu0 %v1718
        %2795 = vmatprep.subr.mxu0 %v1711
        %2796 = vmatpush1.msra.mxu0 %v1710
        %2797 = vmatprep.subr.mxu0 %v1703
        %2798 = vmatpush1.msra.mxu0 %v1702
        %2799 = vmatprep.subr.mxu0 %v1695
        %2800 = vmatpush1.msra.mxu0 %v1694
        %2801 = vmatprep.subr.mxu0 %v1687
        %2802 = vmatpush1.msra.mxu0 %v1686
        %2803 = vmatprep.subr.mxu0 %v1679
        %2804 = vmatpush1.msra.mxu0 %v1678
        %2805 = vmatprep.subr.mxu0 %v1671
        %2806 = vmatpush1.msra.mxu0 %v1670
        %2807 = vmatprep.subr.mxu0 %v1663
        %2808 = vmatpush1.msra.mxu0 %v1662
        %2809 = vmatprep.subr.mxu0 %v1655
        %2810 = vmatpush1.msra.mxu0 %v1654
        %2811 = vmatprep.subr.mxu0 %v1647
        %2812 = vmatpush1.msra.mxu0 %v1646
        %2813 = vmatprep.subr.mxu0 %v1639
        %2814 = vmatpush1.msra.mxu0 %v1638
        %2815 = vmatprep.subr.mxu0 %v1631
        %2816 = vmatpush1.msra.mxu0 %v1630
        %2817 = vmatprep.subr.mxu0 %v1623
        %2818 = vmatpush1.msra.mxu0 %v1622
        %2819 = vmatprep.subr.mxu0 %v1871
        %2820 = vmatpush2.msra.mxu0 %v1870
        %2821 = vmatprep.subr.mxu0 %v1863
        %2822 = vmatpush2.msra.mxu0 %v1862
        %2823 = vmatprep.subr.mxu0 %v1855
        %2824 = vmatpush2.msra.mxu0 %v1854
        %2825 = vmatprep.subr.mxu0 %v1847
        %2826 = vmatpush2.msra.mxu0 %v1846
        %2827 = vmatprep.subr.mxu0 %v1839
        %2828 = vmatpush2.msra.mxu0 %v1838
        %2829 = vmatprep.subr.mxu0 %v1831
        %2830 = vmatpush2.msra.mxu0 %v1830
        %2831 = vmatprep.subr.mxu0 %v1823
        %2832 = vmatpush2.msra.mxu0 %v1822
        %2833 = vmatprep.subr.mxu0 %v1815
        %2834 = vmatpush2.msra.mxu0 %v1814
        %2835 = vmatprep.subr.mxu0 %v1807
        %2836 = vmatpush2.msra.mxu0 %v1806
        %2837 = vmatprep.subr.mxu0 %v1799
        %2838 = vmatpush2.msra.mxu0 %v1798
        %2839 = vmatprep.subr.mxu0 %v1791
        %2840 = vmatpush2.msra.mxu0 %v1790
        %2841 = vmatprep.subr.mxu0 %v1783
        %2842 = vmatpush2.msra.mxu0 %v1782
        %2843 = vmatprep.subr.mxu0 %v1775
        %2844 = vmatpush2.msra.mxu0 %v1774
        %2845 = vmatprep.subr.mxu0 %v1767
        %2846 = vmatpush2.msra.mxu0 %v1766
        %2847 = vmatprep.subr.mxu0 %v1759
        %2848 = vmatpush2.msra.mxu0 %v1758
        %2849 = vmatprep.subr.mxu0 %v1751
        %2850 = vmatpush2.msra.mxu0 %v1750
        %2851 = vmatprep.mubr.f32.mxu0 %v337
        %2852 = vmatmul.mubr.f32.gmra.mxu0 %v336
        %v2853 = vpop.f32.mrf.mxu0
        %v2854 = vadd.f32 %v2783, %v2853
        %v2855 = vpop.f32.mrf.mxu0
        %v2856 = vadd.f32 %v2785, %v2855
        %2857 = vdwg.mxu0
        %2858 = vmatprep.subr.mxu0 %v1999
        %2859 = vmatpush1.msra.mxu0 %v1998
        %2860 = vmatprep.subr.mxu0 %v1991
        %2861 = vmatpush1.msra.mxu0 %v1990
        %2862 = vmatprep.subr.mxu0 %v1983
        %2863 = vmatpush1.msra.mxu0 %v1982
        %2864 = vmatprep.subr.mxu0 %v1975
        %2865 = vmatpush1.msra.mxu0 %v1974
        %2866 = vmatprep.subr.mxu0 %v1967
        %2867 = vmatpush1.msra.mxu0 %v1966
        %2868 = vmatprep.subr.mxu0 %v1959
        %2869 = vmatpush1.msra.mxu0 %v1958
        %2870 = vmatprep.subr.mxu0 %v1951
        %2871 = vmatpush1.msra.mxu0 %v1950
        %2872 = vmatprep.subr.mxu0 %v1943
        %2873 = vmatpush1.msra.mxu0 %v1942
        %2874 = vmatprep.subr.mxu0 %v1935
        %2875 = vmatpush1.msra.mxu0 %v1934
        %2876 = vmatprep.subr.mxu0 %v1927
        %2877 = vmatpush1.msra.mxu0 %v1926
        %2878 = vmatprep.subr.mxu0 %v1919
        %2879 = vmatpush1.msra.mxu0 %v1918
        %2880 = vmatprep.subr.mxu0 %v1911
        %2881 = vmatpush1.msra.mxu0 %v1910
        %2882 = vmatprep.subr.mxu0 %v1903
        %2883 = vmatpush1.msra.mxu0 %v1902
        %2884 = vmatprep.subr.mxu0 %v1895
        %2885 = vmatpush1.msra.mxu0 %v1894
        %2886 = vmatprep.subr.mxu0 %v1887
        %2887 = vmatpush1.msra.mxu0 %v1886
        %2888 = vmatprep.subr.mxu0 %v1879
        %2889 = vmatpush1.msra.mxu0 %v1878
        %2890 = vmatprep.subr.mxu0 %v2127
        %2891 = vmatpush2.msra.mxu0 %v2126
        %2892 = vmatprep.subr.mxu0 %v2119
        %2893 = vmatpush2.msra.mxu0 %v2118
        %2894 = vmatprep.subr.mxu0 %v2111
        %2895 = vmatpush2.msra.mxu0 %v2110
        %2896 = vmatprep.subr.mxu0 %v2103
        %2897 = vmatpush2.msra.mxu0 %v2102
        %2898 = vmatprep.subr.mxu0 %v2095
        %2899 = vmatpush2.msra.mxu0 %v2094
        %2900 = vmatprep.subr.mxu0 %v2087
        %2901 = vmatpush2.msra.mxu0 %v2086
        %2902 = vmatprep.subr.mxu0 %v2079
        %2903 = vmatpush2.msra.mxu0 %v2078
        %2904 = vmatprep.subr.mxu0 %v2071
        %2905 = vmatpush2.msra.mxu0 %v2070
        %2906 = vmatprep.subr.mxu0 %v2063
        %2907 = vmatpush2.msra.mxu0 %v2062
        %2908 = vmatprep.subr.mxu0 %v2055
        %2909 = vmatpush2.msra.mxu0 %v2054
        %2910 = vmatprep.subr.mxu0 %v2047
        %2911 = vmatpush2.msra.mxu0 %v2046
        %2912 = vmatprep.subr.mxu0 %v2039
        %2913 = vmatpush2.msra.mxu0 %v2038
        %2914 = vmatprep.subr.mxu0 %v2031
        %2915 = vmatpush2.msra.mxu0 %v2030
        %2916 = vmatprep.subr.mxu0 %v2023
        %2917 = vmatpush2.msra.mxu0 %v2022
        %2918 = vmatprep.subr.mxu0 %v2015
        %2919 = vmatpush2.msra.mxu0 %v2014
        %2920 = vmatprep.subr.mxu0 %v2007
        %2921 = vmatpush2.msra.mxu0 %v2006
        %2922 = vmatprep.mubr.f32.mxu0 %v339
        %2923 = vmatmul.mubr.f32.gmra.mxu0 %v338
        %v2924 = vpop.f32.mrf.mxu0
        %v2925 = vadd.f32 %v2854, %v2924
        %v2926 = vpop.f32.mrf.mxu0
        %v2927 = vadd.f32 %v2856, %v2926
        %2928 = vdwg.mxu0
        %2929 = vmatprep.subr.mxu0 %v2255
        %2930 = vmatpush1.msra.mxu0 %v2254
        %2931 = vmatprep.subr.mxu0 %v2247
        %2932 = vmatpush1.msra.mxu0 %v2246
        %2933 = vmatprep.subr.mxu0 %v2239
        %2934 = vmatpush1.msra.mxu0 %v2238
        %2935 = vmatprep.subr.mxu0 %v2231
        %2936 = vmatpush1.msra.mxu0 %v2230
        %2937 = vmatprep.subr.mxu0 %v2223
        %2938 = vmatpush1.msra.mxu0 %v2222
        %2939 = vmatprep.subr.mxu0 %v2215
        %2940 = vmatpush1.msra.mxu0 %v2214
        %2941 = vmatprep.subr.mxu0 %v2207
        %2942 = vmatpush1.msra.mxu0 %v2206
        %2943 = vmatprep.subr.mxu0 %v2199
        %2944 = vmatpush1.msra.mxu0 %v2198
        %2945 = vmatprep.subr.mxu0 %v2191
        %2946 = vmatpush1.msra.mxu0 %v2190
        %2947 = vmatprep.subr.mxu0 %v2183
        %2948 = vmatpush1.msra.mxu0 %v2182
        %2949 = vmatprep.subr.mxu0 %v2175
        %2950 = vmatpush1.msra.mxu0 %v2174
        %2951 = vmatprep.subr.mxu0 %v2167
        %2952 = vmatpush1.msra.mxu0 %v2166
        %2953 = vmatprep.subr.mxu0 %v2159
        %2954 = vmatpush1.msra.mxu0 %v2158
        %2955 = vmatprep.subr.mxu0 %v2151
        %2956 = vmatpush1.msra.mxu0 %v2150
        %2957 = vmatprep.subr.mxu0 %v2143
        %2958 = vmatpush1.msra.mxu0 %v2142
        %2959 = vmatprep.subr.mxu0 %v2135
        %2960 = vmatpush1.msra.mxu0 %v2134
        %2961 = vmatprep.subr.mxu0 %v2383
        %2962 = vmatpush2.msra.mxu0 %v2382
        %2963 = vmatprep.subr.mxu0 %v2375
        %2964 = vmatpush2.msra.mxu0 %v2374
        %2965 = vmatprep.subr.mxu0 %v2367
        %2966 = vmatpush2.msra.mxu0 %v2366
        %2967 = vmatprep.subr.mxu0 %v2359
        %2968 = vmatpush2.msra.mxu0 %v2358
        %2969 = vmatprep.subr.mxu0 %v2351
        %2970 = vmatpush2.msra.mxu0 %v2350
        %2971 = vmatprep.subr.mxu0 %v2343
        %2972 = vmatpush2.msra.mxu0 %v2342
        %2973 = vmatprep.subr.mxu0 %v2335
        %2974 = vmatpush2.msra.mxu0 %v2334
        %2975 = vmatprep.subr.mxu0 %v2327
        %2976 = vmatpush2.msra.mxu0 %v2326
        %2977 = vmatprep.subr.mxu0 %v2319
        %2978 = vmatpush2.msra.mxu0 %v2318
        %2979 = vmatprep.subr.mxu0 %v2311
        %2980 = vmatpush2.msra.mxu0 %v2310
        %2981 = vmatprep.subr.mxu0 %v2303
        %2982 = vmatpush2.msra.mxu0 %v2302
        %2983 = vmatprep.subr.mxu0 %v2295
        %2984 = vmatpush2.msra.mxu0 %v2294
        %2985 = vmatprep.subr.mxu0 %v2287
        %2986 = vmatpush2.msra.mxu0 %v2286
        %2987 = vmatprep.subr.mxu0 %v2279
        %2988 = vmatpush2.msra.mxu0 %v2278
        %2989 = vmatprep.subr.mxu0 %v2271
        %2990 = vmatpush2.msra.mxu0 %v2270
        %2991 = vmatprep.subr.mxu0 %v2263
        %2992 = vmatpush2.msra.mxu0 %v2262
        %2993 = vmatprep.mubr.f32.mxu0 %v341
        %2994 = vmatmul.mubr.f32.gmra.mxu0 %v340
        %v2995 = vpop.f32.mrf.mxu0
        %v2996 = vadd.f32 %v2925, %v2995
        %v2997 = vpop.f32.mrf.mxu0
        %v2998 = vadd.f32 %v2927, %v2997
        %2999 = vdwg.mxu0
        %3000 = vmatprep.subr.mxu0 %v465
        %3001 = vmatpush1.msra.mxu0 %v464
        %3002 = vmatprep.subr.mxu0 %v457
        %3003 = vmatpush1.msra.mxu0 %v456
        %3004 = vmatprep.subr.mxu0 %v449
        %3005 = vmatpush1.msra.mxu0 %v448
        %3006 = vmatprep.subr.mxu0 %v441
        %3007 = vmatpush1.msra.mxu0 %v440
        %3008 = vmatprep.subr.mxu0 %v433
        %3009 = vmatpush1.msra.mxu0 %v432
        %3010 = vmatprep.subr.mxu0 %v425
        %3011 = vmatpush1.msra.mxu0 %v424
        %3012 = vmatprep.subr.mxu0 %v417
        %3013 = vmatpush1.msra.mxu0 %v416
        %3014 = vmatprep.subr.mxu0 %v409
        %3015 = vmatpush1.msra.mxu0 %v408
        %3016 = vmatprep.subr.mxu0 %v401
        %3017 = vmatpush1.msra.mxu0 %v400
        %3018 = vmatprep.subr.mxu0 %v393
        %3019 = vmatpush1.msra.mxu0 %v392
        %3020 = vmatprep.subr.mxu0 %v385
        %3021 = vmatpush1.msra.mxu0 %v384
        %3022 = vmatprep.subr.mxu0 %v377
        %3023 = vmatpush1.msra.mxu0 %v376
        %3024 = vmatprep.subr.mxu0 %v369
        %3025 = vmatpush1.msra.mxu0 %v368
        %3026 = vmatprep.subr.mxu0 %v361
        %3027 = vmatpush1.msra.mxu0 %v360
        %3028 = vmatprep.subr.mxu0 %v353
        %3029 = vmatpush1.msra.mxu0 %v352
        %3030 = vmatprep.subr.mxu0 %v345
        %3031 = vmatpush1.msra.mxu0 %v344
        %3032 = vmatprep.subr.mxu0 %v593
        %3033 = vmatpush2.msra.mxu0 %v592
        %3034 = vmatprep.subr.mxu0 %v585
        %3035 = vmatpush2.msra.mxu0 %v584
        %3036 = vmatprep.subr.mxu0 %v577
        %3037 = vmatpush2.msra.mxu0 %v576
        %3038 = vmatprep.subr.mxu0 %v569
        %3039 = vmatpush2.msra.mxu0 %v568
        %3040 = vmatprep.subr.mxu0 %v561
        %3041 = vmatpush2.msra.mxu0 %v560
        %3042 = vmatprep.subr.mxu0 %v553
        %3043 = vmatpush2.msra.mxu0 %v552
        %3044 = vmatprep.subr.mxu0 %v545
        %3045 = vmatpush2.msra.mxu0 %v544
        %3046 = vmatprep.subr.mxu0 %v537
        %3047 = vmatpush2.msra.mxu0 %v536
        %3048 = vmatprep.subr.mxu0 %v529
        %3049 = vmatpush2.msra.mxu0 %v528
        %3050 = vmatprep.subr.mxu0 %v521
        %3051 = vmatpush2.msra.mxu0 %v520
        %3052 = vmatprep.subr.mxu0 %v513
        %3053 = vmatpush2.msra.mxu0 %v512
        %3054 = vmatprep.subr.mxu0 %v505
        %3055 = vmatpush2.msra.mxu0 %v504
        %3056 = vmatprep.subr.mxu0 %v497
        %3057 = vmatpush2.msra.mxu0 %v496
        %3058 = vmatprep.subr.mxu0 %v489
        %3059 = vmatpush2.msra.mxu0 %v488
        %3060 = vmatprep.subr.mxu0 %v481
        %3061 = vmatpush2.msra.mxu0 %v480
        %3062 = vmatprep.subr.mxu0 %v473
        %3063 = vmatpush2.msra.mxu0 %v472
        %3064 = vmatprep.mubr.f32.mxu0 %v327
        %3065 = vmatmul.mubr.f32.gmra.mxu0 %v326
        %v3066 = vpop.f32.mrf.mxu0
        %v3067 = vadd.f32 %v2403, %v3066
        %v3068 = vpop.f32.mrf.mxu0
        %v3069 = vadd.f32 %v2407, %v3068
        %3070 = vdwg.mxu0
        %3071 = vmatprep.subr.mxu0 %v721
        %3072 = vmatpush1.msra.mxu0 %v720
        %3073 = vmatprep.subr.mxu0 %v713
        %3074 = vmatpush1.msra.mxu0 %v712
        %3075 = vmatprep.subr.mxu0 %v705
        %3076 = vmatpush1.msra.mxu0 %v704
        %3077 = vmatprep.subr.mxu0 %v697
        %3078 = vmatpush1.msra.mxu0 %v696
        %3079 = vmatprep.subr.mxu0 %v689
        %3080 = vmatpush1.msra.mxu0 %v688
        %3081 = vmatprep.subr.mxu0 %v681
        %3082 = vmatpush1.msra.mxu0 %v680
        %3083 = vmatprep.subr.mxu0 %v673
        %3084 = vmatpush1.msra.mxu0 %v672
        %3085 = vmatprep.subr.mxu0 %v665
        %3086 = vmatpush1.msra.mxu0 %v664
        %3087 = vmatprep.subr.mxu0 %v657
        %3088 = vmatpush1.msra.mxu0 %v656
        %3089 = vmatprep.subr.mxu0 %v649
        %3090 = vmatpush1.msra.mxu0 %v648
        %3091 = vmatprep.subr.mxu0 %v641
        %3092 = vmatpush1.msra.mxu0 %v640
        %3093 = vmatprep.subr.mxu0 %v633
        %3094 = vmatpush1.msra.mxu0 %v632
        %3095 = vmatprep.subr.mxu0 %v625
        %3096 = vmatpush1.msra.mxu0 %v624
        %3097 = vmatprep.subr.mxu0 %v617
        %3098 = vmatpush1.msra.mxu0 %v616
        %3099 = vmatprep.subr.mxu0 %v609
        %3100 = vmatpush1.msra.mxu0 %v608
        %3101 = vmatprep.subr.mxu0 %v601
        %3102 = vmatpush1.msra.mxu0 %v600
        %3103 = vmatprep.subr.mxu0 %v849
        %3104 = vmatpush2.msra.mxu0 %v848
        %3105 = vmatprep.subr.mxu0 %v841
        %3106 = vmatpush2.msra.mxu0 %v840
        %3107 = vmatprep.subr.mxu0 %v833
        %3108 = vmatpush2.msra.mxu0 %v832
        %3109 = vmatprep.subr.mxu0 %v825
        %3110 = vmatpush2.msra.mxu0 %v824
        %3111 = vmatprep.subr.mxu0 %v817
        %3112 = vmatpush2.msra.mxu0 %v816
        %3113 = vmatprep.subr.mxu0 %v809
        %3114 = vmatpush2.msra.mxu0 %v808
        %3115 = vmatprep.subr.mxu0 %v801
        %3116 = vmatpush2.msra.mxu0 %v800
        %3117 = vmatprep.subr.mxu0 %v793
        %3118 = vmatpush2.msra.mxu0 %v792
        %3119 = vmatprep.subr.mxu0 %v785
        %3120 = vmatpush2.msra.mxu0 %v784
        %3121 = vmatprep.subr.mxu0 %v777
        %3122 = vmatpush2.msra.mxu0 %v776
        %3123 = vmatprep.subr.mxu0 %v769
        %3124 = vmatpush2.msra.mxu0 %v768
        %3125 = vmatprep.subr.mxu0 %v761
        %3126 = vmatpush2.msra.mxu0 %v760
        %3127 = vmatprep.subr.mxu0 %v753
        %3128 = vmatpush2.msra.mxu0 %v752
        %3129 = vmatprep.subr.mxu0 %v745
        %3130 = vmatpush2.msra.mxu0 %v744
        %3131 = vmatprep.subr.mxu0 %v737
        %3132 = vmatpush2.msra.mxu0 %v736
        %3133 = vmatprep.subr.mxu0 %v729
        %3134 = vmatpush2.msra.mxu0 %v728
        %3135 = vmatprep.mubr.f32.mxu0 %v329
        %3136 = vmatmul.mubr.f32.gmra.mxu0 %v328
        %v3137 = vpop.f32.mrf.mxu0
        %v3138 = vadd.f32 %v3067, %v3137
        %v3139 = vpop.f32.mrf.mxu0
        %v3140 = vadd.f32 %v3069, %v3139
        %3141 = vdwg.mxu0
        %3142 = vmatprep.subr.mxu0 %v977
        %3143 = vmatpush1.msra.mxu0 %v976
        %3144 = vmatprep.subr.mxu0 %v969
        %3145 = vmatpush1.msra.mxu0 %v968
        %3146 = vmatprep.subr.mxu0 %v961
        %3147 = vmatpush1.msra.mxu0 %v960
        %3148 = vmatprep.subr.mxu0 %v953
        %3149 = vmatpush1.msra.mxu0 %v952
        %3150 = vmatprep.subr.mxu0 %v945
        %3151 = vmatpush1.msra.mxu0 %v944
        %3152 = vmatprep.subr.mxu0 %v937
        %3153 = vmatpush1.msra.mxu0 %v936
        %3154 = vmatprep.subr.mxu0 %v929
        %3155 = vmatpush1.msra.mxu0 %v928
        %3156 = vmatprep.subr.mxu0 %v921
        %3157 = vmatpush1.msra.mxu0 %v920
        %3158 = vmatprep.subr.mxu0 %v913
        %3159 = vmatpush1.msra.mxu0 %v912
        %3160 = vmatprep.subr.mxu0 %v905
        %3161 = vmatpush1.msra.mxu0 %v904
        %3162 = vmatprep.subr.mxu0 %v897
        %3163 = vmatpush1.msra.mxu0 %v896
        %3164 = vmatprep.subr.mxu0 %v889
        %3165 = vmatpush1.msra.mxu0 %v888
        %3166 = vmatprep.subr.mxu0 %v881
        %3167 = vmatpush1.msra.mxu0 %v880
        %3168 = vmatprep.subr.mxu0 %v873
        %3169 = vmatpush1.msra.mxu0 %v872
        %3170 = vmatprep.subr.mxu0 %v865
        %3171 = vmatpush1.msra.mxu0 %v864
        %3172 = vmatprep.subr.mxu0 %v857
        %3173 = vmatpush1.msra.mxu0 %v856
        %3174 = vmatprep.subr.mxu0 %v1105
        %3175 = vmatpush2.msra.mxu0 %v1104
        %3176 = vmatprep.subr.mxu0 %v1097
        %3177 = vmatpush2.msra.mxu0 %v1096
        %3178 = vmatprep.subr.mxu0 %v1089
        %3179 = vmatpush2.msra.mxu0 %v1088
        %3180 = vmatprep.subr.mxu0 %v1081
        %3181 = vmatpush2.msra.mxu0 %v1080
        %3182 = vmatprep.subr.mxu0 %v1073
        %3183 = vmatpush2.msra.mxu0 %v1072
        %3184 = vmatprep.subr.mxu0 %v1065
        %3185 = vmatpush2.msra.mxu0 %v1064
        %3186 = vmatprep.subr.mxu0 %v1057
        %3187 = vmatpush2.msra.mxu0 %v1056
        %3188 = vmatprep.subr.mxu0 %v1049
        %3189 = vmatpush2.msra.mxu0 %v1048
        %3190 = vmatprep.subr.mxu0 %v1041
        %3191 = vmatpush2.msra.mxu0 %v1040
        %3192 = vmatprep.subr.mxu0 %v1033
        %3193 = vmatpush2.msra.mxu0 %v1032
        %3194 = vmatprep.subr.mxu0 %v1025
        %3195 = vmatpush2.msra.mxu0 %v1024
        %3196 = vmatprep.subr.mxu0 %v1017
        %3197 = vmatpush2.msra.mxu0 %v1016
        %3198 = vmatprep.subr.mxu0 %v1009
        %3199 = vmatpush2.msra.mxu0 %v1008
        %3200 = vmatprep.subr.mxu0 %v1001
        %3201 = vmatpush2.msra.mxu0 %v1000
        %3202 = vmatprep.subr.mxu0 %v993
        %3203 = vmatpush2.msra.mxu0 %v992
        %3204 = vmatprep.subr.mxu0 %v985
        %3205 = vmatpush2.msra.mxu0 %v984
        %3206 = vmatprep.mubr.f32.mxu0 %v331
        %3207 = vmatmul.mubr.f32.gmra.mxu0 %v330
        %v3208 = vpop.f32.mrf.mxu0
        %v3209 = vadd.f32 %v3138, %v3208
        %v3210 = vpop.f32.mrf.mxu0
        %v3211 = vadd.f32 %v3140, %v3210
        %3212 = vdwg.mxu0
        %3213 = vmatprep.subr.mxu0 %v1233
        %3214 = vmatpush1.msra.mxu0 %v1232
        %3215 = vmatprep.subr.mxu0 %v1225
        %3216 = vmatpush1.msra.mxu0 %v1224
        %3217 = vmatprep.subr.mxu0 %v1217
        %3218 = vmatpush1.msra.mxu0 %v1216
        %3219 = vmatprep.subr.mxu0 %v1209
        %3220 = vmatpush1.msra.mxu0 %v1208
        %3221 = vmatprep.subr.mxu0 %v1201
        %3222 = vmatpush1.msra.mxu0 %v1200
        %3223 = vmatprep.subr.mxu0 %v1193
        %3224 = vmatpush1.msra.mxu0 %v1192
        %3225 = vmatprep.subr.mxu0 %v1185
        %3226 = vmatpush1.msra.mxu0 %v1184
        %3227 = vmatprep.subr.mxu0 %v1177
        %3228 = vmatpush1.msra.mxu0 %v1176
        %3229 = vmatprep.subr.mxu0 %v1169
        %3230 = vmatpush1.msra.mxu0 %v1168
        %3231 = vmatprep.subr.mxu0 %v1161
        %3232 = vmatpush1.msra.mxu0 %v1160
        %3233 = vmatprep.subr.mxu0 %v1153
        %3234 = vmatpush1.msra.mxu0 %v1152
        %3235 = vmatprep.subr.mxu0 %v1145
        %3236 = vmatpush1.msra.mxu0 %v1144
        %3237 = vmatprep.subr.mxu0 %v1137
        %3238 = vmatpush1.msra.mxu0 %v1136
        %3239 = vmatprep.subr.mxu0 %v1129
        %3240 = vmatpush1.msra.mxu0 %v1128
        %3241 = vmatprep.subr.mxu0 %v1121
        %3242 = vmatpush1.msra.mxu0 %v1120
        %3243 = vmatprep.subr.mxu0 %v1113
        %3244 = vmatpush1.msra.mxu0 %v1112
        %3245 = vmatprep.subr.mxu0 %v1361
        %3246 = vmatpush2.msra.mxu0 %v1360
        %3247 = vmatprep.subr.mxu0 %v1353
        %3248 = vmatpush2.msra.mxu0 %v1352
        %3249 = vmatprep.subr.mxu0 %v1345
        %3250 = vmatpush2.msra.mxu0 %v1344
        %3251 = vmatprep.subr.mxu0 %v1337
        %3252 = vmatpush2.msra.mxu0 %v1336
        %3253 = vmatprep.subr.mxu0 %v1329
        %3254 = vmatpush2.msra.mxu0 %v1328
        %3255 = vmatprep.subr.mxu0 %v1321
        %3256 = vmatpush2.msra.mxu0 %v1320
        %3257 = vmatprep.subr.mxu0 %v1313
        %3258 = vmatpush2.msra.mxu0 %v1312
        %3259 = vmatprep.subr.mxu0 %v1305
        %3260 = vmatpush2.msra.mxu0 %v1304
        %3261 = vmatprep.subr.mxu0 %v1297
        %3262 = vmatpush2.msra.mxu0 %v1296
        %3263 = vmatprep.subr.mxu0 %v1289
        %3264 = vmatpush2.msra.mxu0 %v1288
        %3265 = vmatprep.subr.mxu0 %v1281
        %3266 = vmatpush2.msra.mxu0 %v1280
        %3267 = vmatprep.subr.mxu0 %v1273
        %3268 = vmatpush2.msra.mxu0 %v1272
        %3269 = vmatprep.subr.mxu0 %v1265
        %3270 = vmatpush2.msra.mxu0 %v1264
        %3271 = vmatprep.subr.mxu0 %v1257
        %3272 = vmatpush2.msra.mxu0 %v1256
        %3273 = vmatprep.subr.mxu0 %v1249
        %3274 = vmatpush2.msra.mxu0 %v1248
        %3275 = vmatprep.subr.mxu0 %v1241
        %3276 = vmatpush2.msra.mxu0 %v1240
        %3277 = vmatprep.mubr.f32.mxu0 %v333
        %3278 = vmatmul.mubr.f32.gmra.mxu0 %v332
        %v3279 = vpop.f32.mrf.mxu0
        %v3280 = vadd.f32 %v3209, %v3279
        %v3281 = vpop.f32.mrf.mxu0
        %v3282 = vadd.f32 %v3211, %v3281
        %3283 = vdwg.mxu0
        %3284 = vmatprep.subr.mxu0 %v1489
        %3285 = vmatpush1.msra.mxu0 %v1488
        %3286 = vmatprep.subr.mxu0 %v1481
        %3287 = vmatpush1.msra.mxu0 %v1480
        %3288 = vmatprep.subr.mxu0 %v1473
        %3289 = vmatpush1.msra.mxu0 %v1472
        %3290 = vmatprep.subr.mxu0 %v1465
        %3291 = vmatpush1.msra.mxu0 %v1464
        %3292 = vmatprep.subr.mxu0 %v1457
        %3293 = vmatpush1.msra.mxu0 %v1456
        %3294 = vmatprep.subr.mxu0 %v1449
        %3295 = vmatpush1.msra.mxu0 %v1448
        %3296 = vmatprep.subr.mxu0 %v1441
        %3297 = vmatpush1.msra.mxu0 %v1440
        %3298 = vmatprep.subr.mxu0 %v1433
        %3299 = vmatpush1.msra.mxu0 %v1432
        %3300 = vmatprep.subr.mxu0 %v1425
        %3301 = vmatpush1.msra.mxu0 %v1424
        %3302 = vmatprep.subr.mxu0 %v1417
        %3303 = vmatpush1.msra.mxu0 %v1416
        %3304 = vmatprep.subr.mxu0 %v1409
        %3305 = vmatpush1.msra.mxu0 %v1408
        %3306 = vmatprep.subr.mxu0 %v1401
        %3307 = vmatpush1.msra.mxu0 %v1400
        %3308 = vmatprep.subr.mxu0 %v1393
        %3309 = vmatpush1.msra.mxu0 %v1392
        %3310 = vmatprep.subr.mxu0 %v1385
        %3311 = vmatpush1.msra.mxu0 %v1384
        %3312 = vmatprep.subr.mxu0 %v1377
        %3313 = vmatpush1.msra.mxu0 %v1376
        %3314 = vmatprep.subr.mxu0 %v1369
        %3315 = vmatpush1.msra.mxu0 %v1368
        %3316 = vmatprep.subr.mxu0 %v1617
        %3317 = vmatpush2.msra.mxu0 %v1616
        %3318 = vmatprep.subr.mxu0 %v1609
        %3319 = vmatpush2.msra.mxu0 %v1608
        %3320 = vmatprep.subr.mxu0 %v1601
        %3321 = vmatpush2.msra.mxu0 %v1600
        %3322 = vmatprep.subr.mxu0 %v1593
        %3323 = vmatpush2.msra.mxu0 %v1592
        %3324 = vmatprep.subr.mxu0 %v1585
        %3325 = vmatpush2.msra.mxu0 %v1584
        %3326 = vmatprep.subr.mxu0 %v1577
        %3327 = vmatpush2.msra.mxu0 %v1576
        %3328 = vmatprep.subr.mxu0 %v1569
        %3329 = vmatpush2.msra.mxu0 %v1568
        %3330 = vmatprep.subr.mxu0 %v1561
        %3331 = vmatpush2.msra.mxu0 %v1560
        %3332 = vmatprep.subr.mxu0 %v1553
        %3333 = vmatpush2.msra.mxu0 %v1552
        %3334 = vmatprep.subr.mxu0 %v1545
        %3335 = vmatpush2.msra.mxu0 %v1544
        %3336 = vmatprep.subr.mxu0 %v1537
        %3337 = vmatpush2.msra.mxu0 %v1536
        %3338 = vmatprep.subr.mxu0 %v1529
        %3339 = vmatpush2.msra.mxu0 %v1528
        %3340 = vmatprep.subr.mxu0 %v1521
        %3341 = vmatpush2.msra.mxu0 %v1520
        %3342 = vmatprep.subr.mxu0 %v1513
        %3343 = vmatpush2.msra.mxu0 %v1512
        %3344 = vmatprep.subr.mxu0 %v1505
        %3345 = vmatpush2.msra.mxu0 %v1504
        %3346 = vmatprep.subr.mxu0 %v1497
        %3347 = vmatpush2.msra.mxu0 %v1496
        %3348 = vmatprep.mubr.f32.mxu0 %v335
        %3349 = vmatmul.mubr.f32.gmra.mxu0 %v334
        %v3350 = vpop.f32.mrf.mxu0
        %v3351 = vadd.f32 %v3280, %v3350
        %v3352 = vpop.f32.mrf.mxu0
        %v3353 = vadd.f32 %v3282, %v3352
        %3354 = vdwg.mxu0
        %3355 = vmatprep.subr.mxu0 %v1745
        %3356 = vmatpush1.msra.mxu0 %v1744
        %3357 = vmatprep.subr.mxu0 %v1737
        %3358 = vmatpush1.msra.mxu0 %v1736
        %3359 = vmatprep.subr.mxu0 %v1729
        %3360 = vmatpush1.msra.mxu0 %v1728
        %3361 = vmatprep.subr.mxu0 %v1721
        %3362 = vmatpush1.msra.mxu0 %v1720
        %3363 = vmatprep.subr.mxu0 %v1713
        %3364 = vmatpush1.msra.mxu0 %v1712
        %3365 = vmatprep.subr.mxu0 %v1705
        %3366 = vmatpush1.msra.mxu0 %v1704
        %3367 = vmatprep.subr.mxu0 %v1697
        %3368 = vmatpush1.msra.mxu0 %v1696
        %3369 = vmatprep.subr.mxu0 %v1689
        %3370 = vmatpush1.msra.mxu0 %v1688
        %3371 = vmatprep.subr.mxu0 %v1681
        %3372 = vmatpush1.msra.mxu0 %v1680
        %3373 = vmatprep.subr.mxu0 %v1673
        %3374 = vmatpush1.msra.mxu0 %v1672
        %3375 = vmatprep.subr.mxu0 %v1665
        %3376 = vmatpush1.msra.mxu0 %v1664
        %3377 = vmatprep.subr.mxu0 %v1657
        %3378 = vmatpush1.msra.mxu0 %v1656
        %3379 = vmatprep.subr.mxu0 %v1649
        %3380 = vmatpush1.msra.mxu0 %v1648
        %3381 = vmatprep.subr.mxu0 %v1641
        %3382 = vmatpush1.msra.mxu0 %v1640
        %3383 = vmatprep.subr.mxu0 %v1633
        %3384 = vmatpush1.msra.mxu0 %v1632
        %3385 = vmatprep.subr.mxu0 %v1625
        %3386 = vmatpush1.msra.mxu0 %v1624
        %3387 = vmatprep.subr.mxu0 %v1873
        %3388 = vmatpush2.msra.mxu0 %v1872
        %3389 = vmatprep.subr.mxu0 %v1865
        %3390 = vmatpush2.msra.mxu0 %v1864
        %3391 = vmatprep.subr.mxu0 %v1857
        %3392 = vmatpush2.msra.mxu0 %v1856
        %3393 = vmatprep.subr.mxu0 %v1849
        %3394 = vmatpush2.msra.mxu0 %v1848
        %3395 = vmatprep.subr.mxu0 %v1841
        %3396 = vmatpush2.msra.mxu0 %v1840
        %3397 = vmatprep.subr.mxu0 %v1833
        %3398 = vmatpush2.msra.mxu0 %v1832
        %3399 = vmatprep.subr.mxu0 %v1825
        %3400 = vmatpush2.msra.mxu0 %v1824
        %3401 = vmatprep.subr.mxu0 %v1817
        %3402 = vmatpush2.msra.mxu0 %v1816
        %3403 = vmatprep.subr.mxu0 %v1809
        %3404 = vmatpush2.msra.mxu0 %v1808
        %3405 = vmatprep.subr.mxu0 %v1801
        %3406 = vmatpush2.msra.mxu0 %v1800
        %3407 = vmatprep.subr.mxu0 %v1793
        %3408 = vmatpush2.msra.mxu0 %v1792
        %3409 = vmatprep.subr.mxu0 %v1785
        %3410 = vmatpush2.msra.mxu0 %v1784
        %3411 = vmatprep.subr.mxu0 %v1777
        %3412 = vmatpush2.msra.mxu0 %v1776
        %3413 = vmatprep.subr.mxu0 %v1769
        %3414 = vmatpush2.msra.mxu0 %v1768
        %3415 = vmatprep.subr.mxu0 %v1761
        %3416 = vmatpush2.msra.mxu0 %v1760
        %3417 = vmatprep.subr.mxu0 %v1753
        %3418 = vmatpush2.msra.mxu0 %v1752
        %3419 = vmatprep.mubr.f32.mxu0 %v337
        %3420 = vmatmul.mubr.f32.gmra.mxu0 %v336
        %v3421 = vpop.f32.mrf.mxu0
        %v3422 = vadd.f32 %v3351, %v3421
        %v3423 = vpop.f32.mrf.mxu0
        %v3424 = vadd.f32 %v3353, %v3423
        %3425 = vdwg.mxu0
        %3426 = vmatprep.subr.mxu0 %v2001
        %3427 = vmatpush1.msra.mxu0 %v2000
        %3428 = vmatprep.subr.mxu0 %v1993
        %3429 = vmatpush1.msra.mxu0 %v1992
        %3430 = vmatprep.subr.mxu0 %v1985
        %3431 = vmatpush1.msra.mxu0 %v1984
        %3432 = vmatprep.subr.mxu0 %v1977
        %3433 = vmatpush1.msra.mxu0 %v1976
        %3434 = vmatprep.subr.mxu0 %v1969
        %3435 = vmatpush1.msra.mxu0 %v1968
        %3436 = vmatprep.subr.mxu0 %v1961
        %3437 = vmatpush1.msra.mxu0 %v1960
        %3438 = vmatprep.subr.mxu0 %v1953
        %3439 = vmatpush1.msra.mxu0 %v1952
        %3440 = vmatprep.subr.mxu0 %v1945
        %3441 = vmatpush1.msra.mxu0 %v1944
        %3442 = vmatprep.subr.mxu0 %v1937
        %3443 = vmatpush1.msra.mxu0 %v1936
        %3444 = vmatprep.subr.mxu0 %v1929
        %3445 = vmatpush1.msra.mxu0 %v1928
        %3446 = vmatprep.subr.mxu0 %v1921
        %3447 = vmatpush1.msra.mxu0 %v1920
        %3448 = vmatprep.subr.mxu0 %v1913
        %3449 = vmatpush1.msra.mxu0 %v1912
        %3450 = vmatprep.subr.mxu0 %v1905
        %3451 = vmatpush1.msra.mxu0 %v1904
        %3452 = vmatprep.subr.mxu0 %v1897
        %3453 = vmatpush1.msra.mxu0 %v1896
        %3454 = vmatprep.subr.mxu0 %v1889
        %3455 = vmatpush1.msra.mxu0 %v1888
        %3456 = vmatprep.subr.mxu0 %v1881
        %3457 = vmatpush1.msra.mxu0 %v1880
        %3458 = vmatprep.subr.mxu0 %v2129
        %3459 = vmatpush2.msra.mxu0 %v2128
        %3460 = vmatprep.subr.mxu0 %v2121
        %3461 = vmatpush2.msra.mxu0 %v2120
        %3462 = vmatprep.subr.mxu0 %v2113
        %3463 = vmatpush2.msra.mxu0 %v2112
        %3464 = vmatprep.subr.mxu0 %v2105
        %3465 = vmatpush2.msra.mxu0 %v2104
        %3466 = vmatprep.subr.mxu0 %v2097
        %3467 = vmatpush2.msra.mxu0 %v2096
        %3468 = vmatprep.subr.mxu0 %v2089
        %3469 = vmatpush2.msra.mxu0 %v2088
        %3470 = vmatprep.subr.mxu0 %v2081
        %3471 = vmatpush2.msra.mxu0 %v2080
        %3472 = vmatprep.subr.mxu0 %v2073
        %3473 = vmatpush2.msra.mxu0 %v2072
        %3474 = vmatprep.subr.mxu0 %v2065
        %3475 = vmatpush2.msra.mxu0 %v2064
        %3476 = vmatprep.subr.mxu0 %v2057
        %3477 = vmatpush2.msra.mxu0 %v2056
        %3478 = vmatprep.subr.mxu0 %v2049
        %3479 = vmatpush2.msra.mxu0 %v2048
        %3480 = vmatprep.subr.mxu0 %v2041
        %3481 = vmatpush2.msra.mxu0 %v2040
        %3482 = vmatprep.subr.mxu0 %v2033
        %3483 = vmatpush2.msra.mxu0 %v2032
        %3484 = vmatprep.subr.mxu0 %v2025
        %3485 = vmatpush2.msra.mxu0 %v2024
        %3486 = vmatprep.subr.mxu0 %v2017
        %3487 = vmatpush2.msra.mxu0 %v2016
        %3488 = vmatprep.subr.mxu0 %v2009
        %3489 = vmatpush2.msra.mxu0 %v2008
        %3490 = vmatprep.mubr.f32.mxu0 %v339
        %3491 = vmatmul.mubr.f32.gmra.mxu0 %v338
        %v3492 = vpop.f32.mrf.mxu0
        %v3493 = vadd.f32 %v3422, %v3492
        %v3494 = vpop.f32.mrf.mxu0
        %v3495 = vadd.f32 %v3424, %v3494
        %3496 = vdwg.mxu0
        %3497 = vmatprep.subr.mxu0 %v2257
        %3498 = vmatpush1.msra.mxu0 %v2256
        %3499 = vmatprep.subr.mxu0 %v2249
        %3500 = vmatpush1.msra.mxu0 %v2248
        %3501 = vmatprep.subr.mxu0 %v2241
        %3502 = vmatpush1.msra.mxu0 %v2240
        %3503 = vmatprep.subr.mxu0 %v2233
        %3504 = vmatpush1.msra.mxu0 %v2232
        %3505 = vmatprep.subr.mxu0 %v2225
        %3506 = vmatpush1.msra.mxu0 %v2224
        %3507 = vmatprep.subr.mxu0 %v2217
        %3508 = vmatpush1.msra.mxu0 %v2216
        %3509 = vmatprep.subr.mxu0 %v2209
        %3510 = vmatpush1.msra.mxu0 %v2208
        %3511 = vmatprep.subr.mxu0 %v2201
        %3512 = vmatpush1.msra.mxu0 %v2200
        %3513 = vmatprep.subr.mxu0 %v2193
        %3514 = vmatpush1.msra.mxu0 %v2192
        %3515 = vmatprep.subr.mxu0 %v2185
        %3516 = vmatpush1.msra.mxu0 %v2184
        %3517 = vmatprep.subr.mxu0 %v2177
        %3518 = vmatpush1.msra.mxu0 %v2176
        %3519 = vmatprep.subr.mxu0 %v2169
        %3520 = vmatpush1.msra.mxu0 %v2168
        %3521 = vmatprep.subr.mxu0 %v2161
        %3522 = vmatpush1.msra.mxu0 %v2160
        %3523 = vmatprep.subr.mxu0 %v2153
        %3524 = vmatpush1.msra.mxu0 %v2152
        %3525 = vmatprep.subr.mxu0 %v2145
        %3526 = vmatpush1.msra.mxu0 %v2144
        %3527 = vmatprep.subr.mxu0 %v2137
        %3528 = vmatpush1.msra.mxu0 %v2136
        %3529 = vmatprep.subr.mxu0 %v2385
        %3530 = vmatpush2.msra.mxu0 %v2384
        %3531 = vmatprep.subr.mxu0 %v2377
        %3532 = vmatpush2.msra.mxu0 %v2376
        %3533 = vmatprep.subr.mxu0 %v2369
        %3534 = vmatpush2.msra.mxu0 %v2368
        %3535 = vmatprep.subr.mxu0 %v2361
        %3536 = vmatpush2.msra.mxu0 %v2360
        %3537 = vmatprep.subr.mxu0 %v2353
        %3538 = vmatpush2.msra.mxu0 %v2352
        %3539 = vmatprep.subr.mxu0 %v2345
        %3540 = vmatpush2.msra.mxu0 %v2344
        %3541 = vmatprep.subr.mxu0 %v2337
        %3542 = vmatpush2.msra.mxu0 %v2336
        %3543 = vmatprep.subr.mxu0 %v2329
        %3544 = vmatpush2.msra.mxu0 %v2328
        %3545 = vmatprep.subr.mxu0 %v2321
        %3546 = vmatpush2.msra.mxu0 %v2320
        %3547 = vmatprep.subr.mxu0 %v2313
        %3548 = vmatpush2.msra.mxu0 %v2312
        %3549 = vmatprep.subr.mxu0 %v2305
        %3550 = vmatpush2.msra.mxu0 %v2304
        %3551 = vmatprep.subr.mxu0 %v2297
        %3552 = vmatpush2.msra.mxu0 %v2296
        %3553 = vmatprep.subr.mxu0 %v2289
        %3554 = vmatpush2.msra.mxu0 %v2288
        %3555 = vmatprep.subr.mxu0 %v2281
        %3556 = vmatpush2.msra.mxu0 %v2280
        %3557 = vmatprep.subr.mxu0 %v2273
        %3558 = vmatpush2.msra.mxu0 %v2272
        %3559 = vmatprep.subr.mxu0 %v2265
        %3560 = vmatpush2.msra.mxu0 %v2264
        %3561 = vmatprep.mubr.f32.mxu0 %v341
        %3562 = vmatmul.mubr.f32.gmra.mxu0 %v340
        %v3563 = vpop.f32.mrf.mxu0
        %v3564 = vadd.f32 %v3493, %v3563
        %v3565 = vpop.f32.mrf.mxu0
        %v3566 = vadd.f32 %v3495, %v3565
        %3567 = vdwg.mxu0
        %3568 = vmatprep.subr.mxu0 %v467
        %3569 = vmatpush1.msra.mxu0 %v466
        %3570 = vmatprep.subr.mxu0 %v459
        %3571 = vmatpush1.msra.mxu0 %v458
        %3572 = vmatprep.subr.mxu0 %v451
        %3573 = vmatpush1.msra.mxu0 %v450
        %3574 = vmatprep.subr.mxu0 %v443
        %3575 = vmatpush1.msra.mxu0 %v442
        %3576 = vmatprep.subr.mxu0 %v435
        %3577 = vmatpush1.msra.mxu0 %v434
        %3578 = vmatprep.subr.mxu0 %v427
        %3579 = vmatpush1.msra.mxu0 %v426
        %3580 = vmatprep.subr.mxu0 %v419
        %3581 = vmatpush1.msra.mxu0 %v418
        %3582 = vmatprep.subr.mxu0 %v411
        %3583 = vmatpush1.msra.mxu0 %v410
        %3584 = vmatprep.subr.mxu0 %v403
        %3585 = vmatpush1.msra.mxu0 %v402
        %3586 = vmatprep.subr.mxu0 %v395
        %3587 = vmatpush1.msra.mxu0 %v394
        %3588 = vmatprep.subr.mxu0 %v387
        %3589 = vmatpush1.msra.mxu0 %v386
        %3590 = vmatprep.subr.mxu0 %v379
        %3591 = vmatpush1.msra.mxu0 %v378
        %3592 = vmatprep.subr.mxu0 %v371
        %3593 = vmatpush1.msra.mxu0 %v370
        %3594 = vmatprep.subr.mxu0 %v363
        %3595 = vmatpush1.msra.mxu0 %v362
        %3596 = vmatprep.subr.mxu0 %v355
        %3597 = vmatpush1.msra.mxu0 %v354
        %3598 = vmatprep.subr.mxu0 %v347
        %3599 = vmatpush1.msra.mxu0 %v346
        %3600 = vmatprep.subr.mxu0 %v595
        %3601 = vmatpush2.msra.mxu0 %v594
        %3602 = vmatprep.subr.mxu0 %v587
        %3603 = vmatpush2.msra.mxu0 %v586
        %3604 = vmatprep.subr.mxu0 %v579
        %3605 = vmatpush2.msra.mxu0 %v578
        %3606 = vmatprep.subr.mxu0 %v571
        %3607 = vmatpush2.msra.mxu0 %v570
        %3608 = vmatprep.subr.mxu0 %v563
        %3609 = vmatpush2.msra.mxu0 %v562
        %3610 = vmatprep.subr.mxu0 %v555
        %3611 = vmatpush2.msra.mxu0 %v554
        %3612 = vmatprep.subr.mxu0 %v547
        %3613 = vmatpush2.msra.mxu0 %v546
        %3614 = vmatprep.subr.mxu0 %v539
        %3615 = vmatpush2.msra.mxu0 %v538
        %3616 = vmatprep.subr.mxu0 %v531
        %3617 = vmatpush2.msra.mxu0 %v530
        %3618 = vmatprep.subr.mxu0 %v523
        %3619 = vmatpush2.msra.mxu0 %v522
        %3620 = vmatprep.subr.mxu0 %v515
        %3621 = vmatpush2.msra.mxu0 %v514
        %3622 = vmatprep.subr.mxu0 %v507
        %3623 = vmatpush2.msra.mxu0 %v506
        %3624 = vmatprep.subr.mxu0 %v499
        %3625 = vmatpush2.msra.mxu0 %v498
        %3626 = vmatprep.subr.mxu0 %v491
        %3627 = vmatpush2.msra.mxu0 %v490
        %3628 = vmatprep.subr.mxu0 %v483
        %3629 = vmatpush2.msra.mxu0 %v482
        %3630 = vmatprep.subr.mxu0 %v475
        %3631 = vmatpush2.msra.mxu0 %v474
        %3632 = vmatprep.mubr.f32.mxu0 %v327
        %3633 = vmatmul.mubr.f32.gmra.mxu0 %v326
        %v3634 = vpop.f32.mrf.mxu0
        %v3635 = vadd.f32 %v2411, %v3634
        %v3636 = vpop.f32.mrf.mxu0
        %v3637 = vadd.f32 %v2415, %v3636
        %3638 = vdwg.mxu0
        %3639 = vmatprep.subr.mxu0 %v723
        %3640 = vmatpush1.msra.mxu0 %v722
        %3641 = vmatprep.subr.mxu0 %v715
        %3642 = vmatpush1.msra.mxu0 %v714
        %3643 = vmatprep.subr.mxu0 %v707
        %3644 = vmatpush1.msra.mxu0 %v706
        %3645 = vmatprep.subr.mxu0 %v699
        %3646 = vmatpush1.msra.mxu0 %v698
        %3647 = vmatprep.subr.mxu0 %v691
        %3648 = vmatpush1.msra.mxu0 %v690
        %3649 = vmatprep.subr.mxu0 %v683
        %3650 = vmatpush1.msra.mxu0 %v682
        %3651 = vmatprep.subr.mxu0 %v675
        %3652 = vmatpush1.msra.mxu0 %v674
        %3653 = vmatprep.subr.mxu0 %v667
        %3654 = vmatpush1.msra.mxu0 %v666
        %3655 = vmatprep.subr.mxu0 %v659
        %3656 = vmatpush1.msra.mxu0 %v658
        %3657 = vmatprep.subr.mxu0 %v651
        %3658 = vmatpush1.msra.mxu0 %v650
        %3659 = vmatprep.subr.mxu0 %v643
        %3660 = vmatpush1.msra.mxu0 %v642
        %3661 = vmatprep.subr.mxu0 %v635
        %3662 = vmatpush1.msra.mxu0 %v634
        %3663 = vmatprep.subr.mxu0 %v627
        %3664 = vmatpush1.msra.mxu0 %v626
        %3665 = vmatprep.subr.mxu0 %v619
        %3666 = vmatpush1.msra.mxu0 %v618
        %3667 = vmatprep.subr.mxu0 %v611
        %3668 = vmatpush1.msra.mxu0 %v610
        %3669 = vmatprep.subr.mxu0 %v603
        %3670 = vmatpush1.msra.mxu0 %v602
        %3671 = vmatprep.subr.mxu0 %v851
        %3672 = vmatpush2.msra.mxu0 %v850
        %3673 = vmatprep.subr.mxu0 %v843
        %3674 = vmatpush2.msra.mxu0 %v842
        %3675 = vmatprep.subr.mxu0 %v835
        %3676 = vmatpush2.msra.mxu0 %v834
        %3677 = vmatprep.subr.mxu0 %v827
        %3678 = vmatpush2.msra.mxu0 %v826
        %3679 = vmatprep.subr.mxu0 %v819
        %3680 = vmatpush2.msra.mxu0 %v818
        %3681 = vmatprep.subr.mxu0 %v811
        %3682 = vmatpush2.msra.mxu0 %v810
        %3683 = vmatprep.subr.mxu0 %v803
        %3684 = vmatpush2.msra.mxu0 %v802
        %3685 = vmatprep.subr.mxu0 %v795
        %3686 = vmatpush2.msra.mxu0 %v794
        %3687 = vmatprep.subr.mxu0 %v787
        %3688 = vmatpush2.msra.mxu0 %v786
        %3689 = vmatprep.subr.mxu0 %v779
        %3690 = vmatpush2.msra.mxu0 %v778
        %3691 = vmatprep.subr.mxu0 %v771
        %3692 = vmatpush2.msra.mxu0 %v770
        %3693 = vmatprep.subr.mxu0 %v763
        %3694 = vmatpush2.msra.mxu0 %v762
        %3695 = vmatprep.subr.mxu0 %v755
        %3696 = vmatpush2.msra.mxu0 %v754
        %3697 = vmatprep.subr.mxu0 %v747
        %3698 = vmatpush2.msra.mxu0 %v746
        %3699 = vmatprep.subr.mxu0 %v739
        %3700 = vmatpush2.msra.mxu0 %v738
        %3701 = vmatprep.subr.mxu0 %v731
        %3702 = vmatpush2.msra.mxu0 %v730
        %3703 = vmatprep.mubr.f32.mxu0 %v329
        %3704 = vmatmul.mubr.f32.gmra.mxu0 %v328
        %v3705 = vpop.f32.mrf.mxu0
        %v3706 = vadd.f32 %v3635, %v3705
        %v3707 = vpop.f32.mrf.mxu0
        %v3708 = vadd.f32 %v3637, %v3707
        %3709 = vdwg.mxu0
        %3710 = vmatprep.subr.mxu0 %v979
        %3711 = vmatpush1.msra.mxu0 %v978
        %3712 = vmatprep.subr.mxu0 %v971
        %3713 = vmatpush1.msra.mxu0 %v970
        %3714 = vmatprep.subr.mxu0 %v963
        %3715 = vmatpush1.msra.mxu0 %v962
        %3716 = vmatprep.subr.mxu0 %v955
        %3717 = vmatpush1.msra.mxu0 %v954
        %3718 = vmatprep.subr.mxu0 %v947
        %3719 = vmatpush1.msra.mxu0 %v946
        %3720 = vmatprep.subr.mxu0 %v939
        %3721 = vmatpush1.msra.mxu0 %v938
        %3722 = vmatprep.subr.mxu0 %v931
        %3723 = vmatpush1.msra.mxu0 %v930
        %3724 = vmatprep.subr.mxu0 %v923
        %3725 = vmatpush1.msra.mxu0 %v922
        %3726 = vmatprep.subr.mxu0 %v915
        %3727 = vmatpush1.msra.mxu0 %v914
        %3728 = vmatprep.subr.mxu0 %v907
        %3729 = vmatpush1.msra.mxu0 %v906
        %3730 = vmatprep.subr.mxu0 %v899
        %3731 = vmatpush1.msra.mxu0 %v898
        %3732 = vmatprep.subr.mxu0 %v891
        %3733 = vmatpush1.msra.mxu0 %v890
        %3734 = vmatprep.subr.mxu0 %v883
        %3735 = vmatpush1.msra.mxu0 %v882
        %3736 = vmatprep.subr.mxu0 %v875
        %3737 = vmatpush1.msra.mxu0 %v874
        %3738 = vmatprep.subr.mxu0 %v867
        %3739 = vmatpush1.msra.mxu0 %v866
        %3740 = vmatprep.subr.mxu0 %v859
        %3741 = vmatpush1.msra.mxu0 %v858
        %3742 = vmatprep.subr.mxu0 %v1107
        %3743 = vmatpush2.msra.mxu0 %v1106
        %3744 = vmatprep.subr.mxu0 %v1099
        %3745 = vmatpush2.msra.mxu0 %v1098
        %3746 = vmatprep.subr.mxu0 %v1091
        %3747 = vmatpush2.msra.mxu0 %v1090
        %3748 = vmatprep.subr.mxu0 %v1083
        %3749 = vmatpush2.msra.mxu0 %v1082
        %3750 = vmatprep.subr.mxu0 %v1075
        %3751 = vmatpush2.msra.mxu0 %v1074
        %3752 = vmatprep.subr.mxu0 %v1067
        %3753 = vmatpush2.msra.mxu0 %v1066
        %3754 = vmatprep.subr.mxu0 %v1059
        %3755 = vmatpush2.msra.mxu0 %v1058
        %3756 = vmatprep.subr.mxu0 %v1051
        %3757 = vmatpush2.msra.mxu0 %v1050
        %3758 = vmatprep.subr.mxu0 %v1043
        %3759 = vmatpush2.msra.mxu0 %v1042
        %3760 = vmatprep.subr.mxu0 %v1035
        %3761 = vmatpush2.msra.mxu0 %v1034
        %3762 = vmatprep.subr.mxu0 %v1027
        %3763 = vmatpush2.msra.mxu0 %v1026
        %3764 = vmatprep.subr.mxu0 %v1019
        %3765 = vmatpush2.msra.mxu0 %v1018
        %3766 = vmatprep.subr.mxu0 %v1011
        %3767 = vmatpush2.msra.mxu0 %v1010
        %3768 = vmatprep.subr.mxu0 %v1003
        %3769 = vmatpush2.msra.mxu0 %v1002
        %3770 = vmatprep.subr.mxu0 %v995
        %3771 = vmatpush2.msra.mxu0 %v994
        %3772 = vmatprep.subr.mxu0 %v987
        %3773 = vmatpush2.msra.mxu0 %v986
        %3774 = vmatprep.mubr.f32.mxu0 %v331
        %3775 = vmatmul.mubr.f32.gmra.mxu0 %v330
        %v3776 = vpop.f32.mrf.mxu0
        %v3777 = vadd.f32 %v3706, %v3776
        %v3778 = vpop.f32.mrf.mxu0
        %v3779 = vadd.f32 %v3708, %v3778
        %3780 = vdwg.mxu0
        %3781 = vmatprep.subr.mxu0 %v1235
        %3782 = vmatpush1.msra.mxu0 %v1234
        %3783 = vmatprep.subr.mxu0 %v1227
        %3784 = vmatpush1.msra.mxu0 %v1226
        %3785 = vmatprep.subr.mxu0 %v1219
        %3786 = vmatpush1.msra.mxu0 %v1218
        %3787 = vmatprep.subr.mxu0 %v1211
        %3788 = vmatpush1.msra.mxu0 %v1210
        %3789 = vmatprep.subr.mxu0 %v1203
        %3790 = vmatpush1.msra.mxu0 %v1202
        %3791 = vmatprep.subr.mxu0 %v1195
        %3792 = vmatpush1.msra.mxu0 %v1194
        %3793 = vmatprep.subr.mxu0 %v1187
        %3794 = vmatpush1.msra.mxu0 %v1186
        %3795 = vmatprep.subr.mxu0 %v1179
        %3796 = vmatpush1.msra.mxu0 %v1178
        %3797 = vmatprep.subr.mxu0 %v1171
        %3798 = vmatpush1.msra.mxu0 %v1170
        %3799 = vmatprep.subr.mxu0 %v1163
        %3800 = vmatpush1.msra.mxu0 %v1162
        %3801 = vmatprep.subr.mxu0 %v1155
        %3802 = vmatpush1.msra.mxu0 %v1154
        %3803 = vmatprep.subr.mxu0 %v1147
        %3804 = vmatpush1.msra.mxu0 %v1146
        %3805 = vmatprep.subr.mxu0 %v1139
        %3806 = vmatpush1.msra.mxu0 %v1138
        %3807 = vmatprep.subr.mxu0 %v1131
        %3808 = vmatpush1.msra.mxu0 %v1130
        %3809 = vmatprep.subr.mxu0 %v1123
        %3810 = vmatpush1.msra.mxu0 %v1122
        %3811 = vmatprep.subr.mxu0 %v1115
        %3812 = vmatpush1.msra.mxu0 %v1114
        %3813 = vmatprep.subr.mxu0 %v1363
        %3814 = vmatpush2.msra.mxu0 %v1362
        %3815 = vmatprep.subr.mxu0 %v1355
        %3816 = vmatpush2.msra.mxu0 %v1354
        %3817 = vmatprep.subr.mxu0 %v1347
        %3818 = vmatpush2.msra.mxu0 %v1346
        %3819 = vmatprep.subr.mxu0 %v1339
        %3820 = vmatpush2.msra.mxu0 %v1338
        %3821 = vmatprep.subr.mxu0 %v1331
        %3822 = vmatpush2.msra.mxu0 %v1330
        %3823 = vmatprep.subr.mxu0 %v1323
        %3824 = vmatpush2.msra.mxu0 %v1322
        %3825 = vmatprep.subr.mxu0 %v1315
        %3826 = vmatpush2.msra.mxu0 %v1314
        %3827 = vmatprep.subr.mxu0 %v1307
        %3828 = vmatpush2.msra.mxu0 %v1306
        %3829 = vmatprep.subr.mxu0 %v1299
        %3830 = vmatpush2.msra.mxu0 %v1298
        %3831 = vmatprep.subr.mxu0 %v1291
        %3832 = vmatpush2.msra.mxu0 %v1290
        %3833 = vmatprep.subr.mxu0 %v1283
        %3834 = vmatpush2.msra.mxu0 %v1282
        %3835 = vmatprep.subr.mxu0 %v1275
        %3836 = vmatpush2.msra.mxu0 %v1274
        %3837 = vmatprep.subr.mxu0 %v1267
        %3838 = vmatpush2.msra.mxu0 %v1266
        %3839 = vmatprep.subr.mxu0 %v1259
        %3840 = vmatpush2.msra.mxu0 %v1258
        %3841 = vmatprep.subr.mxu0 %v1251
        %3842 = vmatpush2.msra.mxu0 %v1250
        %3843 = vmatprep.subr.mxu0 %v1243
        %3844 = vmatpush2.msra.mxu0 %v1242
        %3845 = vmatprep.mubr.f32.mxu0 %v333
        %3846 = vmatmul.mubr.f32.gmra.mxu0 %v332
        %v3847 = vpop.f32.mrf.mxu0
        %v3848 = vadd.f32 %v3777, %v3847
        %v3849 = vpop.f32.mrf.mxu0
        %v3850 = vadd.f32 %v3779, %v3849
        %3851 = vdwg.mxu0
        %3852 = vmatprep.subr.mxu0 %v1491
        %3853 = vmatpush1.msra.mxu0 %v1490
        %3854 = vmatprep.subr.mxu0 %v1483
        %3855 = vmatpush1.msra.mxu0 %v1482
        %3856 = vmatprep.subr.mxu0 %v1475
        %3857 = vmatpush1.msra.mxu0 %v1474
        %3858 = vmatprep.subr.mxu0 %v1467
        %3859 = vmatpush1.msra.mxu0 %v1466
        %3860 = vmatprep.subr.mxu0 %v1459
        %3861 = vmatpush1.msra.mxu0 %v1458
        %3862 = vmatprep.subr.mxu0 %v1451
        %3863 = vmatpush1.msra.mxu0 %v1450
        %3864 = vmatprep.subr.mxu0 %v1443
        %3865 = vmatpush1.msra.mxu0 %v1442
        %3866 = vmatprep.subr.mxu0 %v1435
        %3867 = vmatpush1.msra.mxu0 %v1434
        %3868 = vmatprep.subr.mxu0 %v1427
        %3869 = vmatpush1.msra.mxu0 %v1426
        %3870 = vmatprep.subr.mxu0 %v1419
        %3871 = vmatpush1.msra.mxu0 %v1418
        %3872 = vmatprep.subr.mxu0 %v1411
        %3873 = vmatpush1.msra.mxu0 %v1410
        %3874 = vmatprep.subr.mxu0 %v1403
        %3875 = vmatpush1.msra.mxu0 %v1402
        %3876 = vmatprep.subr.mxu0 %v1395
        %3877 = vmatpush1.msra.mxu0 %v1394
        %3878 = vmatprep.subr.mxu0 %v1387
        %3879 = vmatpush1.msra.mxu0 %v1386
        %3880 = vmatprep.subr.mxu0 %v1379
        %3881 = vmatpush1.msra.mxu0 %v1378
        %3882 = vmatprep.subr.mxu0 %v1371
        %3883 = vmatpush1.msra.mxu0 %v1370
        %3884 = vmatprep.subr.mxu0 %v1619
        %3885 = vmatpush2.msra.mxu0 %v1618
        %3886 = vmatprep.subr.mxu0 %v1611
        %3887 = vmatpush2.msra.mxu0 %v1610
        %3888 = vmatprep.subr.mxu0 %v1603
        %3889 = vmatpush2.msra.mxu0 %v1602
        %3890 = vmatprep.subr.mxu0 %v1595
        %3891 = vmatpush2.msra.mxu0 %v1594
        %3892 = vmatprep.subr.mxu0 %v1587
        %3893 = vmatpush2.msra.mxu0 %v1586
        %3894 = vmatprep.subr.mxu0 %v1579
        %3895 = vmatpush2.msra.mxu0 %v1578
        %3896 = vmatprep.subr.mxu0 %v1571
        %3897 = vmatpush2.msra.mxu0 %v1570
        %3898 = vmatprep.subr.mxu0 %v1563
        %3899 = vmatpush2.msra.mxu0 %v1562
        %3900 = vmatprep.subr.mxu0 %v1555
        %3901 = vmatpush2.msra.mxu0 %v1554
        %3902 = vmatprep.subr.mxu0 %v1547
        %3903 = vmatpush2.msra.mxu0 %v1546
        %3904 = vmatprep.subr.mxu0 %v1539
        %3905 = vmatpush2.msra.mxu0 %v1538
        %3906 = vmatprep.subr.mxu0 %v1531
        %3907 = vmatpush2.msra.mxu0 %v1530
        %3908 = vmatprep.subr.mxu0 %v1523
        %3909 = vmatpush2.msra.mxu0 %v1522
        %3910 = vmatprep.subr.mxu0 %v1515
        %3911 = vmatpush2.msra.mxu0 %v1514
        %3912 = vmatprep.subr.mxu0 %v1507
        %3913 = vmatpush2.msra.mxu0 %v1506
        %3914 = vmatprep.subr.mxu0 %v1499
        %3915 = vmatpush2.msra.mxu0 %v1498
        %3916 = vmatprep.mubr.f32.mxu0 %v335
        %3917 = vmatmul.mubr.f32.gmra.mxu0 %v334
        %v3918 = vpop.f32.mrf.mxu0
        %v3919 = vadd.f32 %v3848, %v3918
        %v3920 = vpop.f32.mrf.mxu0
        %v3921 = vadd.f32 %v3850, %v3920
        %3922 = vdwg.mxu0
        %3923 = vmatprep.subr.mxu0 %v1747
        %3924 = vmatpush1.msra.mxu0 %v1746
        %3925 = vmatprep.subr.mxu0 %v1739
        %3926 = vmatpush1.msra.mxu0 %v1738
        %3927 = vmatprep.subr.mxu0 %v1731
        %3928 = vmatpush1.msra.mxu0 %v1730
        %3929 = vmatprep.subr.mxu0 %v1723
        %3930 = vmatpush1.msra.mxu0 %v1722
        %3931 = vmatprep.subr.mxu0 %v1715
        %3932 = vmatpush1.msra.mxu0 %v1714
        %3933 = vmatprep.subr.mxu0 %v1707
        %3934 = vmatpush1.msra.mxu0 %v1706
        %3935 = vmatprep.subr.mxu0 %v1699
        %3936 = vmatpush1.msra.mxu0 %v1698
        %3937 = vmatprep.subr.mxu0 %v1691
        %3938 = vmatpush1.msra.mxu0 %v1690
        %3939 = vmatprep.subr.mxu0 %v1683
        %3940 = vmatpush1.msra.mxu0 %v1682
        %3941 = vmatprep.subr.mxu0 %v1675
        %3942 = vmatpush1.msra.mxu0 %v1674
        %3943 = vmatprep.subr.mxu0 %v1667
        %3944 = vmatpush1.msra.mxu0 %v1666
        %3945 = vmatprep.subr.mxu0 %v1659
        %3946 = vmatpush1.msra.mxu0 %v1658
        %3947 = vmatprep.subr.mxu0 %v1651
        %3948 = vmatpush1.msra.mxu0 %v1650
        %3949 = vmatprep.subr.mxu0 %v1643
        %3950 = vmatpush1.msra.mxu0 %v1642
        %3951 = vmatprep.subr.mxu0 %v1635
        %3952 = vmatpush1.msra.mxu0 %v1634
        %3953 = vmatprep.subr.mxu0 %v1627
        %3954 = vmatpush1.msra.mxu0 %v1626
        %3955 = vmatprep.subr.mxu0 %v1875
        %3956 = vmatpush2.msra.mxu0 %v1874
        %3957 = vmatprep.subr.mxu0 %v1867
        %3958 = vmatpush2.msra.mxu0 %v1866
        %3959 = vmatprep.subr.mxu0 %v1859
        %3960 = vmatpush2.msra.mxu0 %v1858
        %3961 = vmatprep.subr.mxu0 %v1851
        %3962 = vmatpush2.msra.mxu0 %v1850
        %3963 = vmatprep.subr.mxu0 %v1843
        %3964 = vmatpush2.msra.mxu0 %v1842
        %3965 = vmatprep.subr.mxu0 %v1835
        %3966 = vmatpush2.msra.mxu0 %v1834
        %3967 = vmatprep.subr.mxu0 %v1827
        %3968 = vmatpush2.msra.mxu0 %v1826
        %3969 = vmatprep.subr.mxu0 %v1819
        %3970 = vmatpush2.msra.mxu0 %v1818
        %3971 = vmatprep.subr.mxu0 %v1811
        %3972 = vmatpush2.msra.mxu0 %v1810
        %3973 = vmatprep.subr.mxu0 %v1803
        %3974 = vmatpush2.msra.mxu0 %v1802
        %3975 = vmatprep.subr.mxu0 %v1795
        %3976 = vmatpush2.msra.mxu0 %v1794
        %3977 = vmatprep.subr.mxu0 %v1787
        %3978 = vmatpush2.msra.mxu0 %v1786
        %3979 = vmatprep.subr.mxu0 %v1779
        %3980 = vmatpush2.msra.mxu0 %v1778
        %3981 = vmatprep.subr.mxu0 %v1771
        %3982 = vmatpush2.msra.mxu0 %v1770
        %3983 = vmatprep.subr.mxu0 %v1763
        %3984 = vmatpush2.msra.mxu0 %v1762
        %3985 = vmatprep.subr.mxu0 %v1755
        %3986 = vmatpush2.msra.mxu0 %v1754
        %3987 = vmatprep.mubr.f32.mxu0 %v337
        %3988 = vmatmul.mubr.f32.gmra.mxu0 %v336
        %v3989 = vpop.f32.mrf.mxu0
        %v3990 = vadd.f32 %v3919, %v3989
        %v3991 = vpop.f32.mrf.mxu0
        %v3992 = vadd.f32 %v3921, %v3991
        %3993 = vdwg.mxu0
        %3994 = vmatprep.subr.mxu0 %v2003
        %3995 = vmatpush1.msra.mxu0 %v2002
        %3996 = vmatprep.subr.mxu0 %v1995
        %3997 = vmatpush1.msra.mxu0 %v1994
        %3998 = vmatprep.subr.mxu0 %v1987
        %3999 = vmatpush1.msra.mxu0 %v1986
        %4000 = vmatprep.subr.mxu0 %v1979
        %4001 = vmatpush1.msra.mxu0 %v1978
        %4002 = vmatprep.subr.mxu0 %v1971
        %4003 = vmatpush1.msra.mxu0 %v1970
        %4004 = vmatprep.subr.mxu0 %v1963
        %4005 = vmatpush1.msra.mxu0 %v1962
        %4006 = vmatprep.subr.mxu0 %v1955
        %4007 = vmatpush1.msra.mxu0 %v1954
        %4008 = vmatprep.subr.mxu0 %v1947
        %4009 = vmatpush1.msra.mxu0 %v1946
        %4010 = vmatprep.subr.mxu0 %v1939
        %4011 = vmatpush1.msra.mxu0 %v1938
        %4012 = vmatprep.subr.mxu0 %v1931
        %4013 = vmatpush1.msra.mxu0 %v1930
        %4014 = vmatprep.subr.mxu0 %v1923
        %4015 = vmatpush1.msra.mxu0 %v1922
        %4016 = vmatprep.subr.mxu0 %v1915
        %4017 = vmatpush1.msra.mxu0 %v1914
        %4018 = vmatprep.subr.mxu0 %v1907
        %4019 = vmatpush1.msra.mxu0 %v1906
        %4020 = vmatprep.subr.mxu0 %v1899
        %4021 = vmatpush1.msra.mxu0 %v1898
        %4022 = vmatprep.subr.mxu0 %v1891
        %4023 = vmatpush1.msra.mxu0 %v1890
        %4024 = vmatprep.subr.mxu0 %v1883
        %4025 = vmatpush1.msra.mxu0 %v1882
        %4026 = vmatprep.subr.mxu0 %v2131
        %4027 = vmatpush2.msra.mxu0 %v2130
        %4028 = vmatprep.subr.mxu0 %v2123
        %4029 = vmatpush2.msra.mxu0 %v2122
        %4030 = vmatprep.subr.mxu0 %v2115
        %4031 = vmatpush2.msra.mxu0 %v2114
        %4032 = vmatprep.subr.mxu0 %v2107
        %4033 = vmatpush2.msra.mxu0 %v2106
        %4034 = vmatprep.subr.mxu0 %v2099
        %4035 = vmatpush2.msra.mxu0 %v2098
        %4036 = vmatprep.subr.mxu0 %v2091
        %4037 = vmatpush2.msra.mxu0 %v2090
        %4038 = vmatprep.subr.mxu0 %v2083
        %4039 = vmatpush2.msra.mxu0 %v2082
        %4040 = vmatprep.subr.mxu0 %v2075
        %4041 = vmatpush2.msra.mxu0 %v2074
        %4042 = vmatprep.subr.mxu0 %v2067
        %4043 = vmatpush2.msra.mxu0 %v2066
        %4044 = vmatprep.subr.mxu0 %v2059
        %4045 = vmatpush2.msra.mxu0 %v2058
        %4046 = vmatprep.subr.mxu0 %v2051
        %4047 = vmatpush2.msra.mxu0 %v2050
        %4048 = vmatprep.subr.mxu0 %v2043
        %4049 = vmatpush2.msra.mxu0 %v2042
        %4050 = vmatprep.subr.mxu0 %v2035
        %4051 = vmatpush2.msra.mxu0 %v2034
        %4052 = vmatprep.subr.mxu0 %v2027
        %4053 = vmatpush2.msra.mxu0 %v2026
        %4054 = vmatprep.subr.mxu0 %v2019
        %4055 = vmatpush2.msra.mxu0 %v2018
        %4056 = vmatprep.subr.mxu0 %v2011
        %4057 = vmatpush2.msra.mxu0 %v2010
        %4058 = vmatprep.mubr.f32.mxu0 %v339
        %4059 = vmatmul.mubr.f32.gmra.mxu0 %v338
        %v4060 = vpop.f32.mrf.mxu0
        %v4061 = vadd.f32 %v3990, %v4060
        %v4062 = vpop.f32.mrf.mxu0
        %v4063 = vadd.f32 %v3992, %v4062
        %4064 = vdwg.mxu0
        %4065 = vmatprep.subr.mxu0 %v2259
        %4066 = vmatpush1.msra.mxu0 %v2258
        %4067 = vmatprep.subr.mxu0 %v2251
        %4068 = vmatpush1.msra.mxu0 %v2250
        %4069 = vmatprep.subr.mxu0 %v2243
        %4070 = vmatpush1.msra.mxu0 %v2242
        %4071 = vmatprep.subr.mxu0 %v2235
        %4072 = vmatpush1.msra.mxu0 %v2234
        %4073 = vmatprep.subr.mxu0 %v2227
        %4074 = vmatpush1.msra.mxu0 %v2226
        %4075 = vmatprep.subr.mxu0 %v2219
        %4076 = vmatpush1.msra.mxu0 %v2218
        %4077 = vmatprep.subr.mxu0 %v2211
        %4078 = vmatpush1.msra.mxu0 %v2210
        %4079 = vmatprep.subr.mxu0 %v2203
        %4080 = vmatpush1.msra.mxu0 %v2202
        %4081 = vmatprep.subr.mxu0 %v2195
        %4082 = vmatpush1.msra.mxu0 %v2194
        %4083 = vmatprep.subr.mxu0 %v2187
        %4084 = vmatpush1.msra.mxu0 %v2186
        %4085 = vmatprep.subr.mxu0 %v2179
        %4086 = vmatpush1.msra.mxu0 %v2178
        %4087 = vmatprep.subr.mxu0 %v2171
        %4088 = vmatpush1.msra.mxu0 %v2170
        %4089 = vmatprep.subr.mxu0 %v2163
        %4090 = vmatpush1.msra.mxu0 %v2162
        %4091 = vmatprep.subr.mxu0 %v2155
        %4092 = vmatpush1.msra.mxu0 %v2154
        %4093 = vmatprep.subr.mxu0 %v2147
        %4094 = vmatpush1.msra.mxu0 %v2146
        %4095 = vmatprep.subr.mxu0 %v2139
        %4096 = vmatpush1.msra.mxu0 %v2138
        %4097 = vmatprep.subr.mxu0 %v2387
        %4098 = vmatpush2.msra.mxu0 %v2386
        %4099 = vmatprep.subr.mxu0 %v2379
        %4100 = vmatpush2.msra.mxu0 %v2378
        %4101 = vmatprep.subr.mxu0 %v2371
        %4102 = vmatpush2.msra.mxu0 %v2370
        %4103 = vmatprep.subr.mxu0 %v2363
        %4104 = vmatpush2.msra.mxu0 %v2362
        %4105 = vmatprep.subr.mxu0 %v2355
        %4106 = vmatpush2.msra.mxu0 %v2354
        %4107 = vmatprep.subr.mxu0 %v2347
        %4108 = vmatpush2.msra.mxu0 %v2346
        %4109 = vmatprep.subr.mxu0 %v2339
        %4110 = vmatpush2.msra.mxu0 %v2338
        %4111 = vmatprep.subr.mxu0 %v2331
        %4112 = vmatpush2.msra.mxu0 %v2330
        %4113 = vmatprep.subr.mxu0 %v2323
        %4114 = vmatpush2.msra.mxu0 %v2322
        %4115 = vmatprep.subr.mxu0 %v2315
        %4116 = vmatpush2.msra.mxu0 %v2314
        %4117 = vmatprep.subr.mxu0 %v2307
        %4118 = vmatpush2.msra.mxu0 %v2306
        %4119 = vmatprep.subr.mxu0 %v2299
        %4120 = vmatpush2.msra.mxu0 %v2298
        %4121 = vmatprep.subr.mxu0 %v2291
        %4122 = vmatpush2.msra.mxu0 %v2290
        %4123 = vmatprep.subr.mxu0 %v2283
        %4124 = vmatpush2.msra.mxu0 %v2282
        %4125 = vmatprep.subr.mxu0 %v2275
        %4126 = vmatpush2.msra.mxu0 %v2274
        %4127 = vmatprep.subr.mxu0 %v2267
        %4128 = vmatpush2.msra.mxu0 %v2266
        %4129 = vmatprep.mubr.f32.mxu0 %v341
        %4130 = vmatmul.mubr.f32.gmra.mxu0 %v340
        %v4131 = vpop.f32.mrf.mxu0
        %v4132 = vadd.f32 %v4061, %v4131
        %v4133 = vpop.f32.mrf.mxu0
        %v4134 = vadd.f32 %v4063, %v4133
        %4135 = vdwg.mxu0
        %4136 = vmatprep.subr.mxu0 %v469
        %4137 = vmatpush1.msra.mxu0 %v468
        %4138 = vmatprep.subr.mxu0 %v461
        %4139 = vmatpush1.msra.mxu0 %v460
        %4140 = vmatprep.subr.mxu0 %v453
        %4141 = vmatpush1.msra.mxu0 %v452
        %4142 = vmatprep.subr.mxu0 %v445
        %4143 = vmatpush1.msra.mxu0 %v444
        %4144 = vmatprep.subr.mxu0 %v437
        %4145 = vmatpush1.msra.mxu0 %v436
        %4146 = vmatprep.subr.mxu0 %v429
        %4147 = vmatpush1.msra.mxu0 %v428
        %4148 = vmatprep.subr.mxu0 %v421
        %4149 = vmatpush1.msra.mxu0 %v420
        %4150 = vmatprep.subr.mxu0 %v413
        %4151 = vmatpush1.msra.mxu0 %v412
        %4152 = vmatprep.subr.mxu0 %v405
        %4153 = vmatpush1.msra.mxu0 %v404
        %4154 = vmatprep.subr.mxu0 %v397
        %4155 = vmatpush1.msra.mxu0 %v396
        %4156 = vmatprep.subr.mxu0 %v389
        %4157 = vmatpush1.msra.mxu0 %v388
        %4158 = vmatprep.subr.mxu0 %v381
        %4159 = vmatpush1.msra.mxu0 %v380
        %4160 = vmatprep.subr.mxu0 %v373
        %4161 = vmatpush1.msra.mxu0 %v372
        %4162 = vmatprep.subr.mxu0 %v365
        %4163 = vmatpush1.msra.mxu0 %v364
        %4164 = vmatprep.subr.mxu0 %v357
        %4165 = vmatpush1.msra.mxu0 %v356
        %4166 = vmatprep.subr.mxu0 %v349
        %4167 = vmatpush1.msra.mxu0 %v348
        %4168 = vmatprep.subr.mxu0 %v597
        %4169 = vmatpush2.msra.mxu0 %v596
        %4170 = vmatprep.subr.mxu0 %v589
        %4171 = vmatpush2.msra.mxu0 %v588
        %4172 = vmatprep.subr.mxu0 %v581
        %4173 = vmatpush2.msra.mxu0 %v580
        %4174 = vmatprep.subr.mxu0 %v573
        %4175 = vmatpush2.msra.mxu0 %v572
        %4176 = vmatprep.subr.mxu0 %v565
        %4177 = vmatpush2.msra.mxu0 %v564
        %4178 = vmatprep.subr.mxu0 %v557
        %4179 = vmatpush2.msra.mxu0 %v556
        %4180 = vmatprep.subr.mxu0 %v549
        %4181 = vmatpush2.msra.mxu0 %v548
        %4182 = vmatprep.subr.mxu0 %v541
        %4183 = vmatpush2.msra.mxu0 %v540
        %4184 = vmatprep.subr.mxu0 %v533
        %4185 = vmatpush2.msra.mxu0 %v532
        %4186 = vmatprep.subr.mxu0 %v525
        %4187 = vmatpush2.msra.mxu0 %v524
        %4188 = vmatprep.subr.mxu0 %v517
        %4189 = vmatpush2.msra.mxu0 %v516
        %4190 = vmatprep.subr.mxu0 %v509
        %4191 = vmatpush2.msra.mxu0 %v508
        %4192 = vmatprep.subr.mxu0 %v501
        %4193 = vmatpush2.msra.mxu0 %v500
        %4194 = vmatprep.subr.mxu0 %v493
        %4195 = vmatpush2.msra.mxu0 %v492
        %4196 = vmatprep.subr.mxu0 %v485
        %4197 = vmatpush2.msra.mxu0 %v484
        %4198 = vmatprep.subr.mxu0 %v477
        %4199 = vmatpush2.msra.mxu0 %v476
        %4200 = vmatprep.mubr.f32.mxu0 %v327
        %4201 = vmatmul.mubr.f32.gmra.mxu0 %v326
        %v4202 = vpop.f32.mrf.mxu0
        %v4203 = vadd.f32 %v2419, %v4202
        %v4204 = vpop.f32.mrf.mxu0
        %v4205 = vadd.f32 %v2423, %v4204
        %4206 = vdwg.mxu0
        %4207 = vmatprep.subr.mxu0 %v725
        %4208 = vmatpush1.msra.mxu0 %v724
        %4209 = vmatprep.subr.mxu0 %v717
        %4210 = vmatpush1.msra.mxu0 %v716
        %4211 = vmatprep.subr.mxu0 %v709
        %4212 = vmatpush1.msra.mxu0 %v708
        %4213 = vmatprep.subr.mxu0 %v701
        %4214 = vmatpush1.msra.mxu0 %v700
        %4215 = vmatprep.subr.mxu0 %v693
        %4216 = vmatpush1.msra.mxu0 %v692
        %4217 = vmatprep.subr.mxu0 %v685
        %4218 = vmatpush1.msra.mxu0 %v684
        %4219 = vmatprep.subr.mxu0 %v677
        %4220 = vmatpush1.msra.mxu0 %v676
        %4221 = vmatprep.subr.mxu0 %v669
        %4222 = vmatpush1.msra.mxu0 %v668
        %4223 = vmatprep.subr.mxu0 %v661
        %4224 = vmatpush1.msra.mxu0 %v660
        %4225 = vmatprep.subr.mxu0 %v653
        %4226 = vmatpush1.msra.mxu0 %v652
        %4227 = vmatprep.subr.mxu0 %v645
        %4228 = vmatpush1.msra.mxu0 %v644
        %4229 = vmatprep.subr.mxu0 %v637
        %4230 = vmatpush1.msra.mxu0 %v636
        %4231 = vmatprep.subr.mxu0 %v629
        %4232 = vmatpush1.msra.mxu0 %v628
        %4233 = vmatprep.subr.mxu0 %v621
        %4234 = vmatpush1.msra.mxu0 %v620
        %4235 = vmatprep.subr.mxu0 %v613
        %4236 = vmatpush1.msra.mxu0 %v612
        %4237 = vmatprep.subr.mxu0 %v605
        %4238 = vmatpush1.msra.mxu0 %v604
        %4239 = vmatprep.subr.mxu0 %v853
        %4240 = vmatpush2.msra.mxu0 %v852
        %4241 = vmatprep.subr.mxu0 %v845
        %4242 = vmatpush2.msra.mxu0 %v844
        %4243 = vmatprep.subr.mxu0 %v837
        %4244 = vmatpush2.msra.mxu0 %v836
        %4245 = vmatprep.subr.mxu0 %v829
        %4246 = vmatpush2.msra.mxu0 %v828
        %4247 = vmatprep.subr.mxu0 %v821
        %4248 = vmatpush2.msra.mxu0 %v820
        %4249 = vmatprep.subr.mxu0 %v813
        %4250 = vmatpush2.msra.mxu0 %v812
        %4251 = vmatprep.subr.mxu0 %v805
        %4252 = vmatpush2.msra.mxu0 %v804
        %4253 = vmatprep.subr.mxu0 %v797
        %4254 = vmatpush2.msra.mxu0 %v796
        %4255 = vmatprep.subr.mxu0 %v789
        %4256 = vmatpush2.msra.mxu0 %v788
        %4257 = vmatprep.subr.mxu0 %v781
        %4258 = vmatpush2.msra.mxu0 %v780
        %4259 = vmatprep.subr.mxu0 %v773
        %4260 = vmatpush2.msra.mxu0 %v772
        %4261 = vmatprep.subr.mxu0 %v765
        %4262 = vmatpush2.msra.mxu0 %v764
        %4263 = vmatprep.subr.mxu0 %v757
        %4264 = vmatpush2.msra.mxu0 %v756
        %4265 = vmatprep.subr.mxu0 %v749
        %4266 = vmatpush2.msra.mxu0 %v748
        %4267 = vmatprep.subr.mxu0 %v741
        %4268 = vmatpush2.msra.mxu0 %v740
        %4269 = vmatprep.subr.mxu0 %v733
        %4270 = vmatpush2.msra.mxu0 %v732
        %4271 = vmatprep.mubr.f32.mxu0 %v329
        %4272 = vmatmul.mubr.f32.gmra.mxu0 %v328
        %v4273 = vpop.f32.mrf.mxu0
        %v4274 = vadd.f32 %v4203, %v4273
        %v4275 = vpop.f32.mrf.mxu0
        %v4276 = vadd.f32 %v4205, %v4275
        %4277 = vdwg.mxu0
        %4278 = vmatprep.subr.mxu0 %v981
        %4279 = vmatpush1.msra.mxu0 %v980
        %4280 = vmatprep.subr.mxu0 %v973
        %4281 = vmatpush1.msra.mxu0 %v972
        %4282 = vmatprep.subr.mxu0 %v965
        %4283 = vmatpush1.msra.mxu0 %v964
        %4284 = vmatprep.subr.mxu0 %v957
        %4285 = vmatpush1.msra.mxu0 %v956
        %4286 = vmatprep.subr.mxu0 %v949
        %4287 = vmatpush1.msra.mxu0 %v948
        %4288 = vmatprep.subr.mxu0 %v941
        %4289 = vmatpush1.msra.mxu0 %v940
        %4290 = vmatprep.subr.mxu0 %v933
        %4291 = vmatpush1.msra.mxu0 %v932
        %4292 = vmatprep.subr.mxu0 %v925
        %4293 = vmatpush1.msra.mxu0 %v924
        %4294 = vmatprep.subr.mxu0 %v917
        %4295 = vmatpush1.msra.mxu0 %v916
        %4296 = vmatprep.subr.mxu0 %v909
        %4297 = vmatpush1.msra.mxu0 %v908
        %4298 = vmatprep.subr.mxu0 %v901
        %4299 = vmatpush1.msra.mxu0 %v900
        %4300 = vmatprep.subr.mxu0 %v893
        %4301 = vmatpush1.msra.mxu0 %v892
        %4302 = vmatprep.subr.mxu0 %v885
        %4303 = vmatpush1.msra.mxu0 %v884
        %4304 = vmatprep.subr.mxu0 %v877
        %4305 = vmatpush1.msra.mxu0 %v876
        %4306 = vmatprep.subr.mxu0 %v869
        %4307 = vmatpush1.msra.mxu0 %v868
        %4308 = vmatprep.subr.mxu0 %v861
        %4309 = vmatpush1.msra.mxu0 %v860
        %4310 = vmatprep.subr.mxu0 %v1109
        %4311 = vmatpush2.msra.mxu0 %v1108
        %4312 = vmatprep.subr.mxu0 %v1101
        %4313 = vmatpush2.msra.mxu0 %v1100
        %4314 = vmatprep.subr.mxu0 %v1093
        %4315 = vmatpush2.msra.mxu0 %v1092
        %4316 = vmatprep.subr.mxu0 %v1085
        %4317 = vmatpush2.msra.mxu0 %v1084
        %4318 = vmatprep.subr.mxu0 %v1077
        %4319 = vmatpush2.msra.mxu0 %v1076
        %4320 = vmatprep.subr.mxu0 %v1069
        %4321 = vmatpush2.msra.mxu0 %v1068
        %4322 = vmatprep.subr.mxu0 %v1061
        %4323 = vmatpush2.msra.mxu0 %v1060
        %4324 = vmatprep.subr.mxu0 %v1053
        %4325 = vmatpush2.msra.mxu0 %v1052
        %4326 = vmatprep.subr.mxu0 %v1045
        %4327 = vmatpush2.msra.mxu0 %v1044
        %4328 = vmatprep.subr.mxu0 %v1037
        %4329 = vmatpush2.msra.mxu0 %v1036
        %4330 = vmatprep.subr.mxu0 %v1029
        %4331 = vmatpush2.msra.mxu0 %v1028
        %4332 = vmatprep.subr.mxu0 %v1021
        %4333 = vmatpush2.msra.mxu0 %v1020
        %4334 = vmatprep.subr.mxu0 %v1013
        %4335 = vmatpush2.msra.mxu0 %v1012
        %4336 = vmatprep.subr.mxu0 %v1005
        %4337 = vmatpush2.msra.mxu0 %v1004
        %4338 = vmatprep.subr.mxu0 %v997
        %4339 = vmatpush2.msra.mxu0 %v996
        %4340 = vmatprep.subr.mxu0 %v989
        %4341 = vmatpush2.msra.mxu0 %v988
        %4342 = vmatprep.mubr.f32.mxu0 %v331
        %4343 = vmatmul.mubr.f32.gmra.mxu0 %v330
        %v4344 = vpop.f32.mrf.mxu0
        %v4345 = vadd.f32 %v4274, %v4344
        %v4346 = vpop.f32.mrf.mxu0
        %v4347 = vadd.f32 %v4276, %v4346
        %4348 = vdwg.mxu0
        %4349 = vmatprep.subr.mxu0 %v1237
        %4350 = vmatpush1.msra.mxu0 %v1236
        %4351 = vmatprep.subr.mxu0 %v1229
        %4352 = vmatpush1.msra.mxu0 %v1228
        %4353 = vmatprep.subr.mxu0 %v1221
        %4354 = vmatpush1.msra.mxu0 %v1220
        %4355 = vmatprep.subr.mxu0 %v1213
        %4356 = vmatpush1.msra.mxu0 %v1212
        %4357 = vmatprep.subr.mxu0 %v1205
        %4358 = vmatpush1.msra.mxu0 %v1204
        %4359 = vmatprep.subr.mxu0 %v1197
        %4360 = vmatpush1.msra.mxu0 %v1196
        %4361 = vmatprep.subr.mxu0 %v1189
        %4362 = vmatpush1.msra.mxu0 %v1188
        %4363 = vmatprep.subr.mxu0 %v1181
        %4364 = vmatpush1.msra.mxu0 %v1180
        %4365 = vmatprep.subr.mxu0 %v1173
        %4366 = vmatpush1.msra.mxu0 %v1172
        %4367 = vmatprep.subr.mxu0 %v1165
        %4368 = vmatpush1.msra.mxu0 %v1164
        %4369 = vmatprep.subr.mxu0 %v1157
        %4370 = vmatpush1.msra.mxu0 %v1156
        %4371 = vmatprep.subr.mxu0 %v1149
        %4372 = vmatpush1.msra.mxu0 %v1148
        %4373 = vmatprep.subr.mxu0 %v1141
        %4374 = vmatpush1.msra.mxu0 %v1140
        %4375 = vmatprep.subr.mxu0 %v1133
        %4376 = vmatpush1.msra.mxu0 %v1132
        %4377 = vmatprep.subr.mxu0 %v1125
        %4378 = vmatpush1.msra.mxu0 %v1124
        %4379 = vmatprep.subr.mxu0 %v1117
        %4380 = vmatpush1.msra.mxu0 %v1116
        %4381 = vmatprep.subr.mxu0 %v1365
        %4382 = vmatpush2.msra.mxu0 %v1364
        %4383 = vmatprep.subr.mxu0 %v1357
        %4384 = vmatpush2.msra.mxu0 %v1356
        %4385 = vmatprep.subr.mxu0 %v1349
        %4386 = vmatpush2.msra.mxu0 %v1348
        %4387 = vmatprep.subr.mxu0 %v1341
        %4388 = vmatpush2.msra.mxu0 %v1340
        %4389 = vmatprep.subr.mxu0 %v1333
        %4390 = vmatpush2.msra.mxu0 %v1332
        %4391 = vmatprep.subr.mxu0 %v1325
        %4392 = vmatpush2.msra.mxu0 %v1324
        %4393 = vmatprep.subr.mxu0 %v1317
        %4394 = vmatpush2.msra.mxu0 %v1316
        %4395 = vmatprep.subr.mxu0 %v1309
        %4396 = vmatpush2.msra.mxu0 %v1308
        %4397 = vmatprep.subr.mxu0 %v1301
        %4398 = vmatpush2.msra.mxu0 %v1300
        %4399 = vmatprep.subr.mxu0 %v1293
        %4400 = vmatpush2.msra.mxu0 %v1292
        %4401 = vmatprep.subr.mxu0 %v1285
        %4402 = vmatpush2.msra.mxu0 %v1284
        %4403 = vmatprep.subr.mxu0 %v1277
        %4404 = vmatpush2.msra.mxu0 %v1276
        %4405 = vmatprep.subr.mxu0 %v1269
        %4406 = vmatpush2.msra.mxu0 %v1268
        %4407 = vmatprep.subr.mxu0 %v1261
        %4408 = vmatpush2.msra.mxu0 %v1260
        %4409 = vmatprep.subr.mxu0 %v1253
        %4410 = vmatpush2.msra.mxu0 %v1252
        %4411 = vmatprep.subr.mxu0 %v1245
        %4412 = vmatpush2.msra.mxu0 %v1244
        %4413 = vmatprep.mubr.f32.mxu0 %v333
        %4414 = vmatmul.mubr.f32.gmra.mxu0 %v332
        %v4415 = vpop.f32.mrf.mxu0
        %v4416 = vadd.f32 %v4345, %v4415
        %v4417 = vpop.f32.mrf.mxu0
        %v4418 = vadd.f32 %v4347, %v4417
        %4419 = vdwg.mxu0
        %4420 = vmatprep.subr.mxu0 %v1493
        %4421 = vmatpush1.msra.mxu0 %v1492
        %4422 = vmatprep.subr.mxu0 %v1485
        %4423 = vmatpush1.msra.mxu0 %v1484
        %4424 = vmatprep.subr.mxu0 %v1477
        %4425 = vmatpush1.msra.mxu0 %v1476
        %4426 = vmatprep.subr.mxu0 %v1469
        %4427 = vmatpush1.msra.mxu0 %v1468
        %4428 = vmatprep.subr.mxu0 %v1461
        %4429 = vmatpush1.msra.mxu0 %v1460
        %4430 = vmatprep.subr.mxu0 %v1453
        %4431 = vmatpush1.msra.mxu0 %v1452
        %4432 = vmatprep.subr.mxu0 %v1445
        %4433 = vmatpush1.msra.mxu0 %v1444
        %4434 = vmatprep.subr.mxu0 %v1437
        %4435 = vmatpush1.msra.mxu0 %v1436
        %4436 = vmatprep.subr.mxu0 %v1429
        %4437 = vmatpush1.msra.mxu0 %v1428
        %4438 = vmatprep.subr.mxu0 %v1421
        %4439 = vmatpush1.msra.mxu0 %v1420
        %4440 = vmatprep.subr.mxu0 %v1413
        %4441 = vmatpush1.msra.mxu0 %v1412
        %4442 = vmatprep.subr.mxu0 %v1405
        %4443 = vmatpush1.msra.mxu0 %v1404
        %4444 = vmatprep.subr.mxu0 %v1397
        %4445 = vmatpush1.msra.mxu0 %v1396
        %4446 = vmatprep.subr.mxu0 %v1389
        %4447 = vmatpush1.msra.mxu0 %v1388
        %4448 = vmatprep.subr.mxu0 %v1381
        %4449 = vmatpush1.msra.mxu0 %v1380
        %4450 = vmatprep.subr.mxu0 %v1373
        %4451 = vmatpush1.msra.mxu0 %v1372
        %4452 = vmatprep.subr.mxu0 %v1621
        %4453 = vmatpush2.msra.mxu0 %v1620
        %4454 = vmatprep.subr.mxu0 %v1613
        %4455 = vmatpush2.msra.mxu0 %v1612
        %4456 = vmatprep.subr.mxu0 %v1605
        %4457 = vmatpush2.msra.mxu0 %v1604
        %4458 = vmatprep.subr.mxu0 %v1597
        %4459 = vmatpush2.msra.mxu0 %v1596
        %4460 = vmatprep.subr.mxu0 %v1589
        %4461 = vmatpush2.msra.mxu0 %v1588
        %4462 = vmatprep.subr.mxu0 %v1581
        %4463 = vmatpush2.msra.mxu0 %v1580
        %4464 = vmatprep.subr.mxu0 %v1573
        %4465 = vmatpush2.msra.mxu0 %v1572
        %4466 = vmatprep.subr.mxu0 %v1565
        %4467 = vmatpush2.msra.mxu0 %v1564
        %4468 = vmatprep.subr.mxu0 %v1557
        %4469 = vmatpush2.msra.mxu0 %v1556
        %4470 = vmatprep.subr.mxu0 %v1549
        %4471 = vmatpush2.msra.mxu0 %v1548
        %4472 = vmatprep.subr.mxu0 %v1541
        %4473 = vmatpush2.msra.mxu0 %v1540
        %4474 = vmatprep.subr.mxu0 %v1533
        %4475 = vmatpush2.msra.mxu0 %v1532
        %4476 = vmatprep.subr.mxu0 %v1525
        %4477 = vmatpush2.msra.mxu0 %v1524
        %4478 = vmatprep.subr.mxu0 %v1517
        %4479 = vmatpush2.msra.mxu0 %v1516
        %4480 = vmatprep.subr.mxu0 %v1509
        %4481 = vmatpush2.msra.mxu0 %v1508
        %4482 = vmatprep.subr.mxu0 %v1501
        %4483 = vmatpush2.msra.mxu0 %v1500
        %4484 = vmatprep.mubr.f32.mxu0 %v335
        %4485 = vmatmul.mubr.f32.gmra.mxu0 %v334
        %v4486 = vpop.f32.mrf.mxu0
        %v4487 = vadd.f32 %v4416, %v4486
        %v4488 = vpop.f32.mrf.mxu0
        %v4489 = vadd.f32 %v4418, %v4488
        %4490 = vdwg.mxu0
        %4491 = vmatprep.subr.mxu0 %v1749
        %4492 = vmatpush1.msra.mxu0 %v1748
        %4493 = vmatprep.subr.mxu0 %v1741
        %4494 = vmatpush1.msra.mxu0 %v1740
        %4495 = vmatprep.subr.mxu0 %v1733
        %4496 = vmatpush1.msra.mxu0 %v1732
        %4497 = vmatprep.subr.mxu0 %v1725
        %4498 = vmatpush1.msra.mxu0 %v1724
        %4499 = vmatprep.subr.mxu0 %v1717
        %4500 = vmatpush1.msra.mxu0 %v1716
        %4501 = vmatprep.subr.mxu0 %v1709
        %4502 = vmatpush1.msra.mxu0 %v1708
        %4503 = vmatprep.subr.mxu0 %v1701
        %4504 = vmatpush1.msra.mxu0 %v1700
        %4505 = vmatprep.subr.mxu0 %v1693
        %4506 = vmatpush1.msra.mxu0 %v1692
        %4507 = vmatprep.subr.mxu0 %v1685
        %4508 = vmatpush1.msra.mxu0 %v1684
        %4509 = vmatprep.subr.mxu0 %v1677
        %4510 = vmatpush1.msra.mxu0 %v1676
        %4511 = vmatprep.subr.mxu0 %v1669
        %4512 = vmatpush1.msra.mxu0 %v1668
        %4513 = vmatprep.subr.mxu0 %v1661
        %4514 = vmatpush1.msra.mxu0 %v1660
        %4515 = vmatprep.subr.mxu0 %v1653
        %4516 = vmatpush1.msra.mxu0 %v1652
        %4517 = vmatprep.subr.mxu0 %v1645
        %4518 = vmatpush1.msra.mxu0 %v1644
        %4519 = vmatprep.subr.mxu0 %v1637
        %4520 = vmatpush1.msra.mxu0 %v1636
        %4521 = vmatprep.subr.mxu0 %v1629
        %4522 = vmatpush1.msra.mxu0 %v1628
        %4523 = vmatprep.subr.mxu0 %v1877
        %4524 = vmatpush2.msra.mxu0 %v1876
        %4525 = vmatprep.subr.mxu0 %v1869
        %4526 = vmatpush2.msra.mxu0 %v1868
        %4527 = vmatprep.subr.mxu0 %v1861
        %4528 = vmatpush2.msra.mxu0 %v1860
        %4529 = vmatprep.subr.mxu0 %v1853
        %4530 = vmatpush2.msra.mxu0 %v1852
        %4531 = vmatprep.subr.mxu0 %v1845
        %4532 = vmatpush2.msra.mxu0 %v1844
        %4533 = vmatprep.subr.mxu0 %v1837
        %4534 = vmatpush2.msra.mxu0 %v1836
        %4535 = vmatprep.subr.mxu0 %v1829
        %4536 = vmatpush2.msra.mxu0 %v1828
        %4537 = vmatprep.subr.mxu0 %v1821
        %4538 = vmatpush2.msra.mxu0 %v1820
        %4539 = vmatprep.subr.mxu0 %v1813
        %4540 = vmatpush2.msra.mxu0 %v1812
        %4541 = vmatprep.subr.mxu0 %v1805
        %4542 = vmatpush2.msra.mxu0 %v1804
        %4543 = vmatprep.subr.mxu0 %v1797
        %4544 = vmatpush2.msra.mxu0 %v1796
        %4545 = vmatprep.subr.mxu0 %v1789
        %4546 = vmatpush2.msra.mxu0 %v1788
        %4547 = vmatprep.subr.mxu0 %v1781
        %4548 = vmatpush2.msra.mxu0 %v1780
        %4549 = vmatprep.subr.mxu0 %v1773
        %4550 = vmatpush2.msra.mxu0 %v1772
        %4551 = vmatprep.subr.mxu0 %v1765
        %4552 = vmatpush2.msra.mxu0 %v1764
        %4553 = vmatprep.subr.mxu0 %v1757
        %4554 = vmatpush2.msra.mxu0 %v1756
        %4555 = vmatprep.mubr.f32.mxu0 %v337
        %4556 = vmatmul.mubr.f32.gmra.mxu0 %v336
        %v4557 = vpop.f32.mrf.mxu0
        %v4558 = vadd.f32 %v4487, %v4557
        %v4559 = vpop.f32.mrf.mxu0
        %v4560 = vadd.f32 %v4489, %v4559
        %4561 = vdwg.mxu0
        %4562 = vmatprep.subr.mxu0 %v2005
        %4563 = vmatpush1.msra.mxu0 %v2004
        %4564 = vmatprep.subr.mxu0 %v1997
        %4565 = vmatpush1.msra.mxu0 %v1996
        %4566 = vmatprep.subr.mxu0 %v1989
        %4567 = vmatpush1.msra.mxu0 %v1988
        %4568 = vmatprep.subr.mxu0 %v1981
        %4569 = vmatpush1.msra.mxu0 %v1980
        %4570 = vmatprep.subr.mxu0 %v1973
        %4571 = vmatpush1.msra.mxu0 %v1972
        %4572 = vmatprep.subr.mxu0 %v1965
        %4573 = vmatpush1.msra.mxu0 %v1964
        %4574 = vmatprep.subr.mxu0 %v1957
        %4575 = vmatpush1.msra.mxu0 %v1956
        %4576 = vmatprep.subr.mxu0 %v1949
        %4577 = vmatpush1.msra.mxu0 %v1948
        %4578 = vmatprep.subr.mxu0 %v1941
        %4579 = vmatpush1.msra.mxu0 %v1940
        %4580 = vmatprep.subr.mxu0 %v1933
        %4581 = vmatpush1.msra.mxu0 %v1932
        %4582 = vmatprep.subr.mxu0 %v1925
        %4583 = vmatpush1.msra.mxu0 %v1924
        %4584 = vmatprep.subr.mxu0 %v1917
        %4585 = vmatpush1.msra.mxu0 %v1916
        %4586 = vmatprep.subr.mxu0 %v1909
        %4587 = vmatpush1.msra.mxu0 %v1908
        %4588 = vmatprep.subr.mxu0 %v1901
        %4589 = vmatpush1.msra.mxu0 %v1900
        %4590 = vmatprep.subr.mxu0 %v1893
        %4591 = vmatpush1.msra.mxu0 %v1892
        %4592 = vmatprep.subr.mxu0 %v1885
        %4593 = vmatpush1.msra.mxu0 %v1884
        %4594 = vmatprep.subr.mxu0 %v2133
        %4595 = vmatpush2.msra.mxu0 %v2132
        %4596 = vmatprep.subr.mxu0 %v2125
        %4597 = vmatpush2.msra.mxu0 %v2124
        %4598 = vmatprep.subr.mxu0 %v2117
        %4599 = vmatpush2.msra.mxu0 %v2116
        %4600 = vmatprep.subr.mxu0 %v2109
        %4601 = vmatpush2.msra.mxu0 %v2108
        %4602 = vmatprep.subr.mxu0 %v2101
        %4603 = vmatpush2.msra.mxu0 %v2100
        %4604 = vmatprep.subr.mxu0 %v2093
        %4605 = vmatpush2.msra.mxu0 %v2092
        %4606 = vmatprep.subr.mxu0 %v2085
        %4607 = vmatpush2.msra.mxu0 %v2084
        %4608 = vmatprep.subr.mxu0 %v2077
        %4609 = vmatpush2.msra.mxu0 %v2076
        %4610 = vmatprep.subr.mxu0 %v2069
        %4611 = vmatpush2.msra.mxu0 %v2068
        %4612 = vmatprep.subr.mxu0 %v2061
        %4613 = vmatpush2.msra.mxu0 %v2060
        %4614 = vmatprep.subr.mxu0 %v2053
        %4615 = vmatpush2.msra.mxu0 %v2052
        %4616 = vmatprep.subr.mxu0 %v2045
        %4617 = vmatpush2.msra.mxu0 %v2044
        %4618 = vmatprep.subr.mxu0 %v2037
        %4619 = vmatpush2.msra.mxu0 %v2036
        %4620 = vmatprep.subr.mxu0 %v2029
        %4621 = vmatpush2.msra.mxu0 %v2028
        %4622 = vmatprep.subr.mxu0 %v2021
        %4623 = vmatpush2.msra.mxu0 %v2020
        %4624 = vmatprep.subr.mxu0 %v2013
        %4625 = vmatpush2.msra.mxu0 %v2012
        %4626 = vmatprep.mubr.f32.mxu0 %v339
        %4627 = vmatmul.mubr.f32.gmra.mxu0 %v338
        %v4628 = vpop.f32.mrf.mxu0
        %v4629 = vadd.f32 %v4558, %v4628
        %v4630 = vpop.f32.mrf.mxu0
        %v4631 = vadd.f32 %v4560, %v4630
        %4632 = vdwg.mxu0
        %4633 = vmatprep.subr.mxu0 %v2261
        %4634 = vmatpush1.msra.mxu0 %v2260
        %4635 = vmatprep.subr.mxu0 %v2253
        %4636 = vmatpush1.msra.mxu0 %v2252
        %4637 = vmatprep.subr.mxu0 %v2245
        %4638 = vmatpush1.msra.mxu0 %v2244
        %4639 = vmatprep.subr.mxu0 %v2237
        %4640 = vmatpush1.msra.mxu0 %v2236
        %4641 = vmatprep.subr.mxu0 %v2229
        %4642 = vmatpush1.msra.mxu0 %v2228
        %4643 = vmatprep.subr.mxu0 %v2221
        %4644 = vmatpush1.msra.mxu0 %v2220
        %4645 = vmatprep.subr.mxu0 %v2213
        %4646 = vmatpush1.msra.mxu0 %v2212
        %4647 = vmatprep.subr.mxu0 %v2205
        %4648 = vmatpush1.msra.mxu0 %v2204
        %4649 = vmatprep.subr.mxu0 %v2197
        %4650 = vmatpush1.msra.mxu0 %v2196
        %4651 = vmatprep.subr.mxu0 %v2189
        %4652 = vmatpush1.msra.mxu0 %v2188
        %4653 = vmatprep.subr.mxu0 %v2181
        %4654 = vmatpush1.msra.mxu0 %v2180
        %4655 = vmatprep.subr.mxu0 %v2173
        %4656 = vmatpush1.msra.mxu0 %v2172
        %4657 = vmatprep.subr.mxu0 %v2165
        %4658 = vmatpush1.msra.mxu0 %v2164
        %4659 = vmatprep.subr.mxu0 %v2157
        %4660 = vmatpush1.msra.mxu0 %v2156
        %4661 = vmatprep.subr.mxu0 %v2149
        %4662 = vmatpush1.msra.mxu0 %v2148
        %4663 = vmatprep.subr.mxu0 %v2141
        %4664 = vmatpush1.msra.mxu0 %v2140
        %4665 = vmatprep.subr.mxu0 %v2389
        %4666 = vmatpush2.msra.mxu0 %v2388
        %4667 = vmatprep.subr.mxu0 %v2381
        %4668 = vmatpush2.msra.mxu0 %v2380
        %4669 = vmatprep.subr.mxu0 %v2373
        %4670 = vmatpush2.msra.mxu0 %v2372
        %4671 = vmatprep.subr.mxu0 %v2365
        %4672 = vmatpush2.msra.mxu0 %v2364
        %4673 = vmatprep.subr.mxu0 %v2357
        %4674 = vmatpush2.msra.mxu0 %v2356
        %4675 = vmatprep.subr.mxu0 %v2349
        %4676 = vmatpush2.msra.mxu0 %v2348
        %4677 = vmatprep.subr.mxu0 %v2341
        %4678 = vmatpush2.msra.mxu0 %v2340
        %4679 = vmatprep.subr.mxu0 %v2333
        %4680 = vmatpush2.msra.mxu0 %v2332
        %4681 = vmatprep.subr.mxu0 %v2325
        %4682 = vmatpush2.msra.mxu0 %v2324
        %4683 = vmatprep.subr.mxu0 %v2317
        %4684 = vmatpush2.msra.mxu0 %v2316
        %4685 = vmatprep.subr.mxu0 %v2309
        %4686 = vmatpush2.msra.mxu0 %v2308
        %4687 = vmatprep.subr.mxu0 %v2301
        %4688 = vmatpush2.msra.mxu0 %v2300
        %4689 = vmatprep.subr.mxu0 %v2293
        %4690 = vmatpush2.msra.mxu0 %v2292
        %4691 = vmatprep.subr.mxu0 %v2285
        %4692 = vmatpush2.msra.mxu0 %v2284
        %4693 = vmatprep.subr.mxu0 %v2277
        %4694 = vmatpush2.msra.mxu0 %v2276
        %4695 = vmatprep.subr.mxu0 %v2269
        %4696 = vmatpush2.msra.mxu0 %v2268
        %4697 = vmatprep.mubr.f32.mxu0 %v341
        %4698 = vmatmul.mubr.f32.gmra.mxu0 %v340
        %v4699 = vpop.f32.mrf.mxu0
        %v4700 = vadd.f32 %v4629, %v4699
        %v4701 = vpop.f32.mrf.mxu0
        %v4702 = vadd.f32 %v4631, %v4701
        %4703 = vdwg.mxu0
        %s4704 = smul.u32 %s26, 1024
        %s4705 = sshra.s32 %s4704, 7
        %s4706 = sand.u32 %s4704, 127
        %s4707 = smul.u32 %s322, 16
        %s4708 = sadd.s32 %s4705, %s4707
        %s4709 = smul.addr %s4708, 8
        %s4710 = scalar_lea.vmem [#allocation2], %s4709
        %4711 = vst [vmem:[%s4710] sm:$0xff] %v2996
        %4712 = vst [vmem:[%s4710 + $0x8] sm:$0xff] %v2998
        %4713 = vst [vmem:[%s4710 + $0x10] sm:$0xff] %v3564
        %4714 = vst [vmem:[%s4710 + $0x18] sm:$0xff] %v3566
        %4715 = vst [vmem:[%s4710 + $0x20] sm:$0xff] %v4132
        %4716 = vst [vmem:[%s4710 + $0x28] sm:$0xff] %v4134
        %4717 = vst [vmem:[%s4710 + $0x30] sm:$0xff] %v4700
        %4718 = vst [vmem:[%s4710 + $0x38] sm:$0xff] %v4702
        %4719 = vst [vmem:[%s256] sm:$0xff] %v2996
        %4720 = vst [vmem:[%s256 + $0x8] sm:$0xff] %v2998
        %4721 = vst [vmem:[%s256 + $0x10] sm:$0xff] %v3564
        %4722 = vst [vmem:[%s256 + $0x18] sm:$0xff] %v3566
        %4723 = vst [vmem:[%s256 + $0x20] sm:$0xff] %v4132
        %4724 = vst [vmem:[%s256 + $0x28] sm:$0xff] %v4134
        %4725 = vst [vmem:[%s256 + $0x30] sm:$0xff] %v4700
        %4726 = vst [vmem:[%s256 + $0x38] sm:$0xff] %v4702
        %s4727 = sand.u32 %s118, 1
        %s4728 = scalar_lea.sflag [#allocation5], %s4727
        %s4729 = sand.u32 %s118, 1
        %s4730 = smul.addr %s4729, 64
        %s4731 = scalar_lea.vmem [#allocation9], %s4730
        // Predicated region
        $region49: #{fused_mlp.1} parent=31 // pred_check
          %p4732 = pneg %p128
        $region50: #{fused_mlp.1} parent=31 // pred_check_branch
          %4734 = sbr.rel (%p4732) target = $region52
        $region51: #{fused_mlp.1} parent=31 // pred_region
          %s4735 = smul.u32 8, %s26
          %s4737 = ssub.s32 1024, 1024
          %4738 = vsyncadd %s4728, %s4737
          %s4739 = smul.addr %s4735, 128
          %s4740 = scalar_lea.hbm %s3, %s4739
          %s4742 = sshll.u32 %s4731, 4
          %s4743 = int_to_ptr.vmem [resolvable:$true] %s4742
          %4745 = dma.vmem_to_hbm [thread:$0]  %s4743, 1024, %s4740, %s4728
        $region52: #{fused_mlp.1} parent=31 // pred_fallthru
          _
      $region32: #{fused_mlp.1} parent=5 // pred_fallthru
        _
      %p4746 = scmp.le.s32.totalorder 2, %s16
      // Predicated region
      $region53: #{fused_mlp.1} parent=5 // pred_check
        %p4747 = pneg %p4746
      $region54: #{fused_mlp.1} parent=5 // pred_check_branch
        %4749 = sbr.rel (%p4747) target = $region56
      $region55: #{fused_mlp.1} parent=5 // pred_region
        %s4750 = ssub.s32 %s16, 2
        // Predicated region
        $region57: #{fused_mlp.1} parent=55 // pred_check
          %p4751 = pneg %p134
        $region58: #{fused_mlp.1} parent=55 // pred_check_branch
          %4753 = sbr.rel (%p4751) target = $region60
        $region59: #{fused_mlp.1} parent=55 // pred_region
          %s4754 = sand.u32 %s119, 1
          %s4755 = scalar_lea.sflag [#allocation5], %s4754
          %s4756 = sand.u32 %s119, 1
          %s4757 = smul.addr %s4756, 64
          %s4758 = scalar_lea.vmem [#allocation9], %s4757
          %4759 = dma.done %s4755, 1024
        $region60: #{fused_mlp.1} parent=55 // pred_fallthru
          _
      $region56: #{fused_mlp.1} parent=5 // pred_fallthru
        _
    $region6: #{fused_mlp.1} parent=1 // loop_footer
      %s20 = sadd.s32 1, %s16
    $region7: #{fused_mlp.1} parent=1 // loop_footer_branch
      %15 = sbr.rel target = $region3
    $region8: #{fused_mlp.1} parent=1 // loop_exit
      _
    %4760 = vsyncpa [#allocation4], 1
    %s4761 = scalar_lea.sflag [#allocation4], 1
    %4762 = vsyncpa %s4761, 1
    %4763 = vsyncpa [#allocation7], 1
    %s4764 = scalar_lea.sflag [#allocation7], 1
    %4765 = vsyncpa %s4764, 1
    %4766 = vsyncpa [#allocation5], 1
    %s4767 = scalar_lea.sflag [#allocation5], 1
    %4768 = vsyncpa %s4767, 1

</llo_original>
